<compile_context>
chip_gen: v5e
topology: v5e:2x2
jax: 0.10.0
libtpu: 0.0.40
codegen_flags: <defaults>
</compile_context>

<pallas_src>
import functools

import jax
import jax.numpy as jnp
from jax.experimental import pallas as pl
from jax.experimental.pallas import tpu as pltpu


def _round_up(x, m):
    return (x + m - 1) // m * m


def _vanilla_g_kernel(x_ref,
                      w1_ref, b1_ref,
                      w2_ref, b2_ref,
                      w3_ref, b3_ref,
                      w4_ref, b4_ref,
                      out_ref):
    # Activations cast to bf16 for the MXU; accumulation stays f32.
    h = x_ref[...].astype(jnp.bfloat16)

    # Layer 1: Linear(z_dim -> 256) + ReLU
    a = jnp.dot(h, w1_ref[...], preferred_element_type=jnp.float32)
    a = jnp.maximum(a + b1_ref[...], 0.0)

    # Layer 2: Linear(256 -> 512) + ReLU
    a = jnp.dot(a.astype(jnp.bfloat16), w2_ref[...],
                preferred_element_type=jnp.float32)
    a = jnp.maximum(a + b2_ref[...], 0.0)

    # Layer 3: Linear(512 -> 1024) + ReLU
    a = jnp.dot(a.astype(jnp.bfloat16), w3_ref[...],
                preferred_element_type=jnp.float32)
    a = jnp.maximum(a + b3_ref[...], 0.0)

    # Layer 4: Linear(1024 -> out_dim_p) + Tanh (f32)
    a = jnp.dot(a.astype(jnp.bfloat16), w4_ref[...],
                preferred_element_type=jnp.float32)
    out_ref[...] = jnp.tanh(a + b4_ref[...])


def prepare_params(params, img_size):
    """One-time weight preprocessing (done OUTSIDE the jitted forward).

    Pads the last layer's output features up to a multiple of 128 lanes and
    casts all weights to bf16.  Biases stay f32 (they are tiny).
    """
    (w1, b1), (w2, b2), (w3, b3), (w4, b4) = params
    out_dim = img_size * img_size
    out_dim_p = _round_up(out_dim, 128)
    if out_dim_p != out_dim:
        w4 = jnp.pad(w4, ((0, 0), (0, out_dim_p - out_dim)))
        b4 = jnp.pad(b4, ((0, 0), (0, out_dim_p - out_dim)))
    w1b = w1.astype(jnp.bfloat16)
    w2b = w2.astype(jnp.bfloat16)
    w3b = w3.astype(jnp.bfloat16)
    w4b = w4.astype(jnp.bfloat16)
    return (w1b, b1, w2b, b2, w3b, b3, w4b, b4)


@functools.partial(jax.jit, static_argnames=("img_size", "tile_b"))
def vanilla_g_forward(x, prepped, img_size, tile_b=512):
    """x: (B, z_dim) f32, prepped: output of prepare_params.

    Returns (B, 1, img_size, img_size) f32, matching PyTorch vanilla_G.
    """
    w1b, b1, w2b, b2, w3b, b3, w4b, b4 = prepped
    B, z_dim = x.shape
    out_dim = img_size * img_size
    out_dim_p = w4b.shape[1]

    # ---- Batch tile selection.
    #   * round batch up to a sublane multiple (8)
    #   * keep >= 2 grid steps when possible so the "parallel" axis can split
    #     across both TensorCores on v7x
    B_min = _round_up(B, 8)
    if B_min >= 16:
        tb = min(tile_b, _round_up(B_min // 2, 8))
    else:
        tb = B_min
    B_p = _round_up(B, tb)
    if B_p != B:
        x = jnp.pad(x, ((0, B_p - B), (0, 0)))

    grid = (B_p // tb,)

    # Weights/biases: constant block index -> DMA'd once, VMEM-resident
    # across all batch-tile grid steps.
    def const_spec(a):
        return pl.BlockSpec(a.shape, lambda i: (0, 0))

    # ---- Cost estimate (helps XLA schedule around the call).
    flops = 2 * B_p * (z_dim * 256 + 256 * 512 + 512 * 1024
                       + 1024 * out_dim_p)
    weight_bytes = sum(int(w.size) * 2 for w in (w1b, w2b, w3b, w4b))
    bias_bytes = sum(int(b.size) * 4 for b in (b1, b2, b3, b4))
    act_bytes = int(x.size) * 4 + B_p * out_dim_p * 4
    cost = pl.CostEstimate(flops=flops,
                           transcendentals=B_p * out_dim_p,
                           bytes_accessed=weight_bytes + bias_bytes + act_bytes)

    # ---- Raise the scoped-VMEM limit only when the footprint needs it.
    vmem_est = (2 * tb * z_dim * 4            # x tile (double-buffered)
                + 2 * tb * out_dim_p * 4      # out tile (double-buffered)
                + 2 * (weight_bytes + bias_bytes)   # resident (double-buffered)
                + 3 * tb * 1024 * 4)          # largest intermediates
    vmem_limit = None
    if vmem_est > (30 << 20):
        vmem_limit = int(min(vmem_est * 3 // 2, 96 << 20))

    out2d = pl.pallas_call(
        _vanilla_g_kernel,
        out_shape=jax.ShapeDtypeStruct((B_p, out_dim_p), jnp.float32),
        grid_spec=pltpu.PrefetchScalarGridSpec(
            num_scalar_prefetch=0,
            grid=grid,
            in_specs=[pl.BlockSpec((tb, z_dim), lambda i: (i, 0)),
                      const_spec(w1b), const_spec(b1),
                      const_spec(w2b), const_spec(b2),
                      const_spec(w3b), const_spec(b3),
                      const_spec(w4b), const_spec(b4)],
            out_specs=pl.BlockSpec((tb, out_dim_p), lambda i: (i, 0)),
        ),
        compiler_params=pltpu.CompilerParams(
            dimension_semantics=("parallel",),
            vmem_limit_bytes=vmem_limit),
        cost_estimate=cost,
    )(x, w1b, b1, w2b, b2, w3b, b3, w4b, b4)

    # Drop batch / lane padding, then NCHW reshape like PyTorch's `view`.
    out2d = out2d[:B, :out_dim]
    return out2d.reshape(B, 1, img_size, img_size)


def init_params(key, z_dim, img_size):
    """Deterministic synthetic init of the 4 Linear layers (PyTorch-style)."""
    dims = [z_dim, 256, 512, 1024, img_size * img_size]
    params = []
    for i in range(4):
        key, kw, kb = jax.random.split(key, 3)
        fan_in, fan_out = dims[i], dims[i + 1]
        bound = 1.0 / jnp.sqrt(fan_in)
        w = jax.random.uniform(kw, (fan_in, fan_out), jnp.float32, -bound, bound)
        b = jax.random.uniform(kb, (1, fan_out), jnp.float32, -bound, bound)
        params.append((w, b))
    return params


def _reference_forward(x, params, img_size):
    """Pure-JAX f32 reference."""
    h = x
    for i, (w, b) in enumerate(params):
        h = h @ w + b
        h = jnp.maximum(h, 0.0) if i < 3 else jnp.tanh(h)
    return h.reshape(x.shape[0], 1, img_size, img_size)


if __name__ == "__main__":
    z_dim = 64
    img_size = 16
    batch = 8

    key = jax.random.PRNGKey(0)
    key, kx = jax.random.split(key)
    x = jax.random.normal(kx, (batch, z_dim), dtype=jnp.float32)

    params = init_params(key, z_dim, img_size)
    prepped = prepare_params(params, img_size)            # one-time, outside jit

    out = vanilla_g_forward(x, prepped, img_size)
    out = jax.block_until_ready(out)

    assert out.shape == (batch, 1, img_size, img_size), out.shape
    assert out.dtype == jnp.float32
    # Tanh output must lie in [-1, 1].
    assert bool(jnp.all(jnp.abs(out) <= 1.0))

    # bf16 weight/activation streaming -> tolerance ~0.02 absolute on tanh output.
    ref = _reference_forward(x, params, img_size)
    max_err = float(jnp.max(jnp.abs(out - ref)))
    assert max_err < 0.02, max_err

    print("KERNEL_OK")
</pallas_src>

<mosaic_0001>
module attributes {stable_mosaic.version = 11 : i64} {
  func.func @_vanilla_g_kernel(%arg0: i32, %arg1: memref<8x64xf32, #tpu.memory_space<vmem>>, %arg2: memref<64x256xbf16, #tpu.memory_space<vmem>>, %arg3: memref<1x256xf32, #tpu.memory_space<vmem>>, %arg4: memref<256x512xbf16, #tpu.memory_space<vmem>>, %arg5: memref<1x512xf32, #tpu.memory_space<vmem>>, %arg6: memref<512x1024xbf16, #tpu.memory_space<vmem>>, %arg7: memref<1x1024xf32, #tpu.memory_space<vmem>>, %arg8: memref<1024x256xbf16, #tpu.memory_space<vmem>>, %arg9: memref<1x256xf32, #tpu.memory_space<vmem>>, %arg10: memref<8x256xf32, #tpu.memory_space<vmem>>) attributes {dimension_semantics = [#tpu.dimension_semantics<parallel>], iteration_bounds = array<i64: 1>, scalar_prefetch = 0 : i64, scratch_operands = 0 : i64, tpu.core_type = #tpu.core_type<tc>, window_params = [{transform_indices = @transform_0, window_bounds = array<i64: 8, 64>}, {pipeline_mode = #tpu.pipeline_mode<synchronous>, transform_indices = @transform_1, window_bounds = array<i64: 64, 256>}, {pipeline_mode = #tpu.pipeline_mode<synchronous>, transform_indices = @transform_2, window_bounds = array<i64: 1, 256>}, {pipeline_mode = #tpu.pipeline_mode<synchronous>, transform_indices = @transform_3, window_bounds = array<i64: 256, 512>}, {pipeline_mode = #tpu.pipeline_mode<synchronous>, transform_indices = @transform_4, window_bounds = array<i64: 1, 512>}, {pipeline_mode = #tpu.pipeline_mode<synchronous>, transform_indices = @transform_5, window_bounds = array<i64: 512, 1024>}, {pipeline_mode = #tpu.pipeline_mode<synchronous>, transform_indices = @transform_6, window_bounds = array<i64: 1, 1024>}, {pipeline_mode = #tpu.pipeline_mode<synchronous>, transform_indices = @transform_7, window_bounds = array<i64: 1024, 256>}, {pipeline_mode = #tpu.pipeline_mode<synchronous>, transform_indices = @transform_8, window_bounds = array<i64: 1, 256>}, {transform_indices = @transform_9, window_bounds = array<i64: 8, 256>}]} {
    %c0 = arith.constant 0 : index
    %c0_0 = arith.constant 0 : index
    %0 = vector.load %arg1[%c0, %c0_0] : memref<8x64xf32, #tpu.memory_space<vmem>>, vector<8x64xf32>
    %1 = arith.truncf %0 : vector<8x64xf32> to vector<8x64xbf16>
    %c0_1 = arith.constant 0 : index
    %c0_2 = arith.constant 0 : index
    %2 = vector.load %arg2[%c0_1, %c0_2] : memref<64x256xbf16, #tpu.memory_space<vmem>>, vector<64x256xbf16>
    %cst = arith.constant dense<0.000000e+00> : vector<8x256xf32>
    %3 = tpu.matmul %1, %2, %cst {dimension_numbers = #tpu.dot_dimension_numbers<[1], [0], [0], [1], [0, 0, 1, 1], [], []>} : vector<8x64xbf16>, vector<64x256xbf16>, vector<8x256xf32> -> vector<8x256xf32>
    %c0_3 = arith.constant 0 : index
    %c0_4 = arith.constant 0 : index
    %4 = vector.load %arg3[%c0_3, %c0_4] : memref<1x256xf32, #tpu.memory_space<vmem>>, vector<1x256xf32>
    %5 = vector.broadcast %4 : vector<1x256xf32> to vector<8x256xf32>
    %6 = arith.addf %3, %5 : vector<8x256xf32>
    %cst_5 = arith.constant 0.000000e+00 : f32
    %7 = vector.broadcast %cst_5 : f32 to vector<8x256xf32>
    %8 = arith.maximumf %6, %7 : vector<8x256xf32>
    %9 = arith.truncf %8 : vector<8x256xf32> to vector<8x256xbf16>
    %c0_6 = arith.constant 0 : index
    %c0_7 = arith.constant 0 : index
    %10 = vector.load %arg4[%c0_6, %c0_7] : memref<256x512xbf16, #tpu.memory_space<vmem>>, vector<256x512xbf16>
    %cst_8 = arith.constant dense<0.000000e+00> : vector<8x512xf32>
    %11 = tpu.matmul %9, %10, %cst_8 {dimension_numbers = #tpu.dot_dimension_numbers<[1], [0], [0], [1], [0, 0, 1, 1], [], []>} : vector<8x256xbf16>, vector<256x512xbf16>, vector<8x512xf32> -> vector<8x512xf32>
    %c0_9 = arith.constant 0 : index
    %c0_10 = arith.constant 0 : index
    %12 = vector.load %arg5[%c0_9, %c0_10] : memref<1x512xf32, #tpu.memory_space<vmem>>, vector<1x512xf32>
    %13 = vector.broadcast %12 : vector<1x512xf32> to vector<8x512xf32>
    %14 = arith.addf %11, %13 : vector<8x512xf32>
    %cst_11 = arith.constant 0.000000e+00 : f32
    %15 = vector.broadcast %cst_11 : f32 to vector<8x512xf32>
    %16 = arith.maximumf %14, %15 : vector<8x512xf32>
    %17 = arith.truncf %16 : vector<8x512xf32> to vector<8x512xbf16>
    %c0_12 = arith.constant 0 : index
    %c0_13 = arith.constant 0 : index
    %18 = vector.load %arg6[%c0_12, %c0_13] : memref<512x1024xbf16, #tpu.memory_space<vmem>>, vector<512x1024xbf16>
    %cst_14 = arith.constant dense<0.000000e+00> : vector<8x1024xf32>
    %19 = tpu.matmul %17, %18, %cst_14 {dimension_numbers = #tpu.dot_dimension_numbers<[1], [0], [0], [1], [0, 0, 1, 1], [], []>} : vector<8x512xbf16>, vector<512x1024xbf16>, vector<8x1024xf32> -> vector<8x1024xf32>
    %c0_15 = arith.constant 0 : index
    %c0_16 = arith.constant 0 : index
    %20 = vector.load %arg7[%c0_15, %c0_16] : memref<1x1024xf32, #tpu.memory_space<vmem>>, vector<1x1024xf32>
    %21 = vector.broadcast %20 : vector<1x1024xf32> to vector<8x1024xf32>
    %22 = arith.addf %19, %21 : vector<8x1024xf32>
    %cst_17 = arith.constant 0.000000e+00 : f32
    %23 = vector.broadcast %cst_17 : f32 to vector<8x1024xf32>
    %24 = arith.maximumf %22, %23 : vector<8x1024xf32>
    %25 = arith.truncf %24 : vector<8x1024xf32> to vector<8x1024xbf16>
    %c0_18 = arith.constant 0 : index
    %c0_19 = arith.constant 0 : index
    %26 = vector.load %arg8[%c0_18, %c0_19] : memref<1024x256xbf16, #tpu.memory_space<vmem>>, vector<1024x256xbf16>
    %cst_20 = arith.constant dense<0.000000e+00> : vector<8x256xf32>
    %27 = tpu.matmul %25, %26, %cst_20 {dimension_numbers = #tpu.dot_dimension_numbers<[1], [0], [0], [1], [0, 0, 1, 1], [], []>} : vector<8x1024xbf16>, vector<1024x256xbf16>, vector<8x256xf32> -> vector<8x256xf32>
    %c0_21 = arith.constant 0 : index
    %c0_22 = arith.constant 0 : index
    %28 = vector.load %arg9[%c0_21, %c0_22] : memref<1x256xf32, #tpu.memory_space<vmem>>, vector<1x256xf32>
    %29 = vector.broadcast %28 : vector<1x256xf32> to vector<8x256xf32>
    %30 = arith.addf %27, %29 : vector<8x256xf32>
    %31 = math.tanh %30 : vector<8x256xf32>
    %c0_23 = arith.constant 0 : index
    %c0_24 = arith.constant 0 : index
    %32 = vector.load %arg10[%c0_23, %c0_24] : memref<8x256xf32, #tpu.memory_space<vmem>>, vector<8x256xf32>
    tpu.vector_store %arg10[%c0_23, %c0_24], %31 {strides = array<i32>} : memref<8x256xf32, #tpu.memory_space<vmem>>, vector<8x256xf32>,
    return
  }
  func.func @transform_0(%arg0: i32) -> (i32, i32) {
    %c0_i32 = arith.constant 0 : i32
    %c0_i32_0 = arith.constant 0 : i32
    return %arg0, %c0_i32 : i32, i32
  }
  func.func @transform_1(%arg0: i32) -> (i32, i32) {
    %c0_i32 = arith.constant 0 : i32
    %c0_i32_0 = arith.constant 0 : i32
    %c0_i32_1 = arith.constant 0 : i32
    return %c0_i32, %c0_i32_0 : i32, i32
  }
  func.func @transform_2(%arg0: i32) -> (i32, i32) {
    %c0_i32 = arith.constant 0 : i32
    %c0_i32_0 = arith.constant 0 : i32
    %c0_i32_1 = arith.constant 0 : i32
    return %c0_i32, %c0_i32_0 : i32, i32
  }
  func.func @transform_3(%arg0: i32) -> (i32, i32) {
    %c0_i32 = arith.constant 0 : i32
    %c0_i32_0 = arith.constant 0 : i32
    %c0_i32_1 = arith.constant 0 : i32
    return %c0_i32, %c0_i32_0 : i32, i32
  }
  func.func @transform_4(%arg0: i32) -> (i32, i32) {
    %c0_i32 = arith.constant 0 : i32
    %c0_i32_0 = arith.constant 0 : i32
    %c0_i32_1 = arith.constant 0 : i32
    return %c0_i32, %c0_i32_0 : i32, i32
  }
  func.func @transform_5(%arg0: i32) -> (i32, i32) {
    %c0_i32 = arith.constant 0 : i32
    %c0_i32_0 = arith.constant 0 : i32
    %c0_i32_1 = arith.constant 0 : i32
    return %c0_i32, %c0_i32_0 : i32, i32
  }
  func.func @transform_6(%arg0: i32) -> (i32, i32) {
    %c0_i32 = arith.constant 0 : i32
    %c0_i32_0 = arith.constant 0 : i32
    %c0_i32_1 = arith.constant 0 : i32
    return %c0_i32, %c0_i32_0 : i32, i32
  }
  func.func @transform_7(%arg0: i32) -> (i32, i32) {
    %c0_i32 = arith.constant 0 : i32
    %c0_i32_0 = arith.constant 0 : i32
    %c0_i32_1 = arith.constant 0 : i32
    return %c0_i32, %c0_i32_0 : i32, i32
  }
  func.func @transform_8(%arg0: i32) -> (i32, i32) {
    %c0_i32 = arith.constant 0 : i32
    %c0_i32_0 = arith.constant 0 : i32
    %c0_i32_1 = arith.constant 0 : i32
    return %c0_i32, %c0_i32_0 : i32, i32
  }
  func.func @transform_9(%arg0: i32) -> (i32, i32) {
    %c0_i32 = arith.constant 0 : i32
    %c0_i32_0 = arith.constant 0 : i32
    return %arg0, %c0_i32 : i32, i32
  }
}

</mosaic_0001>

<llo_original>
// kernel: vanilla_g_forward.1
$region0: #{vanilla_g_forward.1}
  #allocation0 [shape = 'u32[]', space=smem, size = 0x4, offset = 0x4, fixed_abs, tag = 'smem constant byte address 0x4 - core index']
  #allocation1 [shape = 'u32[72,128]{1,0:T(1,128)}', space=vmem, size = 0x9000, scoped, tag = 'internal scratch']
  %s0 = inlined_call_operand.hbm [shape: f32[8,64], index: 0, kind: input, shape index: {}]
  %s1 = inlined_call_operand.hbm [shape: bf16[64,256], index: 1, kind: input, shape index: {}]
  %s2 = inlined_call_operand.hbm [shape: f32[1,256], index: 2, kind: input, shape index: {}]
  %s3 = inlined_call_operand.hbm [shape: bf16[256,512], index: 3, kind: input, shape index: {}]
  %s4 = inlined_call_operand.hbm [shape: f32[1,512], index: 4, kind: input, shape index: {}]
  %s5 = inlined_call_operand.hbm [shape: bf16[512,1024], index: 5, kind: input, shape index: {}]
  %s6 = inlined_call_operand.hbm [shape: f32[1,1024], index: 6, kind: input, shape index: {}]
  %s7 = inlined_call_operand.hbm [shape: bf16[1024,256], index: 7, kind: input, shape index: {}]
  %s8 = inlined_call_operand.vmem [shape: f32[1,256], index: 8, kind: input, shape index: {}]
  %s9 = inlined_call_operand.vmem [shape: f32[8,256], index: 9, kind: output, shape index: {}]
  %s10 = sld [smem:[#allocation0]]
  $region78: #{vanilla_g_forward.1} parent=0
    _
  %s12 = ssub.s32 1, %s10
  %s13 = scalar_select 0, %s12, %s10
  $region1: #{vanilla_g_forward.1} parent=0
    #allocation2 [shape = 'u8[4096]{0}', space=vmem, size = 0x1000, scoped, tag = 'input window, operand 0, single buffered']
    #allocation3 [shape = 's32[1]{0}', space=sflag, size = 0x4, scoped, tag = 'scoped memory for vanilla_g_forward.1']
    #allocation4 [shape = 'u8[32768]{0}', space=vmem, size = 0x8000, scoped, tag = 'input window, operand 1, single buffered']
    #allocation5 [shape = 's32[1]{0}', space=sflag, size = 0x4, scoped, tag = 'scoped memory for vanilla_g_forward.1']
    #allocation6 [shape = 'u8[1024]{0}', space=vmem, size = 0x400, scoped, tag = 'input window, operand 2, single buffered']
    #allocation7 [shape = 'u8[262144]{0}', space=vmem, size = 0x40000, scoped, tag = 'input window, operand 3, single buffered']
    #allocation8 [shape = 's32[1]{0}', space=sflag, size = 0x4, scoped, tag = 'scoped memory for vanilla_g_forward.1']
    #allocation9 [shape = 'u8[2048]{0}', space=vmem, size = 0x800, scoped, tag = 'input window, operand 4, single buffered']
    #allocation10 [shape = 'u8[1048576]{0}', space=vmem, size = 0x100000, scoped, tag = 'input window, operand 5, single buffered']
    #allocation11 [shape = 's32[1]{0}', space=sflag, size = 0x4, scoped, tag = 'scoped memory for vanilla_g_forward.1']
    #allocation12 [shape = 'u8[4096]{0}', space=vmem, size = 0x1000, scoped, tag = 'input window, operand 6, single buffered']
    #allocation13 [shape = 'u8[524288]{0}', space=vmem, size = 0x80000, scoped, tag = 'input window, operand 7, single buffered']
    #allocation14 [shape = 's32[1]{0}', space=sflag, size = 0x4, scoped, tag = 'scoped memory for vanilla_g_forward.1']
    %14 = vsyncpa [#allocation3], 0
    %15 = vsyncpa [#allocation5], 0
    %16 = vsyncpa [#allocation8], 0
    %17 = vsyncpa [#allocation11], 0
    %18 = vsyncpa [#allocation14], 0
    // Predicated region
    $region2: #{vanilla_g_forward.1} parent=1 // pred_check
      _
    $region3: #{vanilla_g_forward.1} parent=1 // pred_check_branch
      %20 = sbr.rel (0) target = $region5
    $region4: #{vanilla_g_forward.1} parent=1 // pred_region
      %22 = vsyncadd [#allocation3], 0
      %s24 = sshll.u32 %s0, 4
      %s25 = int_to_ptr.hbm [resolvable:$true] %s24
      %s26 = sshll.u32 [#allocation2], 4
      %s27 = int_to_ptr.vmem [resolvable:$true] %s26
      %29 = dma.hbm_to_vmem [thread:$0]  %s25, 128, %s27, [#allocation3]
    $region5: #{vanilla_g_forward.1} parent=1 // pred_fallthru
      _
    // Predicated region
    $region6: #{vanilla_g_forward.1} parent=1 // pred_check
      _
    $region7: #{vanilla_g_forward.1} parent=1 // pred_check_branch
      %31 = sbr.rel (0) target = $region9
    $region8: #{vanilla_g_forward.1} parent=1 // pred_region
      %33 = vsyncadd [#allocation5], 0
      %s34 = sshll.u32 %s1, 4
      %s35 = int_to_ptr.hbm [resolvable:$true] %s34
      %s36 = sshll.u32 [#allocation4], 4
      %s37 = int_to_ptr.vmem [resolvable:$true] %s36
      %42 = dma.hbm_to_vmem [thread:$0]  %s35, 1024, %s37, [#allocation5], 128, 128, 8
    $region9: #{vanilla_g_forward.1} parent=1 // pred_fallthru
      _
    // Predicated region
    $region10: #{vanilla_g_forward.1} parent=1 // pred_check
      _
    $region11: #{vanilla_g_forward.1} parent=1 // pred_check_branch
      %44 = sbr.rel (0) target = $region13
    $region12: #{vanilla_g_forward.1} parent=1 // pred_region
      %46 = vsyncadd [#allocation5], 0
      %s48 = sshll.u32 %s2, 4
      %s49 = int_to_ptr.hbm [resolvable:$true] %s48
      %s50 = sshll.u32 [#allocation6], 4
      %s51 = int_to_ptr.vmem [resolvable:$true] %s50
      %53 = dma.hbm_to_vmem [thread:$0]  %s49, 32, %s51, [#allocation5]
    $region13: #{vanilla_g_forward.1} parent=1 // pred_fallthru
      _
    // Predicated region
    $region14: #{vanilla_g_forward.1} parent=1 // pred_check
      _
    $region15: #{vanilla_g_forward.1} parent=1 // pred_check_branch
      %55 = sbr.rel (0) target = $region17
    $region16: #{vanilla_g_forward.1} parent=1 // pred_region
      %57 = vsyncadd [#allocation8], 0
      %s58 = sshll.u32 %s3, 4
      %s59 = int_to_ptr.hbm [resolvable:$true] %s58
      %s60 = sshll.u32 [#allocation7], 4
      %s61 = int_to_ptr.vmem [resolvable:$true] %s60
      %66 = dma.hbm_to_vmem [thread:$0]  %s59, 8192, %s61, [#allocation8], 256, 256, 16
    $region17: #{vanilla_g_forward.1} parent=1 // pred_fallthru
      _
    // Predicated region
    $region18: #{vanilla_g_forward.1} parent=1 // pred_check
      _
    $region19: #{vanilla_g_forward.1} parent=1 // pred_check_branch
      %68 = sbr.rel (0) target = $region21
    $region20: #{vanilla_g_forward.1} parent=1 // pred_region
      %70 = vsyncadd [#allocation8], 0
      %s72 = sshll.u32 %s4, 4
      %s73 = int_to_ptr.hbm [resolvable:$true] %s72
      %s74 = sshll.u32 [#allocation9], 4
      %s75 = int_to_ptr.vmem [resolvable:$true] %s74
      %77 = dma.hbm_to_vmem [thread:$0]  %s73, 64, %s75, [#allocation8]
    $region21: #{vanilla_g_forward.1} parent=1 // pred_fallthru
      _
    // Predicated region
    $region22: #{vanilla_g_forward.1} parent=1 // pred_check
      _
    $region23: #{vanilla_g_forward.1} parent=1 // pred_check_branch
      %79 = sbr.rel (0) target = $region25
    $region24: #{vanilla_g_forward.1} parent=1 // pred_region
      %81 = vsyncadd [#allocation11], 0
      %s82 = sshll.u32 %s5, 4
      %s83 = int_to_ptr.hbm [resolvable:$true] %s82
      %s84 = sshll.u32 [#allocation10], 4
      %s85 = int_to_ptr.vmem [resolvable:$true] %s84
      %90 = dma.hbm_to_vmem [thread:$0]  %s83, 32768, %s85, [#allocation11], 512, 512, 32
    $region25: #{vanilla_g_forward.1} parent=1 // pred_fallthru
      _
    // Predicated region
    $region26: #{vanilla_g_forward.1} parent=1 // pred_check
      _
    $region27: #{vanilla_g_forward.1} parent=1 // pred_check_branch
      %92 = sbr.rel (0) target = $region29
    $region28: #{vanilla_g_forward.1} parent=1 // pred_region
      %94 = vsyncadd [#allocation11], 0
      %s96 = sshll.u32 %s6, 4
      %s97 = int_to_ptr.hbm [resolvable:$true] %s96
      %s98 = sshll.u32 [#allocation12], 4
      %s99 = int_to_ptr.vmem [resolvable:$true] %s98
      %101 = dma.hbm_to_vmem [thread:$0]  %s97, 128, %s99, [#allocation11]
    $region29: #{vanilla_g_forward.1} parent=1 // pred_fallthru
      _
    // Predicated region
    $region30: #{vanilla_g_forward.1} parent=1 // pred_check
      _
    $region31: #{vanilla_g_forward.1} parent=1 // pred_check_branch
      %103 = sbr.rel (0) target = $region33
    $region32: #{vanilla_g_forward.1} parent=1 // pred_region
      %105 = vsyncadd [#allocation14], 0
      %s106 = sshll.u32 %s7, 4
      %s107 = int_to_ptr.hbm [resolvable:$true] %s106
      %s108 = sshll.u32 [#allocation13], 4
      %s109 = int_to_ptr.vmem [resolvable:$true] %s108
      %114 = dma.hbm_to_vmem [thread:$0]  %s107, 16384, %s109, [#allocation14], 128, 128, 8
    $region33: #{vanilla_g_forward.1} parent=1 // pred_fallthru
      _
    // Predicated region
    $region34: #{vanilla_g_forward.1} parent=1 // pred_check
      _
    $region35: #{vanilla_g_forward.1} parent=1 // pred_check_branch
      %116 = sbr.rel (0) target = $region37
    $region36: #{vanilla_g_forward.1} parent=1 // pred_region
      _
    $region37: #{vanilla_g_forward.1} parent=1 // pred_fallthru
      _
    // Predicated region
    $region38: #{vanilla_g_forward.1} parent=1 // pred_check
      _
    $region39: #{vanilla_g_forward.1} parent=1 // pred_check_branch
      %118 = sbr.rel (0) target = $region41
    $region40: #{vanilla_g_forward.1} parent=1 // pred_region
      %120 = dma.done [#allocation3], 128
    $region41: #{vanilla_g_forward.1} parent=1 // pred_fallthru
      _
    // Predicated region
    $region42: #{vanilla_g_forward.1} parent=1 // pred_check
      _
    $region43: #{vanilla_g_forward.1} parent=1 // pred_check_branch
      %122 = sbr.rel (0) target = $region45
    $region44: #{vanilla_g_forward.1} parent=1 // pred_region
      %124 = dma.done [#allocation5], 1024
    $region45: #{vanilla_g_forward.1} parent=1 // pred_fallthru
      _
    // Predicated region
    $region46: #{vanilla_g_forward.1} parent=1 // pred_check
      _
    $region47: #{vanilla_g_forward.1} parent=1 // pred_check_branch
      %126 = sbr.rel (0) target = $region49
    $region48: #{vanilla_g_forward.1} parent=1 // pred_region
      %128 = dma.done [#allocation5], 32
    $region49: #{vanilla_g_forward.1} parent=1 // pred_fallthru
      _
    // Predicated region
    $region50: #{vanilla_g_forward.1} parent=1 // pred_check
      _
    $region51: #{vanilla_g_forward.1} parent=1 // pred_check_branch
      %130 = sbr.rel (0) target = $region53
    $region52: #{vanilla_g_forward.1} parent=1 // pred_region
      %132 = dma.done [#allocation8], 8192
    $region53: #{vanilla_g_forward.1} parent=1 // pred_fallthru
      _
    // Predicated region
    $region54: #{vanilla_g_forward.1} parent=1 // pred_check
      _
    $region55: #{vanilla_g_forward.1} parent=1 // pred_check_branch
      %134 = sbr.rel (0) target = $region57
    $region56: #{vanilla_g_forward.1} parent=1 // pred_region
      %136 = dma.done [#allocation8], 64
    $region57: #{vanilla_g_forward.1} parent=1 // pred_fallthru
      _
    // Predicated region
    $region58: #{vanilla_g_forward.1} parent=1 // pred_check
      _
    $region59: #{vanilla_g_forward.1} parent=1 // pred_check_branch
      %138 = sbr.rel (0) target = $region61
    $region60: #{vanilla_g_forward.1} parent=1 // pred_region
      %140 = dma.done [#allocation11], 32768
    $region61: #{vanilla_g_forward.1} parent=1 // pred_fallthru
      _
    // Predicated region
    $region62: #{vanilla_g_forward.1} parent=1 // pred_check
      _
    $region63: #{vanilla_g_forward.1} parent=1 // pred_check_branch
      %142 = sbr.rel (0) target = $region65
    $region64: #{vanilla_g_forward.1} parent=1 // pred_region
      %144 = dma.done [#allocation11], 128
    $region65: #{vanilla_g_forward.1} parent=1 // pred_fallthru
      _
    // Predicated region
    $region66: #{vanilla_g_forward.1} parent=1 // pred_check
      _
    $region67: #{vanilla_g_forward.1} parent=1 // pred_check_branch
      %146 = sbr.rel (0) target = $region69
    $region68: #{vanilla_g_forward.1} parent=1 // pred_region
      %148 = dma.done [#allocation14], 16384
    $region69: #{vanilla_g_forward.1} parent=1 // pred_fallthru
      _
    %v150 = vld [vmem:[#allocation2] sm:$0xff]
    %v151 = vpack.c.bf16 %v150, %v150
    %v152 = vld [vmem:[#allocation4] sm:$0xff]
    %v153 = vld [vmem:[#allocation4 + $0x8] sm:$0xff]
    %v154 = vld [vmem:[#allocation4 + $0x10] sm:$0xff]
    %v155 = vld [vmem:[#allocation4 + $0x18] sm:$0xff]
    %v156 = vld [vmem:[#allocation4 + $0x20] sm:$0xff]
    %v157 = vld [vmem:[#allocation4 + $0x28] sm:$0xff]
    %v158 = vld [vmem:[#allocation4 + $0x30] sm:$0xff]
    %v159 = vld [vmem:[#allocation4 + $0x38] sm:$0xff]
    %v160 = vld [vmem:[#allocation6] sm:$0x3]
    %v162 = vperm.slane %v160, 0
    %v163 = vperm.slane %v160, 1
    %v174 = vunpack.c.l.b16 %v152
    %v175 = vunpack.c.h.b16 %v152
    %v176 = vunpack.c.l.b16 %v153
    %v177 = vunpack.c.h.b16 %v153
    %v178 = vunpack.c.l.b16 %v154
    %v179 = vunpack.c.h.b16 %v154
    %v180 = vunpack.c.l.b16 %v155
    %v181 = vunpack.c.h.b16 %v155
    %v182 = vunpack.c.l.b16 %v156
    %v183 = vunpack.c.h.b16 %v156
    %v184 = vunpack.c.l.b16 %v157
    %v185 = vunpack.c.h.b16 %v157
    %v186 = vunpack.c.l.b16 %v158
    %v187 = vunpack.c.h.b16 %v158
    %v188 = vunpack.c.l.b16 %v159
    %v189 = vunpack.c.h.b16 %v159
    %v190 = vpack.c.b16 %v176, %v174
    %v191 = vpack.c.b16 %v177, %v175
    %v192 = vpack.c.b16 %v180, %v178
    %v193 = vpack.c.b16 %v181, %v179
    %v194 = vpack.c.b16 %v184, %v182
    %v195 = vpack.c.b16 %v185, %v183
    %v196 = vpack.c.b16 %v188, %v186
    %v197 = vpack.c.b16 %v189, %v187
    %vm206 = vcmask 523264
    %v208 = vsel %vm206, %v151, 0
    %210 = vmatpush.bf16.msra.mxu0 0
    %211 = vmatpush.bf16.msra.mxu0 0
    %212 = vmatpush.bf16.msra.mxu0 0
    %213 = vmatpush.bf16.msra.mxu0 0
    %214 = vmatpush.bf16.msra.mxu0 %v196
    %215 = vmatpush.bf16.msra.mxu0 %v194
    %216 = vmatpush.bf16.msra.mxu0 %v192
    %217 = vmatpush.bf16.msra.mxu0 %v190
    %218 = vmatmul.bf16.gmra.mxu0 %v208
    %v219 = vpop.f32.mrf.mxu0
    %v220 = vadd.f32 %v162, %v219
    %v221 = vpop.f32.mrf.mxu0
    %222 = vdwg.mxu0
    %223 = vmatpush.bf16.msra.mxu0 0
    %224 = vmatpush.bf16.msra.mxu0 0
    %225 = vmatpush.bf16.msra.mxu0 0
    %226 = vmatpush.bf16.msra.mxu0 0
    %227 = vmatpush.bf16.msra.mxu0 %v197
    %228 = vmatpush.bf16.msra.mxu0 %v195
    %229 = vmatpush.bf16.msra.mxu0 %v193
    %230 = vmatpush.bf16.msra.mxu0 %v191
    %231 = vmatmul.bf16.gmra.mxu0 %v208
    %v232 = vpop.f32.mrf.mxu0
    %v233 = vadd.f32 %v163, %v232
    %v234 = vpop.f32.mrf.mxu0
    %235 = vdwg.mxu0
    %v236 = vmax.f32 %v220, 0.0
    %v237 = vmax.f32 %v233, 0.0
    %v238 = vpack.c.bf16 %v236, %v236
    %v239 = vpack.c.bf16 %v237, %v237
    %v240 = vld [vmem:[#allocation7] sm:$0xff]
    %v241 = vld [vmem:[#allocation7 + $0x8] sm:$0xff]
    %v242 = vld [vmem:[#allocation7 + $0x10] sm:$0xff]
    %v243 = vld [vmem:[#allocation7 + $0x18] sm:$0xff]
    %v244 = vld [vmem:[#allocation7 + $0x20] sm:$0xff]
    %v245 = vld [vmem:[#allocation7 + $0x28] sm:$0xff]
    %v246 = vld [vmem:[#allocation7 + $0x30] sm:$0xff]
    %v247 = vld [vmem:[#allocation7 + $0x38] sm:$0xff]
    %v248 = vld [vmem:[#allocation7 + $0x40] sm:$0xff]
    %v249 = vld [vmem:[#allocation7 + $0x48] sm:$0xff]
    %v250 = vld [vmem:[#allocation7 + $0x50] sm:$0xff]
    %v251 = vld [vmem:[#allocation7 + $0x58] sm:$0xff]
    %v252 = vld [vmem:[#allocation7 + $0x60] sm:$0xff]
    %v253 = vld [vmem:[#allocation7 + $0x68] sm:$0xff]
    %v254 = vld [vmem:[#allocation7 + $0x70] sm:$0xff]
    %v255 = vld [vmem:[#allocation7 + $0x78] sm:$0xff]
    %v256 = vld [vmem:[#allocation7 + $0x80] sm:$0xff]
    %v257 = vld [vmem:[#allocation7 + $0x88] sm:$0xff]
    %v258 = vld [vmem:[#allocation7 + $0x90] sm:$0xff]
    %v259 = vld [vmem:[#allocation7 + $0x98] sm:$0xff]
    %v260 = vld [vmem:[#allocation7 + $0xa0] sm:$0xff]
    %v261 = vld [vmem:[#allocation7 + $0xa8] sm:$0xff]
    %v262 = vld [vmem:[#allocation7 + $0xb0] sm:$0xff]
    %v263 = vld [vmem:[#allocation7 + $0xb8] sm:$0xff]
    %v264 = vld [vmem:[#allocation7 + $0xc0] sm:$0xff]
    %v265 = vld [vmem:[#allocation7 + $0xc8] sm:$0xff]
    %v266 = vld [vmem:[#allocation7 + $0xd0] sm:$0xff]
    %v267 = vld [vmem:[#allocation7 + $0xd8] sm:$0xff]
    %v268 = vld [vmem:[#allocation7 + $0xe0] sm:$0xff]
    %v269 = vld [vmem:[#allocation7 + $0xe8] sm:$0xff]
    %v270 = vld [vmem:[#allocation7 + $0xf0] sm:$0xff]
    %v271 = vld [vmem:[#allocation7 + $0xf8] sm:$0xff]
    %v272 = vld [vmem:[#allocation7 + $0x100] sm:$0xff]
    %v273 = vld [vmem:[#allocation7 + $0x108] sm:$0xff]
    %v274 = vld [vmem:[#allocation7 + $0x110] sm:$0xff]
    %v275 = vld [vmem:[#allocation7 + $0x118] sm:$0xff]
    %v276 = vld [vmem:[#allocation7 + $0x120] sm:$0xff]
    %v277 = vld [vmem:[#allocation7 + $0x128] sm:$0xff]
    %v278 = vld [vmem:[#allocation7 + $0x130] sm:$0xff]
    %v279 = vld [vmem:[#allocation7 + $0x138] sm:$0xff]
    %v280 = vld [vmem:[#allocation7 + $0x140] sm:$0xff]
    %v281 = vld [vmem:[#allocation7 + $0x148] sm:$0xff]
    %v282 = vld [vmem:[#allocation7 + $0x150] sm:$0xff]
    %v283 = vld [vmem:[#allocation7 + $0x158] sm:$0xff]
    %v284 = vld [vmem:[#allocation7 + $0x160] sm:$0xff]
    %v285 = vld [vmem:[#allocation7 + $0x168] sm:$0xff]
    %v286 = vld [vmem:[#allocation7 + $0x170] sm:$0xff]
    %v287 = vld [vmem:[#allocation7 + $0x178] sm:$0xff]
    %v288 = vld [vmem:[#allocation7 + $0x180] sm:$0xff]
    %v289 = vld [vmem:[#allocation7 + $0x188] sm:$0xff]
    %v290 = vld [vmem:[#allocation7 + $0x190] sm:$0xff]
    %v291 = vld [vmem:[#allocation7 + $0x198] sm:$0xff]
    %v292 = vld [vmem:[#allocation7 + $0x1a0] sm:$0xff]
    %v293 = vld [vmem:[#allocation7 + $0x1a8] sm:$0xff]
    %v294 = vld [vmem:[#allocation7 + $0x1b0] sm:$0xff]
    %v295 = vld [vmem:[#allocation7 + $0x1b8] sm:$0xff]
    %v296 = vld [vmem:[#allocation7 + $0x1c0] sm:$0xff]
    %v297 = vld [vmem:[#allocation7 + $0x1c8] sm:$0xff]
    %v298 = vld [vmem:[#allocation7 + $0x1d0] sm:$0xff]
    %v299 = vld [vmem:[#allocation7 + $0x1d8] sm:$0xff]
    %v300 = vld [vmem:[#allocation7 + $0x1e0] sm:$0xff]
    %v301 = vld [vmem:[#allocation7 + $0x1e8] sm:$0xff]
    %v302 = vld [vmem:[#allocation7 + $0x1f0] sm:$0xff]
    %v303 = vld [vmem:[#allocation7 + $0x1f8] sm:$0xff]
    %v304 = vld [vmem:[#allocation9] sm:$0xf]
    %v306 = vperm.slane %v304, 0
    %v307 = vperm.slane %v304, 1
    %v308 = vperm.slane %v304, 2
    %v309 = vperm.slane %v304, 3
    %v378 = vunpack.c.l.b16 %v240
    %v379 = vunpack.c.h.b16 %v240
    %v380 = vunpack.c.l.b16 %v241
    %v381 = vunpack.c.h.b16 %v241
    %v382 = vunpack.c.l.b16 %v242
    %v383 = vunpack.c.h.b16 %v242
    %v384 = vunpack.c.l.b16 %v243
    %v385 = vunpack.c.h.b16 %v243
    %v386 = vunpack.c.l.b16 %v244
    %v387 = vunpack.c.h.b16 %v244
    %v388 = vunpack.c.l.b16 %v245
    %v389 = vunpack.c.h.b16 %v245
    %v390 = vunpack.c.l.b16 %v246
    %v391 = vunpack.c.h.b16 %v246
    %v392 = vunpack.c.l.b16 %v247
    %v393 = vunpack.c.h.b16 %v247
    %v394 = vunpack.c.l.b16 %v248
    %v395 = vunpack.c.h.b16 %v248
    %v396 = vunpack.c.l.b16 %v249
    %v397 = vunpack.c.h.b16 %v249
    %v398 = vunpack.c.l.b16 %v250
    %v399 = vunpack.c.h.b16 %v250
    %v400 = vunpack.c.l.b16 %v251
    %v401 = vunpack.c.h.b16 %v251
    %v402 = vunpack.c.l.b16 %v252
    %v403 = vunpack.c.h.b16 %v252
    %v404 = vunpack.c.l.b16 %v253
    %v405 = vunpack.c.h.b16 %v253
    %v406 = vunpack.c.l.b16 %v254
    %v407 = vunpack.c.h.b16 %v254
    %v408 = vunpack.c.l.b16 %v255
    %v409 = vunpack.c.h.b16 %v255
    %v410 = vunpack.c.l.b16 %v256
    %v411 = vunpack.c.h.b16 %v256
    %v412 = vunpack.c.l.b16 %v257
    %v413 = vunpack.c.h.b16 %v257
    %v414 = vunpack.c.l.b16 %v258
    %v415 = vunpack.c.h.b16 %v258
    %v416 = vunpack.c.l.b16 %v259
    %v417 = vunpack.c.h.b16 %v259
    %v418 = vunpack.c.l.b16 %v260
    %v419 = vunpack.c.h.b16 %v260
    %v420 = vunpack.c.l.b16 %v261
    %v421 = vunpack.c.h.b16 %v261
    %v422 = vunpack.c.l.b16 %v262
    %v423 = vunpack.c.h.b16 %v262
    %v424 = vunpack.c.l.b16 %v263
    %v425 = vunpack.c.h.b16 %v263
    %v426 = vunpack.c.l.b16 %v264
    %v427 = vunpack.c.h.b16 %v264
    %v428 = vunpack.c.l.b16 %v265
    %v429 = vunpack.c.h.b16 %v265
    %v430 = vunpack.c.l.b16 %v266
    %v431 = vunpack.c.h.b16 %v266
    %v432 = vunpack.c.l.b16 %v267
    %v433 = vunpack.c.h.b16 %v267
    %v434 = vunpack.c.l.b16 %v268
    %v435 = vunpack.c.h.b16 %v268
    %v436 = vunpack.c.l.b16 %v269
    %v437 = vunpack.c.h.b16 %v269
    %v438 = vunpack.c.l.b16 %v270
    %v439 = vunpack.c.h.b16 %v270
    %v440 = vunpack.c.l.b16 %v271
    %v441 = vunpack.c.h.b16 %v271
    %v442 = vunpack.c.l.b16 %v272
    %v443 = vunpack.c.h.b16 %v272
    %v444 = vunpack.c.l.b16 %v273
    %v445 = vunpack.c.h.b16 %v273
    %v446 = vunpack.c.l.b16 %v274
    %v447 = vunpack.c.h.b16 %v274
    %v448 = vunpack.c.l.b16 %v275
    %v449 = vunpack.c.h.b16 %v275
    %v450 = vunpack.c.l.b16 %v276
    %v451 = vunpack.c.h.b16 %v276
    %v452 = vunpack.c.l.b16 %v277
    %v453 = vunpack.c.h.b16 %v277
    %v454 = vunpack.c.l.b16 %v278
    %v455 = vunpack.c.h.b16 %v278
    %v456 = vunpack.c.l.b16 %v279
    %v457 = vunpack.c.h.b16 %v279
    %v458 = vunpack.c.l.b16 %v280
    %v459 = vunpack.c.h.b16 %v280
    %v460 = vunpack.c.l.b16 %v281
    %v461 = vunpack.c.h.b16 %v281
    %v462 = vunpack.c.l.b16 %v282
    %v463 = vunpack.c.h.b16 %v282
    %v464 = vunpack.c.l.b16 %v283
    %v465 = vunpack.c.h.b16 %v283
    %v466 = vunpack.c.l.b16 %v284
    %v467 = vunpack.c.h.b16 %v284
    %v468 = vunpack.c.l.b16 %v285
    %v469 = vunpack.c.h.b16 %v285
    %v470 = vunpack.c.l.b16 %v286
    %v471 = vunpack.c.h.b16 %v286
    %v472 = vunpack.c.l.b16 %v287
    %v473 = vunpack.c.h.b16 %v287
    %v474 = vunpack.c.l.b16 %v288
    %v475 = vunpack.c.h.b16 %v288
    %v476 = vunpack.c.l.b16 %v289
    %v477 = vunpack.c.h.b16 %v289
    %v478 = vunpack.c.l.b16 %v290
    %v479 = vunpack.c.h.b16 %v290
    %v480 = vunpack.c.l.b16 %v291
    %v481 = vunpack.c.h.b16 %v291
    %v482 = vunpack.c.l.b16 %v292
    %v483 = vunpack.c.h.b16 %v292
    %v484 = vunpack.c.l.b16 %v293
    %v485 = vunpack.c.h.b16 %v293
    %v486 = vunpack.c.l.b16 %v294
    %v487 = vunpack.c.h.b16 %v294
    %v488 = vunpack.c.l.b16 %v295
    %v489 = vunpack.c.h.b16 %v295
    %v490 = vunpack.c.l.b16 %v296
    %v491 = vunpack.c.h.b16 %v296
    %v492 = vunpack.c.l.b16 %v297
    %v493 = vunpack.c.h.b16 %v297
    %v494 = vunpack.c.l.b16 %v298
    %v495 = vunpack.c.h.b16 %v298
    %v496 = vunpack.c.l.b16 %v299
    %v497 = vunpack.c.h.b16 %v299
    %v498 = vunpack.c.l.b16 %v300
    %v499 = vunpack.c.h.b16 %v300
    %v500 = vunpack.c.l.b16 %v301
    %v501 = vunpack.c.h.b16 %v301
    %v502 = vunpack.c.l.b16 %v302
    %v503 = vunpack.c.h.b16 %v302
    %v504 = vunpack.c.l.b16 %v303
    %v505 = vunpack.c.h.b16 %v303
    %v506 = vpack.c.b16 %v382, %v378
    %v507 = vpack.c.b16 %v383, %v379
    %v508 = vpack.c.b16 %v384, %v380
    %v509 = vpack.c.b16 %v385, %v381
    %v510 = vpack.c.b16 %v390, %v386
    %v511 = vpack.c.b16 %v391, %v387
    %v512 = vpack.c.b16 %v392, %v388
    %v513 = vpack.c.b16 %v393, %v389
    %v514 = vpack.c.b16 %v398, %v394
    %v515 = vpack.c.b16 %v399, %v395
    %v516 = vpack.c.b16 %v400, %v396
    %v517 = vpack.c.b16 %v401, %v397
    %v518 = vpack.c.b16 %v406, %v402
    %v519 = vpack.c.b16 %v407, %v403
    %v520 = vpack.c.b16 %v408, %v404
    %v521 = vpack.c.b16 %v409, %v405
    %v522 = vpack.c.b16 %v414, %v410
    %v523 = vpack.c.b16 %v415, %v411
    %v524 = vpack.c.b16 %v416, %v412
    %v525 = vpack.c.b16 %v417, %v413
    %v526 = vpack.c.b16 %v422, %v418
    %v527 = vpack.c.b16 %v423, %v419
    %v528 = vpack.c.b16 %v424, %v420
    %v529 = vpack.c.b16 %v425, %v421
    %v530 = vpack.c.b16 %v430, %v426
    %v531 = vpack.c.b16 %v431, %v427
    %v532 = vpack.c.b16 %v432, %v428
    %v533 = vpack.c.b16 %v433, %v429
    %v534 = vpack.c.b16 %v438, %v434
    %v535 = vpack.c.b16 %v439, %v435
    %v536 = vpack.c.b16 %v440, %v436
    %v537 = vpack.c.b16 %v441, %v437
    %v538 = vpack.c.b16 %v446, %v442
    %v539 = vpack.c.b16 %v447, %v443
    %v540 = vpack.c.b16 %v448, %v444
    %v541 = vpack.c.b16 %v449, %v445
    %v542 = vpack.c.b16 %v454, %v450
    %v543 = vpack.c.b16 %v455, %v451
    %v544 = vpack.c.b16 %v456, %v452
    %v545 = vpack.c.b16 %v457, %v453
    %v546 = vpack.c.b16 %v462, %v458
    %v547 = vpack.c.b16 %v463, %v459
    %v548 = vpack.c.b16 %v464, %v460
    %v549 = vpack.c.b16 %v465, %v461
    %v550 = vpack.c.b16 %v470, %v466
    %v551 = vpack.c.b16 %v471, %v467
    %v552 = vpack.c.b16 %v472, %v468
    %v553 = vpack.c.b16 %v473, %v469
    %v554 = vpack.c.b16 %v478, %v474
    %v555 = vpack.c.b16 %v479, %v475
    %v556 = vpack.c.b16 %v480, %v476
    %v557 = vpack.c.b16 %v481, %v477
    %v558 = vpack.c.b16 %v486, %v482
    %v559 = vpack.c.b16 %v487, %v483
    %v560 = vpack.c.b16 %v488, %v484
    %v561 = vpack.c.b16 %v489, %v485
    %v562 = vpack.c.b16 %v494, %v490
    %v563 = vpack.c.b16 %v495, %v491
    %v564 = vpack.c.b16 %v496, %v492
    %v565 = vpack.c.b16 %v497, %v493
    %v566 = vpack.c.b16 %v502, %v498
    %v567 = vpack.c.b16 %v503, %v499
    %v568 = vpack.c.b16 %v504, %v500
    %v569 = vpack.c.b16 %v505, %v501
    %634 = vmatpush.bf16.msra.mxu0 %v534
    %635 = vmatpush.bf16.msra.mxu0 %v530
    %636 = vmatpush.bf16.msra.mxu0 %v526
    %637 = vmatpush.bf16.msra.mxu0 %v522
    %638 = vmatpush.bf16.msra.mxu0 %v518
    %639 = vmatpush.bf16.msra.mxu0 %v514
    %640 = vmatpush.bf16.msra.mxu0 %v510
    %641 = vmatpush.bf16.msra.mxu0 %v506
    %642 = vmatmul.bf16.gmra.mxu0 %v238
    %v643 = vpop.f32.mrf.mxu0
    %v644 = vadd.f32 %v306, %v643
    %v645 = vpop.f32.mrf.mxu0
    %646 = vdwg.mxu0
    %647 = vmatpush.bf16.msra.mxu0 %v566
    %648 = vmatpush.bf16.msra.mxu0 %v562
    %649 = vmatpush.bf16.msra.mxu0 %v558
    %650 = vmatpush.bf16.msra.mxu0 %v554
    %651 = vmatpush.bf16.msra.mxu0 %v550
    %652 = vmatpush.bf16.msra.mxu0 %v546
    %653 = vmatpush.bf16.msra.mxu0 %v542
    %654 = vmatpush.bf16.msra.mxu0 %v538
    %655 = vmatmul.bf16.gmra.mxu0 %v239
    %v656 = vpop.f32.mrf.mxu0
    %v657 = vadd.f32 %v644, %v656
    %v658 = vpop.f32.mrf.mxu0
    %659 = vdwg.mxu0
    %660 = vmatpush.bf16.msra.mxu0 %v535
    %661 = vmatpush.bf16.msra.mxu0 %v531
    %662 = vmatpush.bf16.msra.mxu0 %v527
    %663 = vmatpush.bf16.msra.mxu0 %v523
    %664 = vmatpush.bf16.msra.mxu0 %v519
    %665 = vmatpush.bf16.msra.mxu0 %v515
    %666 = vmatpush.bf16.msra.mxu0 %v511
    %667 = vmatpush.bf16.msra.mxu0 %v507
    %668 = vmatmul.bf16.gmra.mxu0 %v238
    %v669 = vpop.f32.mrf.mxu0
    %v670 = vadd.f32 %v307, %v669
    %v671 = vpop.f32.mrf.mxu0
    %672 = vdwg.mxu0
    %673 = vmatpush.bf16.msra.mxu0 %v567
    %674 = vmatpush.bf16.msra.mxu0 %v563
    %675 = vmatpush.bf16.msra.mxu0 %v559
    %676 = vmatpush.bf16.msra.mxu0 %v555
    %677 = vmatpush.bf16.msra.mxu0 %v551
    %678 = vmatpush.bf16.msra.mxu0 %v547
    %679 = vmatpush.bf16.msra.mxu0 %v543
    %680 = vmatpush.bf16.msra.mxu0 %v539
    %681 = vmatmul.bf16.gmra.mxu0 %v239
    %v682 = vpop.f32.mrf.mxu0
    %v683 = vadd.f32 %v670, %v682
    %v684 = vpop.f32.mrf.mxu0
    %685 = vdwg.mxu0
    %686 = vmatpush.bf16.msra.mxu0 %v536
    %687 = vmatpush.bf16.msra.mxu0 %v532
    %688 = vmatpush.bf16.msra.mxu0 %v528
    %689 = vmatpush.bf16.msra.mxu0 %v524
    %690 = vmatpush.bf16.msra.mxu0 %v520
    %691 = vmatpush.bf16.msra.mxu0 %v516
    %692 = vmatpush.bf16.msra.mxu0 %v512
    %693 = vmatpush.bf16.msra.mxu0 %v508
    %694 = vmatmul.bf16.gmra.mxu0 %v238
    %v695 = vpop.f32.mrf.mxu0
    %v696 = vadd.f32 %v308, %v695
    %v697 = vpop.f32.mrf.mxu0
    %698 = vdwg.mxu0
    %699 = vmatpush.bf16.msra.mxu0 %v568
    %700 = vmatpush.bf16.msra.mxu0 %v564
    %701 = vmatpush.bf16.msra.mxu0 %v560
    %702 = vmatpush.bf16.msra.mxu0 %v556
    %703 = vmatpush.bf16.msra.mxu0 %v552
    %704 = vmatpush.bf16.msra.mxu0 %v548
    %705 = vmatpush.bf16.msra.mxu0 %v544
    %706 = vmatpush.bf16.msra.mxu0 %v540
    %707 = vmatmul.bf16.gmra.mxu0 %v239
    %v708 = vpop.f32.mrf.mxu0
    %v709 = vadd.f32 %v696, %v708
    %v710 = vpop.f32.mrf.mxu0
    %711 = vdwg.mxu0
    %712 = vmatpush.bf16.msra.mxu0 %v537
    %713 = vmatpush.bf16.msra.mxu0 %v533
    %714 = vmatpush.bf16.msra.mxu0 %v529
    %715 = vmatpush.bf16.msra.mxu0 %v525
    %716 = vmatpush.bf16.msra.mxu0 %v521
    %717 = vmatpush.bf16.msra.mxu0 %v517
    %718 = vmatpush.bf16.msra.mxu0 %v513
    %719 = vmatpush.bf16.msra.mxu0 %v509
    %720 = vmatmul.bf16.gmra.mxu0 %v238
    %v721 = vpop.f32.mrf.mxu0
    %v722 = vadd.f32 %v309, %v721
    %v723 = vpop.f32.mrf.mxu0
    %724 = vdwg.mxu0
    %725 = vmatpush.bf16.msra.mxu0 %v569
    %726 = vmatpush.bf16.msra.mxu0 %v565
    %727 = vmatpush.bf16.msra.mxu0 %v561
    %728 = vmatpush.bf16.msra.mxu0 %v557
    %729 = vmatpush.bf16.msra.mxu0 %v553
    %730 = vmatpush.bf16.msra.mxu0 %v549
    %731 = vmatpush.bf16.msra.mxu0 %v545
    %732 = vmatpush.bf16.msra.mxu0 %v541
    %733 = vmatmul.bf16.gmra.mxu0 %v239
    %v734 = vpop.f32.mrf.mxu0
    %v735 = vadd.f32 %v722, %v734
    %v736 = vpop.f32.mrf.mxu0
    %737 = vdwg.mxu0
    %v738 = vmax.f32 %v657, 0.0
    %v739 = vmax.f32 %v683, 0.0
    %v740 = vmax.f32 %v709, 0.0
    %v741 = vmax.f32 %v735, 0.0
    %v742 = vpack.c.bf16 %v738, %v738
    %v743 = vpack.c.bf16 %v739, %v739
    %v744 = vpack.c.bf16 %v740, %v740
    %v745 = vpack.c.bf16 %v741, %v741
    %v746 = vld [vmem:[#allocation10] sm:$0xff]
    %v747 = vld [vmem:[#allocation10 + $0x8] sm:$0xff]
    %v748 = vld [vmem:[#allocation10 + $0x10] sm:$0xff]
    %v749 = vld [vmem:[#allocation10 + $0x18] sm:$0xff]
    %v750 = vld [vmem:[#allocation10 + $0x20] sm:$0xff]
    %v751 = vld [vmem:[#allocation10 + $0x28] sm:$0xff]
    %v752 = vld [vmem:[#allocation10 + $0x30] sm:$0xff]
    %v753 = vld [vmem:[#allocation10 + $0x38] sm:$0xff]
    %v754 = vld [vmem:[#allocation10 + $0x40] sm:$0xff]
    %v755 = vld [vmem:[#allocation10 + $0x48] sm:$0xff]
    %v756 = vld [vmem:[#allocation10 + $0x50] sm:$0xff]
    %v757 = vld [vmem:[#allocation10 + $0x58] sm:$0xff]
    %v758 = vld [vmem:[#allocation10 + $0x60] sm:$0xff]
    %v759 = vld [vmem:[#allocation10 + $0x68] sm:$0xff]
    %v760 = vld [vmem:[#allocation10 + $0x70] sm:$0xff]
    %v761 = vld [vmem:[#allocation10 + $0x78] sm:$0xff]
    %v762 = vld [vmem:[#allocation10 + $0x80] sm:$0xff]
    %v763 = vld [vmem:[#allocation10 + $0x88] sm:$0xff]
    %v764 = vld [vmem:[#allocation10 + $0x90] sm:$0xff]
    %v765 = vld [vmem:[#allocation10 + $0x98] sm:$0xff]
    %v766 = vld [vmem:[#allocation10 + $0xa0] sm:$0xff]
    %v767 = vld [vmem:[#allocation10 + $0xa8] sm:$0xff]
    %v768 = vld [vmem:[#allocation10 + $0xb0] sm:$0xff]
    %v769 = vld [vmem:[#allocation10 + $0xb8] sm:$0xff]
    %v770 = vld [vmem:[#allocation10 + $0xc0] sm:$0xff]
    %v771 = vld [vmem:[#allocation10 + $0xc8] sm:$0xff]
    %v772 = vld [vmem:[#allocation10 + $0xd0] sm:$0xff]
    %v773 = vld [vmem:[#allocation10 + $0xd8] sm:$0xff]
    %v774 = vld [vmem:[#allocation10 + $0xe0] sm:$0xff]
    %v775 = vld [vmem:[#allocation10 + $0xe8] sm:$0xff]
    %v776 = vld [vmem:[#allocation10 + $0xf0] sm:$0xff]
    %v777 = vld [vmem:[#allocation10 + $0xf8] sm:$0xff]
    %v778 = vld [vmem:[#allocation10 + $0x100] sm:$0xff]
    %v779 = vld [vmem:[#allocation10 + $0x108] sm:$0xff]
    %v780 = vld [vmem:[#allocation10 + $0x110] sm:$0xff]
    %v781 = vld [vmem:[#allocation10 + $0x118] sm:$0xff]
    %v782 = vld [vmem:[#allocation10 + $0x120] sm:$0xff]
    %v783 = vld [vmem:[#allocation10 + $0x128] sm:$0xff]
    %v784 = vld [vmem:[#allocation10 + $0x130] sm:$0xff]
    %v785 = vld [vmem:[#allocation10 + $0x138] sm:$0xff]
    %v786 = vld [vmem:[#allocation10 + $0x140] sm:$0xff]
    %v787 = vld [vmem:[#allocation10 + $0x148] sm:$0xff]
    %v788 = vld [vmem:[#allocation10 + $0x150] sm:$0xff]
    %v789 = vld [vmem:[#allocation10 + $0x158] sm:$0xff]
    %v790 = vld [vmem:[#allocation10 + $0x160] sm:$0xff]
    %v791 = vld [vmem:[#allocation10 + $0x168] sm:$0xff]
    %v792 = vld [vmem:[#allocation10 + $0x170] sm:$0xff]
    %v793 = vld [vmem:[#allocation10 + $0x178] sm:$0xff]
    %v794 = vld [vmem:[#allocation10 + $0x180] sm:$0xff]
    %v795 = vld [vmem:[#allocation10 + $0x188] sm:$0xff]
    %v796 = vld [vmem:[#allocation10 + $0x190] sm:$0xff]
    %v797 = vld [vmem:[#allocation10 + $0x198] sm:$0xff]
    %v798 = vld [vmem:[#allocation10 + $0x1a0] sm:$0xff]
    %v799 = vld [vmem:[#allocation10 + $0x1a8] sm:$0xff]
    %v800 = vld [vmem:[#allocation10 + $0x1b0] sm:$0xff]
    %v801 = vld [vmem:[#allocation10 + $0x1b8] sm:$0xff]
    %v802 = vld [vmem:[#allocation10 + $0x1c0] sm:$0xff]
    %v803 = vld [vmem:[#allocation10 + $0x1c8] sm:$0xff]
    %v804 = vld [vmem:[#allocation10 + $0x1d0] sm:$0xff]
    %v805 = vld [vmem:[#allocation10 + $0x1d8] sm:$0xff]
    %v806 = vld [vmem:[#allocation10 + $0x1e0] sm:$0xff]
    %v807 = vld [vmem:[#allocation10 + $0x1e8] sm:$0xff]
    %v808 = vld [vmem:[#allocation10 + $0x1f0] sm:$0xff]
    %v809 = vld [vmem:[#allocation10 + $0x1f8] sm:$0xff]
    %v810 = vld [vmem:[#allocation10 + $0x200] sm:$0xff]
    %v811 = vld [vmem:[#allocation10 + $0x208] sm:$0xff]
    %v812 = vld [vmem:[#allocation10 + $0x210] sm:$0xff]
    %v813 = vld [vmem:[#allocation10 + $0x218] sm:$0xff]
    %v814 = vld [vmem:[#allocation10 + $0x220] sm:$0xff]
    %v815 = vld [vmem:[#allocation10 + $0x228] sm:$0xff]
    %v816 = vld [vmem:[#allocation10 + $0x230] sm:$0xff]
    %v817 = vld [vmem:[#allocation10 + $0x238] sm:$0xff]
    %v818 = vld [vmem:[#allocation10 + $0x240] sm:$0xff]
    %v819 = vld [vmem:[#allocation10 + $0x248] sm:$0xff]
    %v820 = vld [vmem:[#allocation10 + $0x250] sm:$0xff]
    %v821 = vld [vmem:[#allocation10 + $0x258] sm:$0xff]
    %v822 = vld [vmem:[#allocation10 + $0x260] sm:$0xff]
    %v823 = vld [vmem:[#allocation10 + $0x268] sm:$0xff]
    %v824 = vld [vmem:[#allocation10 + $0x270] sm:$0xff]
    %v825 = vld [vmem:[#allocation10 + $0x278] sm:$0xff]
    %v826 = vld [vmem:[#allocation10 + $0x280] sm:$0xff]
    %v827 = vld [vmem:[#allocation10 + $0x288] sm:$0xff]
    %v828 = vld [vmem:[#allocation10 + $0x290] sm:$0xff]
    %v829 = vld [vmem:[#allocation10 + $0x298] sm:$0xff]
    %v830 = vld [vmem:[#allocation10 + $0x2a0] sm:$0xff]
    %v831 = vld [vmem:[#allocation10 + $0x2a8] sm:$0xff]
    %v832 = vld [vmem:[#allocation10 + $0x2b0] sm:$0xff]
    %v833 = vld [vmem:[#allocation10 + $0x2b8] sm:$0xff]
    %v834 = vld [vmem:[#allocation10 + $0x2c0] sm:$0xff]
    %v835 = vld [vmem:[#allocation10 + $0x2c8] sm:$0xff]
    %v836 = vld [vmem:[#allocation10 + $0x2d0] sm:$0xff]
    %v837 = vld [vmem:[#allocation10 + $0x2d8] sm:$0xff]
    %v838 = vld [vmem:[#allocation10 + $0x2e0] sm:$0xff]
    %v839 = vld [vmem:[#allocation10 + $0x2e8] sm:$0xff]
    %v840 = vld [vmem:[#allocation10 + $0x2f0] sm:$0xff]
    %v841 = vld [vmem:[#allocation10 + $0x2f8] sm:$0xff]
    %v842 = vld [vmem:[#allocation10 + $0x300] sm:$0xff]
    %v843 = vld [vmem:[#allocation10 + $0x308] sm:$0xff]
    %v844 = vld [vmem:[#allocation10 + $0x310] sm:$0xff]
    %v845 = vld [vmem:[#allocation10 + $0x318] sm:$0xff]
    %v846 = vld [vmem:[#allocation10 + $0x320] sm:$0xff]
    %v847 = vld [vmem:[#allocation10 + $0x328] sm:$0xff]
    %v848 = vld [vmem:[#allocation10 + $0x330] sm:$0xff]
    %v849 = vld [vmem:[#allocation10 + $0x338] sm:$0xff]
    %v850 = vld [vmem:[#allocation10 + $0x340] sm:$0xff]
    %v851 = vld [vmem:[#allocation10 + $0x348] sm:$0xff]
    %v852 = vld [vmem:[#allocation10 + $0x350] sm:$0xff]
    %v853 = vld [vmem:[#allocation10 + $0x358] sm:$0xff]
    %v854 = vld [vmem:[#allocation10 + $0x360] sm:$0xff]
    %v855 = vld [vmem:[#allocation10 + $0x368] sm:$0xff]
    %v856 = vld [vmem:[#allocation10 + $0x370] sm:$0xff]
    %v857 = vld [vmem:[#allocation10 + $0x378] sm:$0xff]
    %v858 = vld [vmem:[#allocation10 + $0x380] sm:$0xff]
    %v859 = vld [vmem:[#allocation10 + $0x388] sm:$0xff]
    %v860 = vld [vmem:[#allocation10 + $0x390] sm:$0xff]
    %v861 = vld [vmem:[#allocation10 + $0x398] sm:$0xff]
    %v862 = vld [vmem:[#allocation10 + $0x3a0] sm:$0xff]
    %v863 = vld [vmem:[#allocation10 + $0x3a8] sm:$0xff]
    %v864 = vld [vmem:[#allocation10 + $0x3b0] sm:$0xff]
    %v865 = vld [vmem:[#allocation10 + $0x3b8] sm:$0xff]
    %v866 = vld [vmem:[#allocation10 + $0x3c0] sm:$0xff]
    %v867 = vld [vmem:[#allocation10 + $0x3c8] sm:$0xff]
    %v868 = vld [vmem:[#allocation10 + $0x3d0] sm:$0xff]
    %v869 = vld [vmem:[#allocation10 + $0x3d8] sm:$0xff]
    %v870 = vld [vmem:[#allocation10 + $0x3e0] sm:$0xff]
    %v871 = vld [vmem:[#allocation10 + $0x3e8] sm:$0xff]
    %v872 = vld [vmem:[#allocation10 + $0x3f0] sm:$0xff]
    %v873 = vld [vmem:[#allocation10 + $0x3f8] sm:$0xff]
    %v874 = vld [vmem:[#allocation10 + $0x400] sm:$0xff]
    %v875 = vld [vmem:[#allocation10 + $0x408] sm:$0xff]
    %v876 = vld [vmem:[#allocation10 + $0x410] sm:$0xff]
    %v877 = vld [vmem:[#allocation10 + $0x418] sm:$0xff]
    %v878 = vld [vmem:[#allocation10 + $0x420] sm:$0xff]
    %v879 = vld [vmem:[#allocation10 + $0x428] sm:$0xff]
    %v880 = vld [vmem:[#allocation10 + $0x430] sm:$0xff]
    %v881 = vld [vmem:[#allocation10 + $0x438] sm:$0xff]
    %v882 = vld [vmem:[#allocation10 + $0x440] sm:$0xff]
    %v883 = vld [vmem:[#allocation10 + $0x448] sm:$0xff]
    %v884 = vld [vmem:[#allocation10 + $0x450] sm:$0xff]
    %v885 = vld [vmem:[#allocation10 + $0x458] sm:$0xff]
    %v886 = vld [vmem:[#allocation10 + $0x460] sm:$0xff]
    %v887 = vld [vmem:[#allocation10 + $0x468] sm:$0xff]
    %v888 = vld [vmem:[#allocation10 + $0x470] sm:$0xff]
    %v889 = vld [vmem:[#allocation10 + $0x478] sm:$0xff]
    %v890 = vld [vmem:[#allocation10 + $0x480] sm:$0xff]
    %v891 = vld [vmem:[#allocation10 + $0x488] sm:$0xff]
    %v892 = vld [vmem:[#allocation10 + $0x490] sm:$0xff]
    %v893 = vld [vmem:[#allocation10 + $0x498] sm:$0xff]
    %v894 = vld [vmem:[#allocation10 + $0x4a0] sm:$0xff]
    %v895 = vld [vmem:[#allocation10 + $0x4a8] sm:$0xff]
    %v896 = vld [vmem:[#allocation10 + $0x4b0] sm:$0xff]
    %v897 = vld [vmem:[#allocation10 + $0x4b8] sm:$0xff]
    %v898 = vld [vmem:[#allocation10 + $0x4c0] sm:$0xff]
    %v899 = vld [vmem:[#allocation10 + $0x4c8] sm:$0xff]
    %v900 = vld [vmem:[#allocation10 + $0x4d0] sm:$0xff]
    %v901 = vld [vmem:[#allocation10 + $0x4d8] sm:$0xff]
    %v902 = vld [vmem:[#allocation10 + $0x4e0] sm:$0xff]
    %v903 = vld [vmem:[#allocation10 + $0x4e8] sm:$0xff]
    %v904 = vld [vmem:[#allocation10 + $0x4f0] sm:$0xff]
    %v905 = vld [vmem:[#allocation10 + $0x4f8] sm:$0xff]
    %v906 = vld [vmem:[#allocation10 + $0x500] sm:$0xff]
    %v907 = vld [vmem:[#allocation10 + $0x508] sm:$0xff]
    %v908 = vld [vmem:[#allocation10 + $0x510] sm:$0xff]
    %v909 = vld [vmem:[#allocation10 + $0x518] sm:$0xff]
    %v910 = vld [vmem:[#allocation10 + $0x520] sm:$0xff]
    %v911 = vld [vmem:[#allocation10 + $0x528] sm:$0xff]
    %v912 = vld [vmem:[#allocation10 + $0x530] sm:$0xff]
    %v913 = vld [vmem:[#allocation10 + $0x538] sm:$0xff]
    %v914 = vld [vmem:[#allocation10 + $0x540] sm:$0xff]
    %v915 = vld [vmem:[#allocation10 + $0x548] sm:$0xff]
    %v916 = vld [vmem:[#allocation10 + $0x550] sm:$0xff]
    %v917 = vld [vmem:[#allocation10 + $0x558] sm:$0xff]
    %v918 = vld [vmem:[#allocation10 + $0x560] sm:$0xff]
    %v919 = vld [vmem:[#allocation10 + $0x568] sm:$0xff]
    %v920 = vld [vmem:[#allocation10 + $0x570] sm:$0xff]
    %v921 = vld [vmem:[#allocation10 + $0x578] sm:$0xff]
    %v922 = vld [vmem:[#allocation10 + $0x580] sm:$0xff]
    %v923 = vld [vmem:[#allocation10 + $0x588] sm:$0xff]
    %v924 = vld [vmem:[#allocation10 + $0x590] sm:$0xff]
    %v925 = vld [vmem:[#allocation10 + $0x598] sm:$0xff]
    %v926 = vld [vmem:[#allocation10 + $0x5a0] sm:$0xff]
    %v927 = vld [vmem:[#allocation10 + $0x5a8] sm:$0xff]
    %v928 = vld [vmem:[#allocation10 + $0x5b0] sm:$0xff]
    %v929 = vld [vmem:[#allocation10 + $0x5b8] sm:$0xff]
    %v930 = vld [vmem:[#allocation10 + $0x5c0] sm:$0xff]
    %v931 = vld [vmem:[#allocation10 + $0x5c8] sm:$0xff]
    %v932 = vld [vmem:[#allocation10 + $0x5d0] sm:$0xff]
    %v933 = vld [vmem:[#allocation10 + $0x5d8] sm:$0xff]
    %v934 = vld [vmem:[#allocation10 + $0x5e0] sm:$0xff]
    %v935 = vld [vmem:[#allocation10 + $0x5e8] sm:$0xff]
    %v936 = vld [vmem:[#allocation10 + $0x5f0] sm:$0xff]
    %v937 = vld [vmem:[#allocation10 + $0x5f8] sm:$0xff]
    %v938 = vld [vmem:[#allocation10 + $0x600] sm:$0xff]
    %v939 = vld [vmem:[#allocation10 + $0x608] sm:$0xff]
    %v940 = vld [vmem:[#allocation10 + $0x610] sm:$0xff]
    %v941 = vld [vmem:[#allocation10 + $0x618] sm:$0xff]
    %v942 = vld [vmem:[#allocation10 + $0x620] sm:$0xff]
    %v943 = vld [vmem:[#allocation10 + $0x628] sm:$0xff]
    %v944 = vld [vmem:[#allocation10 + $0x630] sm:$0xff]
    %v945 = vld [vmem:[#allocation10 + $0x638] sm:$0xff]
    %v946 = vld [vmem:[#allocation10 + $0x640] sm:$0xff]
    %v947 = vld [vmem:[#allocation10 + $0x648] sm:$0xff]
    %v948 = vld [vmem:[#allocation10 + $0x650] sm:$0xff]
    %v949 = vld [vmem:[#allocation10 + $0x658] sm:$0xff]
    %v950 = vld [vmem:[#allocation10 + $0x660] sm:$0xff]
    %v951 = vld [vmem:[#allocation10 + $0x668] sm:$0xff]
    %v952 = vld [vmem:[#allocation10 + $0x670] sm:$0xff]
    %v953 = vld [vmem:[#allocation10 + $0x678] sm:$0xff]
    %v954 = vld [vmem:[#allocation10 + $0x680] sm:$0xff]
    %v955 = vld [vmem:[#allocation10 + $0x688] sm:$0xff]
    %v956 = vld [vmem:[#allocation10 + $0x690] sm:$0xff]
    %v957 = vld [vmem:[#allocation10 + $0x698] sm:$0xff]
    %v958 = vld [vmem:[#allocation10 + $0x6a0] sm:$0xff]
    %v959 = vld [vmem:[#allocation10 + $0x6a8] sm:$0xff]
    %v960 = vld [vmem:[#allocation10 + $0x6b0] sm:$0xff]
    %v961 = vld [vmem:[#allocation10 + $0x6b8] sm:$0xff]
    %v962 = vld [vmem:[#allocation10 + $0x6c0] sm:$0xff]
    %v963 = vld [vmem:[#allocation10 + $0x6c8] sm:$0xff]
    %v964 = vld [vmem:[#allocation10 + $0x6d0] sm:$0xff]
    %v965 = vld [vmem:[#allocation10 + $0x6d8] sm:$0xff]
    %v966 = vld [vmem:[#allocation10 + $0x6e0] sm:$0xff]
    %v967 = vld [vmem:[#allocation10 + $0x6e8] sm:$0xff]
    %v968 = vld [vmem:[#allocation10 + $0x6f0] sm:$0xff]
    %v969 = vld [vmem:[#allocation10 + $0x6f8] sm:$0xff]
    %v970 = vld [vmem:[#allocation10 + $0x700] sm:$0xff]
    %v971 = vld [vmem:[#allocation10 + $0x708] sm:$0xff]
    %v972 = vld [vmem:[#allocation10 + $0x710] sm:$0xff]
    %v973 = vld [vmem:[#allocation10 + $0x718] sm:$0xff]
    %v974 = vld [vmem:[#allocation10 + $0x720] sm:$0xff]
    %v975 = vld [vmem:[#allocation10 + $0x728] sm:$0xff]
    %v976 = vld [vmem:[#allocation10 + $0x730] sm:$0xff]
    %v977 = vld [vmem:[#allocation10 + $0x738] sm:$0xff]
    %v978 = vld [vmem:[#allocation10 + $0x740] sm:$0xff]
    %v979 = vld [vmem:[#allocation10 + $0x748] sm:$0xff]
    %v980 = vld [vmem:[#allocation10 + $0x750] sm:$0xff]
    %v981 = vld [vmem:[#allocation10 + $0x758] sm:$0xff]
    %v982 = vld [vmem:[#allocation10 + $0x760] sm:$0xff]
    %v983 = vld [vmem:[#allocation10 + $0x768] sm:$0xff]
    %v984 = vld [vmem:[#allocation10 + $0x770] sm:$0xff]
    %v985 = vld [vmem:[#allocation10 + $0x778] sm:$0xff]
    %v986 = vld [vmem:[#allocation10 + $0x780] sm:$0xff]
    %v987 = vld [vmem:[#allocation10 + $0x788] sm:$0xff]
    %v988 = vld [vmem:[#allocation10 + $0x790] sm:$0xff]
    %v989 = vld [vmem:[#allocation10 + $0x798] sm:$0xff]
    %v990 = vld [vmem:[#allocation10 + $0x7a0] sm:$0xff]
    %v991 = vld [vmem:[#allocation10 + $0x7a8] sm:$0xff]
    %v992 = vld [vmem:[#allocation10 + $0x7b0] sm:$0xff]
    %v993 = vld [vmem:[#allocation10 + $0x7b8] sm:$0xff]
    %v994 = vld [vmem:[#allocation10 + $0x7c0] sm:$0xff]
    %v995 = vld [vmem:[#allocation10 + $0x7c8] sm:$0xff]
    %v996 = vld [vmem:[#allocation10 + $0x7d0] sm:$0xff]
    %v997 = vld [vmem:[#allocation10 + $0x7d8] sm:$0xff]
    %v998 = vld [vmem:[#allocation10 + $0x7e0] sm:$0xff]
    %v999 = vld [vmem:[#allocation10 + $0x7e8] sm:$0xff]
    %v1000 = vld [vmem:[#allocation10 + $0x7f0] sm:$0xff]
    %v1001 = vld [vmem:[#allocation10 + $0x7f8] sm:$0xff]
    %v1002 = vld [vmem:[#allocation12] sm:$0xff]
    %v1004 = vperm.slane %v1002, 0
    %v1005 = vperm.slane %v1002, 1
    %v1006 = vperm.slane %v1002, 2
    %v1007 = vperm.slane %v1002, 3
    %v1008 = vperm.slane %v1002, 4
    %v1009 = vperm.slane %v1002, 5
    %v1010 = vperm.slane %v1002, 6
    %v1011 = vperm.slane %v1002, 7
    %v1276 = vunpack.c.l.b16 %v746
    %v1277 = vunpack.c.h.b16 %v746
    %v1278 = vunpack.c.l.b16 %v747
    %v1279 = vunpack.c.h.b16 %v747
    %v1280 = vunpack.c.l.b16 %v748
    %v1281 = vunpack.c.h.b16 %v748
    %v1282 = vunpack.c.l.b16 %v749
    %v1283 = vunpack.c.h.b16 %v749
    %v1284 = vunpack.c.l.b16 %v750
    %v1285 = vunpack.c.h.b16 %v750
    %v1286 = vunpack.c.l.b16 %v751
    %v1287 = vunpack.c.h.b16 %v751
    %v1288 = vunpack.c.l.b16 %v752
    %v1289 = vunpack.c.h.b16 %v752
    %v1290 = vunpack.c.l.b16 %v753
    %v1291 = vunpack.c.h.b16 %v753
    %v1292 = vunpack.c.l.b16 %v754
    %v1293 = vunpack.c.h.b16 %v754
    %v1294 = vunpack.c.l.b16 %v755
    %v1295 = vunpack.c.h.b16 %v755
    %v1296 = vunpack.c.l.b16 %v756
    %v1297 = vunpack.c.h.b16 %v756
    %v1298 = vunpack.c.l.b16 %v757
    %v1299 = vunpack.c.h.b16 %v757
    %v1300 = vunpack.c.l.b16 %v758
    %v1301 = vunpack.c.h.b16 %v758
    %v1302 = vunpack.c.l.b16 %v759
    %v1303 = vunpack.c.h.b16 %v759
    %v1304 = vunpack.c.l.b16 %v760
    %v1305 = vunpack.c.h.b16 %v760
    %v1306 = vunpack.c.l.b16 %v761
    %v1307 = vunpack.c.h.b16 %v761
    %v1308 = vunpack.c.l.b16 %v762
    %v1309 = vunpack.c.h.b16 %v762
    %v1310 = vunpack.c.l.b16 %v763
    %v1311 = vunpack.c.h.b16 %v763
    %v1312 = vunpack.c.l.b16 %v764
    %v1313 = vunpack.c.h.b16 %v764
    %v1314 = vunpack.c.l.b16 %v765
    %v1315 = vunpack.c.h.b16 %v765
    %v1316 = vunpack.c.l.b16 %v766
    %v1317 = vunpack.c.h.b16 %v766
    %v1318 = vunpack.c.l.b16 %v767
    %v1319 = vunpack.c.h.b16 %v767
    %v1320 = vunpack.c.l.b16 %v768
    %v1321 = vunpack.c.h.b16 %v768
    %v1322 = vunpack.c.l.b16 %v769
    %v1323 = vunpack.c.h.b16 %v769
    %v1324 = vunpack.c.l.b16 %v770
    %v1325 = vunpack.c.h.b16 %v770
    %v1326 = vunpack.c.l.b16 %v771
    %v1327 = vunpack.c.h.b16 %v771
    %v1328 = vunpack.c.l.b16 %v772
    %v1329 = vunpack.c.h.b16 %v772
    %v1330 = vunpack.c.l.b16 %v773
    %v1331 = vunpack.c.h.b16 %v773
    %v1332 = vunpack.c.l.b16 %v774
    %v1333 = vunpack.c.h.b16 %v774
    %v1334 = vunpack.c.l.b16 %v775
    %v1335 = vunpack.c.h.b16 %v775
    %v1336 = vunpack.c.l.b16 %v776
    %v1337 = vunpack.c.h.b16 %v776
    %v1338 = vunpack.c.l.b16 %v777
    %v1339 = vunpack.c.h.b16 %v777
    %v1340 = vunpack.c.l.b16 %v778
    %v1341 = vunpack.c.h.b16 %v778
    %v1342 = vunpack.c.l.b16 %v779
    %v1343 = vunpack.c.h.b16 %v779
    %v1344 = vunpack.c.l.b16 %v780
    %v1345 = vunpack.c.h.b16 %v780
    %v1346 = vunpack.c.l.b16 %v781
    %v1347 = vunpack.c.h.b16 %v781
    %v1348 = vunpack.c.l.b16 %v782
    %v1349 = vunpack.c.h.b16 %v782
    %v1350 = vunpack.c.l.b16 %v783
    %v1351 = vunpack.c.h.b16 %v783
    %v1352 = vunpack.c.l.b16 %v784
    %v1353 = vunpack.c.h.b16 %v784
    %v1354 = vunpack.c.l.b16 %v785
    %v1355 = vunpack.c.h.b16 %v785
    %v1356 = vunpack.c.l.b16 %v786
    %v1357 = vunpack.c.h.b16 %v786
    %v1358 = vunpack.c.l.b16 %v787
    %v1359 = vunpack.c.h.b16 %v787
    %v1360 = vunpack.c.l.b16 %v788
    %v1361 = vunpack.c.h.b16 %v788
    %v1362 = vunpack.c.l.b16 %v789
    %v1363 = vunpack.c.h.b16 %v789
    %v1364 = vunpack.c.l.b16 %v790
    %v1365 = vunpack.c.h.b16 %v790
    %v1366 = vunpack.c.l.b16 %v791
    %v1367 = vunpack.c.h.b16 %v791
    %v1368 = vunpack.c.l.b16 %v792
    %v1369 = vunpack.c.h.b16 %v792
    %v1370 = vunpack.c.l.b16 %v793
    %v1371 = vunpack.c.h.b16 %v793
    %v1372 = vunpack.c.l.b16 %v794
    %v1373 = vunpack.c.h.b16 %v794
    %v1374 = vunpack.c.l.b16 %v795
    %v1375 = vunpack.c.h.b16 %v795
    %v1376 = vunpack.c.l.b16 %v796
    %v1377 = vunpack.c.h.b16 %v796
    %v1378 = vunpack.c.l.b16 %v797
    %v1379 = vunpack.c.h.b16 %v797
    %v1380 = vunpack.c.l.b16 %v798
    %v1381 = vunpack.c.h.b16 %v798
    %v1382 = vunpack.c.l.b16 %v799
    %v1383 = vunpack.c.h.b16 %v799
    %v1384 = vunpack.c.l.b16 %v800
    %v1385 = vunpack.c.h.b16 %v800
    %v1386 = vunpack.c.l.b16 %v801
    %v1387 = vunpack.c.h.b16 %v801
    %v1388 = vunpack.c.l.b16 %v802
    %v1389 = vunpack.c.h.b16 %v802
    %v1390 = vunpack.c.l.b16 %v803
    %v1391 = vunpack.c.h.b16 %v803
    %v1392 = vunpack.c.l.b16 %v804
    %v1393 = vunpack.c.h.b16 %v804
    %v1394 = vunpack.c.l.b16 %v805
    %v1395 = vunpack.c.h.b16 %v805
    %v1396 = vunpack.c.l.b16 %v806
    %v1397 = vunpack.c.h.b16 %v806
    %v1398 = vunpack.c.l.b16 %v807
    %v1399 = vunpack.c.h.b16 %v807
    %v1400 = vunpack.c.l.b16 %v808
    %v1401 = vunpack.c.h.b16 %v808
    %v1402 = vunpack.c.l.b16 %v809
    %v1403 = vunpack.c.h.b16 %v809
    %v1404 = vunpack.c.l.b16 %v810
    %v1405 = vunpack.c.h.b16 %v810
    %v1406 = vunpack.c.l.b16 %v811
    %v1407 = vunpack.c.h.b16 %v811
    %v1408 = vunpack.c.l.b16 %v812
    %v1409 = vunpack.c.h.b16 %v812
    %v1410 = vunpack.c.l.b16 %v813
    %v1411 = vunpack.c.h.b16 %v813
    %v1412 = vunpack.c.l.b16 %v814
    %v1413 = vunpack.c.h.b16 %v814
    %v1414 = vunpack.c.l.b16 %v815
    %v1415 = vunpack.c.h.b16 %v815
    %v1416 = vunpack.c.l.b16 %v816
    %v1417 = vunpack.c.h.b16 %v816
    %v1418 = vunpack.c.l.b16 %v817
    %v1419 = vunpack.c.h.b16 %v817
    %v1420 = vunpack.c.l.b16 %v818
    %v1421 = vunpack.c.h.b16 %v818
    %v1422 = vunpack.c.l.b16 %v819
    %v1423 = vunpack.c.h.b16 %v819
    %v1424 = vunpack.c.l.b16 %v820
    %v1425 = vunpack.c.h.b16 %v820
    %v1426 = vunpack.c.l.b16 %v821
    %v1427 = vunpack.c.h.b16 %v821
    %v1428 = vunpack.c.l.b16 %v822
    %v1429 = vunpack.c.h.b16 %v822
    %v1430 = vunpack.c.l.b16 %v823
    %v1431 = vunpack.c.h.b16 %v823
    %v1432 = vunpack.c.l.b16 %v824
    %v1433 = vunpack.c.h.b16 %v824
    %v1434 = vunpack.c.l.b16 %v825
    %v1435 = vunpack.c.h.b16 %v825
    %v1436 = vunpack.c.l.b16 %v826
    %v1437 = vunpack.c.h.b16 %v826
    %v1438 = vunpack.c.l.b16 %v827
    %v1439 = vunpack.c.h.b16 %v827
    %v1440 = vunpack.c.l.b16 %v828
    %v1441 = vunpack.c.h.b16 %v828
    %v1442 = vunpack.c.l.b16 %v829
    %v1443 = vunpack.c.h.b16 %v829
    %v1444 = vunpack.c.l.b16 %v830
    %v1445 = vunpack.c.h.b16 %v830
    %v1446 = vunpack.c.l.b16 %v831
    %v1447 = vunpack.c.h.b16 %v831
    %v1448 = vunpack.c.l.b16 %v832
    %v1449 = vunpack.c.h.b16 %v832
    %v1450 = vunpack.c.l.b16 %v833
    %v1451 = vunpack.c.h.b16 %v833
    %v1452 = vunpack.c.l.b16 %v834
    %v1453 = vunpack.c.h.b16 %v834
    %v1454 = vunpack.c.l.b16 %v835
    %v1455 = vunpack.c.h.b16 %v835
    %v1456 = vunpack.c.l.b16 %v836
    %v1457 = vunpack.c.h.b16 %v836
    %v1458 = vunpack.c.l.b16 %v837
    %v1459 = vunpack.c.h.b16 %v837
    %v1460 = vunpack.c.l.b16 %v838
    %v1461 = vunpack.c.h.b16 %v838
    %v1462 = vunpack.c.l.b16 %v839
    %v1463 = vunpack.c.h.b16 %v839
    %v1464 = vunpack.c.l.b16 %v840
    %v1465 = vunpack.c.h.b16 %v840
    %v1466 = vunpack.c.l.b16 %v841
    %v1467 = vunpack.c.h.b16 %v841
    %v1468 = vunpack.c.l.b16 %v842
    %v1469 = vunpack.c.h.b16 %v842
    %v1470 = vunpack.c.l.b16 %v843
    %v1471 = vunpack.c.h.b16 %v843
    %v1472 = vunpack.c.l.b16 %v844
    %v1473 = vunpack.c.h.b16 %v844
    %v1474 = vunpack.c.l.b16 %v845
    %v1475 = vunpack.c.h.b16 %v845
    %v1476 = vunpack.c.l.b16 %v846
    %v1477 = vunpack.c.h.b16 %v846
    %v1478 = vunpack.c.l.b16 %v847
    %v1479 = vunpack.c.h.b16 %v847
    %v1480 = vunpack.c.l.b16 %v848
    %v1481 = vunpack.c.h.b16 %v848
    %v1482 = vunpack.c.l.b16 %v849
    %v1483 = vunpack.c.h.b16 %v849
    %v1484 = vunpack.c.l.b16 %v850
    %v1485 = vunpack.c.h.b16 %v850
    %v1486 = vunpack.c.l.b16 %v851
    %v1487 = vunpack.c.h.b16 %v851
    %v1488 = vunpack.c.l.b16 %v852
    %v1489 = vunpack.c.h.b16 %v852
    %v1490 = vunpack.c.l.b16 %v853
    %v1491 = vunpack.c.h.b16 %v853
    %v1492 = vunpack.c.l.b16 %v854
    %v1493 = vunpack.c.h.b16 %v854
    %v1494 = vunpack.c.l.b16 %v855
    %v1495 = vunpack.c.h.b16 %v855
    %v1496 = vunpack.c.l.b16 %v856
    %v1497 = vunpack.c.h.b16 %v856
    %v1498 = vunpack.c.l.b16 %v857
    %v1499 = vunpack.c.h.b16 %v857
    %v1500 = vunpack.c.l.b16 %v858
    %v1501 = vunpack.c.h.b16 %v858
    %v1502 = vunpack.c.l.b16 %v859
    %v1503 = vunpack.c.h.b16 %v859
    %v1504 = vunpack.c.l.b16 %v860
    %v1505 = vunpack.c.h.b16 %v860
    %v1506 = vunpack.c.l.b16 %v861
    %v1507 = vunpack.c.h.b16 %v861
    %v1508 = vunpack.c.l.b16 %v862
    %v1509 = vunpack.c.h.b16 %v862
    %v1510 = vunpack.c.l.b16 %v863
    %v1511 = vunpack.c.h.b16 %v863
    %v1512 = vunpack.c.l.b16 %v864
    %v1513 = vunpack.c.h.b16 %v864
    %v1514 = vunpack.c.l.b16 %v865
    %v1515 = vunpack.c.h.b16 %v865
    %v1516 = vunpack.c.l.b16 %v866
    %v1517 = vunpack.c.h.b16 %v866
    %v1518 = vunpack.c.l.b16 %v867
    %v1519 = vunpack.c.h.b16 %v867
    %v1520 = vunpack.c.l.b16 %v868
    %v1521 = vunpack.c.h.b16 %v868
    %v1522 = vunpack.c.l.b16 %v869
    %v1523 = vunpack.c.h.b16 %v869
    %v1524 = vunpack.c.l.b16 %v870
    %v1525 = vunpack.c.h.b16 %v870
    %v1526 = vunpack.c.l.b16 %v871
    %v1527 = vunpack.c.h.b16 %v871
    %v1528 = vunpack.c.l.b16 %v872
    %v1529 = vunpack.c.h.b16 %v872
    %v1530 = vunpack.c.l.b16 %v873
    %v1531 = vunpack.c.h.b16 %v873
    %v1532 = vunpack.c.l.b16 %v874
    %v1533 = vunpack.c.h.b16 %v874
    %v1534 = vunpack.c.l.b16 %v875
    %v1535 = vunpack.c.h.b16 %v875
    %v1536 = vunpack.c.l.b16 %v876
    %v1537 = vunpack.c.h.b16 %v876
    %v1538 = vunpack.c.l.b16 %v877
    %v1539 = vunpack.c.h.b16 %v877
    %v1540 = vunpack.c.l.b16 %v878
    %v1541 = vunpack.c.h.b16 %v878
    %v1542 = vunpack.c.l.b16 %v879
    %v1543 = vunpack.c.h.b16 %v879
    %v1544 = vunpack.c.l.b16 %v880
    %v1545 = vunpack.c.h.b16 %v880
    %v1546 = vunpack.c.l.b16 %v881
    %v1547 = vunpack.c.h.b16 %v881
    %v1548 = vunpack.c.l.b16 %v882
    %v1549 = vunpack.c.h.b16 %v882
    %v1550 = vunpack.c.l.b16 %v883
    %v1551 = vunpack.c.h.b16 %v883
    %v1552 = vunpack.c.l.b16 %v884
    %v1553 = vunpack.c.h.b16 %v884
    %v1554 = vunpack.c.l.b16 %v885
    %v1555 = vunpack.c.h.b16 %v885
    %v1556 = vunpack.c.l.b16 %v886
    %v1557 = vunpack.c.h.b16 %v886
    %v1558 = vunpack.c.l.b16 %v887
    %v1559 = vunpack.c.h.b16 %v887
    %v1560 = vunpack.c.l.b16 %v888
    %v1561 = vunpack.c.h.b16 %v888
    %v1562 = vunpack.c.l.b16 %v889
    %v1563 = vunpack.c.h.b16 %v889
    %v1564 = vunpack.c.l.b16 %v890
    %v1565 = vunpack.c.h.b16 %v890
    %v1566 = vunpack.c.l.b16 %v891
    %v1567 = vunpack.c.h.b16 %v891
    %v1568 = vunpack.c.l.b16 %v892
    %v1569 = vunpack.c.h.b16 %v892
    %v1570 = vunpack.c.l.b16 %v893
    %v1571 = vunpack.c.h.b16 %v893
    %v1572 = vunpack.c.l.b16 %v894
    %v1573 = vunpack.c.h.b16 %v894
    %v1574 = vunpack.c.l.b16 %v895
    %v1575 = vunpack.c.h.b16 %v895
    %v1576 = vunpack.c.l.b16 %v896
    %v1577 = vunpack.c.h.b16 %v896
    %v1578 = vunpack.c.l.b16 %v897
    %v1579 = vunpack.c.h.b16 %v897
    %v1580 = vunpack.c.l.b16 %v898
    %v1581 = vunpack.c.h.b16 %v898
    %v1582 = vunpack.c.l.b16 %v899
    %v1583 = vunpack.c.h.b16 %v899
    %v1584 = vunpack.c.l.b16 %v900
    %v1585 = vunpack.c.h.b16 %v900
    %v1586 = vunpack.c.l.b16 %v901
    %v1587 = vunpack.c.h.b16 %v901
    %v1588 = vunpack.c.l.b16 %v902
    %v1589 = vunpack.c.h.b16 %v902
    %v1590 = vunpack.c.l.b16 %v903
    %v1591 = vunpack.c.h.b16 %v903
    %v1592 = vunpack.c.l.b16 %v904
    %v1593 = vunpack.c.h.b16 %v904
    %v1594 = vunpack.c.l.b16 %v905
    %v1595 = vunpack.c.h.b16 %v905
    %v1596 = vunpack.c.l.b16 %v906
    %v1597 = vunpack.c.h.b16 %v906
    %v1598 = vunpack.c.l.b16 %v907
    %v1599 = vunpack.c.h.b16 %v907
    %v1600 = vunpack.c.l.b16 %v908
    %v1601 = vunpack.c.h.b16 %v908
    %v1602 = vunpack.c.l.b16 %v909
    %v1603 = vunpack.c.h.b16 %v909
    %v1604 = vunpack.c.l.b16 %v910
    %v1605 = vunpack.c.h.b16 %v910
    %v1606 = vunpack.c.l.b16 %v911
    %v1607 = vunpack.c.h.b16 %v911
    %v1608 = vunpack.c.l.b16 %v912
    %v1609 = vunpack.c.h.b16 %v912
    %v1610 = vunpack.c.l.b16 %v913
    %v1611 = vunpack.c.h.b16 %v913
    %v1612 = vunpack.c.l.b16 %v914
    %v1613 = vunpack.c.h.b16 %v914
    %v1614 = vunpack.c.l.b16 %v915
    %v1615 = vunpack.c.h.b16 %v915
    %v1616 = vunpack.c.l.b16 %v916
    %v1617 = vunpack.c.h.b16 %v916
    %v1618 = vunpack.c.l.b16 %v917
    %v1619 = vunpack.c.h.b16 %v917
    %v1620 = vunpack.c.l.b16 %v918
    %v1621 = vunpack.c.h.b16 %v918
    %v1622 = vunpack.c.l.b16 %v919
    %v1623 = vunpack.c.h.b16 %v919
    %v1624 = vunpack.c.l.b16 %v920
    %v1625 = vunpack.c.h.b16 %v920
    %v1626 = vunpack.c.l.b16 %v921
    %v1627 = vunpack.c.h.b16 %v921
    %v1628 = vunpack.c.l.b16 %v922
    %v1629 = vunpack.c.h.b16 %v922
    %v1630 = vunpack.c.l.b16 %v923
    %v1631 = vunpack.c.h.b16 %v923
    %v1632 = vunpack.c.l.b16 %v924
    %v1633 = vunpack.c.h.b16 %v924
    %v1634 = vunpack.c.l.b16 %v925
    %v1635 = vunpack.c.h.b16 %v925
    %v1636 = vunpack.c.l.b16 %v926
    %v1637 = vunpack.c.h.b16 %v926
    %v1638 = vunpack.c.l.b16 %v927
    %v1639 = vunpack.c.h.b16 %v927
    %v1640 = vunpack.c.l.b16 %v928
    %v1641 = vunpack.c.h.b16 %v928
    %v1642 = vunpack.c.l.b16 %v929
    %v1643 = vunpack.c.h.b16 %v929
    %v1644 = vunpack.c.l.b16 %v930
    %v1645 = vunpack.c.h.b16 %v930
    %v1646 = vunpack.c.l.b16 %v931
    %v1647 = vunpack.c.h.b16 %v931
    %v1648 = vunpack.c.l.b16 %v932
    %v1649 = vunpack.c.h.b16 %v932
    %v1650 = vunpack.c.l.b16 %v933
    %v1651 = vunpack.c.h.b16 %v933
    %v1652 = vunpack.c.l.b16 %v934
    %v1653 = vunpack.c.h.b16 %v934
    %v1654 = vunpack.c.l.b16 %v935
    %v1655 = vunpack.c.h.b16 %v935
    %v1656 = vunpack.c.l.b16 %v936
    %v1657 = vunpack.c.h.b16 %v936
    %v1658 = vunpack.c.l.b16 %v937
    %v1659 = vunpack.c.h.b16 %v937
    %v1660 = vunpack.c.l.b16 %v938
    %v1661 = vunpack.c.h.b16 %v938
    %v1662 = vunpack.c.l.b16 %v939
    %v1663 = vunpack.c.h.b16 %v939
    %v1664 = vunpack.c.l.b16 %v940
    %v1665 = vunpack.c.h.b16 %v940
    %v1666 = vunpack.c.l.b16 %v941
    %v1667 = vunpack.c.h.b16 %v941
    %v1668 = vunpack.c.l.b16 %v942
    %v1669 = vunpack.c.h.b16 %v942
    %v1670 = vunpack.c.l.b16 %v943
    %v1671 = vunpack.c.h.b16 %v943
    %v1672 = vunpack.c.l.b16 %v944
    %v1673 = vunpack.c.h.b16 %v944
    %v1674 = vunpack.c.l.b16 %v945
    %v1675 = vunpack.c.h.b16 %v945
    %v1676 = vunpack.c.l.b16 %v946
    %v1677 = vunpack.c.h.b16 %v946
    %v1678 = vunpack.c.l.b16 %v947
    %v1679 = vunpack.c.h.b16 %v947
    %v1680 = vunpack.c.l.b16 %v948
    %v1681 = vunpack.c.h.b16 %v948
    %v1682 = vunpack.c.l.b16 %v949
    %v1683 = vunpack.c.h.b16 %v949
    %v1684 = vunpack.c.l.b16 %v950
    %v1685 = vunpack.c.h.b16 %v950
    %v1686 = vunpack.c.l.b16 %v951
    %v1687 = vunpack.c.h.b16 %v951
    %v1688 = vunpack.c.l.b16 %v952
    %v1689 = vunpack.c.h.b16 %v952
    %v1690 = vunpack.c.l.b16 %v953
    %v1691 = vunpack.c.h.b16 %v953
    %v1692 = vunpack.c.l.b16 %v954
    %v1693 = vunpack.c.h.b16 %v954
    %v1694 = vunpack.c.l.b16 %v955
    %v1695 = vunpack.c.h.b16 %v955
    %v1696 = vunpack.c.l.b16 %v956
    %v1697 = vunpack.c.h.b16 %v956
    %v1698 = vunpack.c.l.b16 %v957
    %v1699 = vunpack.c.h.b16 %v957
    %v1700 = vunpack.c.l.b16 %v958
    %v1701 = vunpack.c.h.b16 %v958
    %v1702 = vunpack.c.l.b16 %v959
    %v1703 = vunpack.c.h.b16 %v959
    %v1704 = vunpack.c.l.b16 %v960
    %v1705 = vunpack.c.h.b16 %v960
    %v1706 = vunpack.c.l.b16 %v961
    %v1707 = vunpack.c.h.b16 %v961
    %v1708 = vunpack.c.l.b16 %v962
    %v1709 = vunpack.c.h.b16 %v962
    %v1710 = vunpack.c.l.b16 %v963
    %v1711 = vunpack.c.h.b16 %v963
    %v1712 = vunpack.c.l.b16 %v964
    %v1713 = vunpack.c.h.b16 %v964
    %v1714 = vunpack.c.l.b16 %v965
    %v1715 = vunpack.c.h.b16 %v965
    %v1716 = vunpack.c.l.b16 %v966
    %v1717 = vunpack.c.h.b16 %v966
    %v1718 = vunpack.c.l.b16 %v967
    %v1719 = vunpack.c.h.b16 %v967
    %v1720 = vunpack.c.l.b16 %v968
    %v1721 = vunpack.c.h.b16 %v968
    %v1722 = vunpack.c.l.b16 %v969
    %v1723 = vunpack.c.h.b16 %v969
    %v1724 = vunpack.c.l.b16 %v970
    %v1725 = vunpack.c.h.b16 %v970
    %v1726 = vunpack.c.l.b16 %v971
    %v1727 = vunpack.c.h.b16 %v971
    %v1728 = vunpack.c.l.b16 %v972
    %v1729 = vunpack.c.h.b16 %v972
    %v1730 = vunpack.c.l.b16 %v973
    %v1731 = vunpack.c.h.b16 %v973
    %v1732 = vunpack.c.l.b16 %v974
    %v1733 = vunpack.c.h.b16 %v974
    %v1734 = vunpack.c.l.b16 %v975
    %v1735 = vunpack.c.h.b16 %v975
    %v1736 = vunpack.c.l.b16 %v976
    %v1737 = vunpack.c.h.b16 %v976
    %v1738 = vunpack.c.l.b16 %v977
    %v1739 = vunpack.c.h.b16 %v977
    %v1740 = vunpack.c.l.b16 %v978
    %v1741 = vunpack.c.h.b16 %v978
    %v1742 = vunpack.c.l.b16 %v979
    %v1743 = vunpack.c.h.b16 %v979
    %v1744 = vunpack.c.l.b16 %v980
    %v1745 = vunpack.c.h.b16 %v980
    %v1746 = vunpack.c.l.b16 %v981
    %v1747 = vunpack.c.h.b16 %v981
    %v1748 = vunpack.c.l.b16 %v982
    %v1749 = vunpack.c.h.b16 %v982
    %v1750 = vunpack.c.l.b16 %v983
    %v1751 = vunpack.c.h.b16 %v983
    %v1752 = vunpack.c.l.b16 %v984
    %v1753 = vunpack.c.h.b16 %v984
    %v1754 = vunpack.c.l.b16 %v985
    %v1755 = vunpack.c.h.b16 %v985
    %v1756 = vunpack.c.l.b16 %v986
    %v1757 = vunpack.c.h.b16 %v986
    %v1758 = vunpack.c.l.b16 %v987
    %v1759 = vunpack.c.h.b16 %v987
    %v1760 = vunpack.c.l.b16 %v988
    %v1761 = vunpack.c.h.b16 %v988
    %v1762 = vunpack.c.l.b16 %v989
    %v1763 = vunpack.c.h.b16 %v989
    %v1764 = vunpack.c.l.b16 %v990
    %v1765 = vunpack.c.h.b16 %v990
    %v1766 = vunpack.c.l.b16 %v991
    %v1767 = vunpack.c.h.b16 %v991
    %v1768 = vunpack.c.l.b16 %v992
    %v1769 = vunpack.c.h.b16 %v992
    %v1770 = vunpack.c.l.b16 %v993
    %v1771 = vunpack.c.h.b16 %v993
    %v1772 = vunpack.c.l.b16 %v994
    %v1773 = vunpack.c.h.b16 %v994
    %v1774 = vunpack.c.l.b16 %v995
    %v1775 = vunpack.c.h.b16 %v995
    %v1776 = vunpack.c.l.b16 %v996
    %v1777 = vunpack.c.h.b16 %v996
    %v1778 = vunpack.c.l.b16 %v997
    %v1779 = vunpack.c.h.b16 %v997
    %v1780 = vunpack.c.l.b16 %v998
    %v1781 = vunpack.c.h.b16 %v998
    %v1782 = vunpack.c.l.b16 %v999
    %v1783 = vunpack.c.h.b16 %v999
    %v1784 = vunpack.c.l.b16 %v1000
    %v1785 = vunpack.c.h.b16 %v1000
    %v1786 = vunpack.c.l.b16 %v1001
    %v1787 = vunpack.c.h.b16 %v1001
    %v1788 = vpack.c.b16 %v1284, %v1276
    %v1789 = vpack.c.b16 %v1285, %v1277
    %v1790 = vpack.c.b16 %v1286, %v1278
    %v1791 = vpack.c.b16 %v1287, %v1279
    %v1792 = vpack.c.b16 %v1288, %v1280
    %v1793 = vpack.c.b16 %v1289, %v1281
    %v1794 = vpack.c.b16 %v1290, %v1282
    %v1795 = vpack.c.b16 %v1291, %v1283
    %v1796 = vpack.c.b16 %v1300, %v1292
    %v1797 = vpack.c.b16 %v1301, %v1293
    %v1798 = vpack.c.b16 %v1302, %v1294
    %v1799 = vpack.c.b16 %v1303, %v1295
    %v1800 = vpack.c.b16 %v1304, %v1296
    %v1801 = vpack.c.b16 %v1305, %v1297
    %v1802 = vpack.c.b16 %v1306, %v1298
    %v1803 = vpack.c.b16 %v1307, %v1299
    %v1804 = vpack.c.b16 %v1316, %v1308
    %v1805 = vpack.c.b16 %v1317, %v1309
    %v1806 = vpack.c.b16 %v1318, %v1310
    %v1807 = vpack.c.b16 %v1319, %v1311
    %v1808 = vpack.c.b16 %v1320, %v1312
    %v1809 = vpack.c.b16 %v1321, %v1313
    %v1810 = vpack.c.b16 %v1322, %v1314
    %v1811 = vpack.c.b16 %v1323, %v1315
    %v1812 = vpack.c.b16 %v1332, %v1324
    %v1813 = vpack.c.b16 %v1333, %v1325
    %v1814 = vpack.c.b16 %v1334, %v1326
    %v1815 = vpack.c.b16 %v1335, %v1327
    %v1816 = vpack.c.b16 %v1336, %v1328
    %v1817 = vpack.c.b16 %v1337, %v1329
    %v1818 = vpack.c.b16 %v1338, %v1330
    %v1819 = vpack.c.b16 %v1339, %v1331
    %v1820 = vpack.c.b16 %v1348, %v1340
    %v1821 = vpack.c.b16 %v1349, %v1341
    %v1822 = vpack.c.b16 %v1350, %v1342
    %v1823 = vpack.c.b16 %v1351, %v1343
    %v1824 = vpack.c.b16 %v1352, %v1344
    %v1825 = vpack.c.b16 %v1353, %v1345
    %v1826 = vpack.c.b16 %v1354, %v1346
    %v1827 = vpack.c.b16 %v1355, %v1347
    %v1828 = vpack.c.b16 %v1364, %v1356
    %v1829 = vpack.c.b16 %v1365, %v1357
    %v1830 = vpack.c.b16 %v1366, %v1358
    %v1831 = vpack.c.b16 %v1367, %v1359
    %v1832 = vpack.c.b16 %v1368, %v1360
    %v1833 = vpack.c.b16 %v1369, %v1361
    %v1834 = vpack.c.b16 %v1370, %v1362
    %v1835 = vpack.c.b16 %v1371, %v1363
    %v1836 = vpack.c.b16 %v1380, %v1372
    %v1837 = vpack.c.b16 %v1381, %v1373
    %v1838 = vpack.c.b16 %v1382, %v1374
    %v1839 = vpack.c.b16 %v1383, %v1375
    %v1840 = vpack.c.b16 %v1384, %v1376
    %v1841 = vpack.c.b16 %v1385, %v1377
    %v1842 = vpack.c.b16 %v1386, %v1378
    %v1843 = vpack.c.b16 %v1387, %v1379
    %v1844 = vpack.c.b16 %v1396, %v1388
    %v1845 = vpack.c.b16 %v1397, %v1389
    %v1846 = vpack.c.b16 %v1398, %v1390
    %v1847 = vpack.c.b16 %v1399, %v1391
    %v1848 = vpack.c.b16 %v1400, %v1392
    %v1849 = vpack.c.b16 %v1401, %v1393
    %v1850 = vpack.c.b16 %v1402, %v1394
    %v1851 = vpack.c.b16 %v1403, %v1395
    %v1852 = vpack.c.b16 %v1412, %v1404
    %v1853 = vpack.c.b16 %v1413, %v1405
    %v1854 = vpack.c.b16 %v1414, %v1406
    %v1855 = vpack.c.b16 %v1415, %v1407
    %v1856 = vpack.c.b16 %v1416, %v1408
    %v1857 = vpack.c.b16 %v1417, %v1409
    %v1858 = vpack.c.b16 %v1418, %v1410
    %v1859 = vpack.c.b16 %v1419, %v1411
    %v1860 = vpack.c.b16 %v1428, %v1420
    %v1861 = vpack.c.b16 %v1429, %v1421
    %v1862 = vpack.c.b16 %v1430, %v1422
    %v1863 = vpack.c.b16 %v1431, %v1423
    %v1864 = vpack.c.b16 %v1432, %v1424
    %v1865 = vpack.c.b16 %v1433, %v1425
    %v1866 = vpack.c.b16 %v1434, %v1426
    %v1867 = vpack.c.b16 %v1435, %v1427
    %v1868 = vpack.c.b16 %v1444, %v1436
    %v1869 = vpack.c.b16 %v1445, %v1437
    %v1870 = vpack.c.b16 %v1446, %v1438
    %v1871 = vpack.c.b16 %v1447, %v1439
    %v1872 = vpack.c.b16 %v1448, %v1440
    %v1873 = vpack.c.b16 %v1449, %v1441
    %v1874 = vpack.c.b16 %v1450, %v1442
    %v1875 = vpack.c.b16 %v1451, %v1443
    %v1876 = vpack.c.b16 %v1460, %v1452
    %v1877 = vpack.c.b16 %v1461, %v1453
    %v1878 = vpack.c.b16 %v1462, %v1454
    %v1879 = vpack.c.b16 %v1463, %v1455
    %v1880 = vpack.c.b16 %v1464, %v1456
    %v1881 = vpack.c.b16 %v1465, %v1457
    %v1882 = vpack.c.b16 %v1466, %v1458
    %v1883 = vpack.c.b16 %v1467, %v1459
    %v1884 = vpack.c.b16 %v1476, %v1468
    %v1885 = vpack.c.b16 %v1477, %v1469
    %v1886 = vpack.c.b16 %v1478, %v1470
    %v1887 = vpack.c.b16 %v1479, %v1471
    %v1888 = vpack.c.b16 %v1480, %v1472
    %v1889 = vpack.c.b16 %v1481, %v1473
    %v1890 = vpack.c.b16 %v1482, %v1474
    %v1891 = vpack.c.b16 %v1483, %v1475
    %v1892 = vpack.c.b16 %v1492, %v1484
    %v1893 = vpack.c.b16 %v1493, %v1485
    %v1894 = vpack.c.b16 %v1494, %v1486
    %v1895 = vpack.c.b16 %v1495, %v1487
    %v1896 = vpack.c.b16 %v1496, %v1488
    %v1897 = vpack.c.b16 %v1497, %v1489
    %v1898 = vpack.c.b16 %v1498, %v1490
    %v1899 = vpack.c.b16 %v1499, %v1491
    %v1900 = vpack.c.b16 %v1508, %v1500
    %v1901 = vpack.c.b16 %v1509, %v1501
    %v1902 = vpack.c.b16 %v1510, %v1502
    %v1903 = vpack.c.b16 %v1511, %v1503
    %v1904 = vpack.c.b16 %v1512, %v1504
    %v1905 = vpack.c.b16 %v1513, %v1505
    %v1906 = vpack.c.b16 %v1514, %v1506
    %v1907 = vpack.c.b16 %v1515, %v1507
    %v1908 = vpack.c.b16 %v1524, %v1516
    %v1909 = vpack.c.b16 %v1525, %v1517
    %v1910 = vpack.c.b16 %v1526, %v1518
    %v1911 = vpack.c.b16 %v1527, %v1519
    %v1912 = vpack.c.b16 %v1528, %v1520
    %v1913 = vpack.c.b16 %v1529, %v1521
    %v1914 = vpack.c.b16 %v1530, %v1522
    %v1915 = vpack.c.b16 %v1531, %v1523
    %v1916 = vpack.c.b16 %v1540, %v1532
    %v1917 = vpack.c.b16 %v1541, %v1533
    %v1918 = vpack.c.b16 %v1542, %v1534
    %v1919 = vpack.c.b16 %v1543, %v1535
    %v1920 = vpack.c.b16 %v1544, %v1536
    %v1921 = vpack.c.b16 %v1545, %v1537
    %v1922 = vpack.c.b16 %v1546, %v1538
    %v1923 = vpack.c.b16 %v1547, %v1539
    %v1924 = vpack.c.b16 %v1556, %v1548
    %v1925 = vpack.c.b16 %v1557, %v1549
    %v1926 = vpack.c.b16 %v1558, %v1550
    %v1927 = vpack.c.b16 %v1559, %v1551
    %v1928 = vpack.c.b16 %v1560, %v1552
    %v1929 = vpack.c.b16 %v1561, %v1553
    %v1930 = vpack.c.b16 %v1562, %v1554
    %v1931 = vpack.c.b16 %v1563, %v1555
    %v1932 = vpack.c.b16 %v1572, %v1564
    %v1933 = vpack.c.b16 %v1573, %v1565
    %v1934 = vpack.c.b16 %v1574, %v1566
    %v1935 = vpack.c.b16 %v1575, %v1567
    %v1936 = vpack.c.b16 %v1576, %v1568
    %v1937 = vpack.c.b16 %v1577, %v1569
    %v1938 = vpack.c.b16 %v1578, %v1570
    %v1939 = vpack.c.b16 %v1579, %v1571
    %v1940 = vpack.c.b16 %v1588, %v1580
    %v1941 = vpack.c.b16 %v1589, %v1581
    %v1942 = vpack.c.b16 %v1590, %v1582
    %v1943 = vpack.c.b16 %v1591, %v1583
    %v1944 = vpack.c.b16 %v1592, %v1584
    %v1945 = vpack.c.b16 %v1593, %v1585
    %v1946 = vpack.c.b16 %v1594, %v1586
    %v1947 = vpack.c.b16 %v1595, %v1587
    %v1948 = vpack.c.b16 %v1604, %v1596
    %v1949 = vpack.c.b16 %v1605, %v1597
    %v1950 = vpack.c.b16 %v1606, %v1598
    %v1951 = vpack.c.b16 %v1607, %v1599
    %v1952 = vpack.c.b16 %v1608, %v1600
    %v1953 = vpack.c.b16 %v1609, %v1601
    %v1954 = vpack.c.b16 %v1610, %v1602
    %v1955 = vpack.c.b16 %v1611, %v1603
    %v1956 = vpack.c.b16 %v1620, %v1612
    %v1957 = vpack.c.b16 %v1621, %v1613
    %v1958 = vpack.c.b16 %v1622, %v1614
    %v1959 = vpack.c.b16 %v1623, %v1615
    %v1960 = vpack.c.b16 %v1624, %v1616
    %v1961 = vpack.c.b16 %v1625, %v1617
    %v1962 = vpack.c.b16 %v1626, %v1618
    %v1963 = vpack.c.b16 %v1627, %v1619
    %v1964 = vpack.c.b16 %v1636, %v1628
    %v1965 = vpack.c.b16 %v1637, %v1629
    %v1966 = vpack.c.b16 %v1638, %v1630
    %v1967 = vpack.c.b16 %v1639, %v1631
    %v1968 = vpack.c.b16 %v1640, %v1632
    %v1969 = vpack.c.b16 %v1641, %v1633
    %v1970 = vpack.c.b16 %v1642, %v1634
    %v1971 = vpack.c.b16 %v1643, %v1635
    %v1972 = vpack.c.b16 %v1652, %v1644
    %v1973 = vpack.c.b16 %v1653, %v1645
    %v1974 = vpack.c.b16 %v1654, %v1646
    %v1975 = vpack.c.b16 %v1655, %v1647
    %v1976 = vpack.c.b16 %v1656, %v1648
    %v1977 = vpack.c.b16 %v1657, %v1649
    %v1978 = vpack.c.b16 %v1658, %v1650
    %v1979 = vpack.c.b16 %v1659, %v1651
    %v1980 = vpack.c.b16 %v1668, %v1660
    %v1981 = vpack.c.b16 %v1669, %v1661
    %v1982 = vpack.c.b16 %v1670, %v1662
    %v1983 = vpack.c.b16 %v1671, %v1663
    %v1984 = vpack.c.b16 %v1672, %v1664
    %v1985 = vpack.c.b16 %v1673, %v1665
    %v1986 = vpack.c.b16 %v1674, %v1666
    %v1987 = vpack.c.b16 %v1675, %v1667
    %v1988 = vpack.c.b16 %v1684, %v1676
    %v1989 = vpack.c.b16 %v1685, %v1677
    %v1990 = vpack.c.b16 %v1686, %v1678
    %v1991 = vpack.c.b16 %v1687, %v1679
    %v1992 = vpack.c.b16 %v1688, %v1680
    %v1993 = vpack.c.b16 %v1689, %v1681
    %v1994 = vpack.c.b16 %v1690, %v1682
    %v1995 = vpack.c.b16 %v1691, %v1683
    %v1996 = vpack.c.b16 %v1700, %v1692
    %v1997 = vpack.c.b16 %v1701, %v1693
    %v1998 = vpack.c.b16 %v1702, %v1694
    %v1999 = vpack.c.b16 %v1703, %v1695
    %v2000 = vpack.c.b16 %v1704, %v1696
    %v2001 = vpack.c.b16 %v1705, %v1697
    %v2002 = vpack.c.b16 %v1706, %v1698
    %v2003 = vpack.c.b16 %v1707, %v1699
    %v2004 = vpack.c.b16 %v1716, %v1708
    %v2005 = vpack.c.b16 %v1717, %v1709
    %v2006 = vpack.c.b16 %v1718, %v1710
    %v2007 = vpack.c.b16 %v1719, %v1711
    %v2008 = vpack.c.b16 %v1720, %v1712
    %v2009 = vpack.c.b16 %v1721, %v1713
    %v2010 = vpack.c.b16 %v1722, %v1714
    %v2011 = vpack.c.b16 %v1723, %v1715
    %v2012 = vpack.c.b16 %v1732, %v1724
    %v2013 = vpack.c.b16 %v1733, %v1725
    %v2014 = vpack.c.b16 %v1734, %v1726
    %v2015 = vpack.c.b16 %v1735, %v1727
    %v2016 = vpack.c.b16 %v1736, %v1728
    %v2017 = vpack.c.b16 %v1737, %v1729
    %v2018 = vpack.c.b16 %v1738, %v1730
    %v2019 = vpack.c.b16 %v1739, %v1731
    %v2020 = vpack.c.b16 %v1748, %v1740
    %v2021 = vpack.c.b16 %v1749, %v1741
    %v2022 = vpack.c.b16 %v1750, %v1742
    %v2023 = vpack.c.b16 %v1751, %v1743
    %v2024 = vpack.c.b16 %v1752, %v1744
    %v2025 = vpack.c.b16 %v1753, %v1745
    %v2026 = vpack.c.b16 %v1754, %v1746
    %v2027 = vpack.c.b16 %v1755, %v1747
    %v2028 = vpack.c.b16 %v1764, %v1756
    %v2029 = vpack.c.b16 %v1765, %v1757
    %v2030 = vpack.c.b16 %v1766, %v1758
    %v2031 = vpack.c.b16 %v1767, %v1759
    %v2032 = vpack.c.b16 %v1768, %v1760
    %v2033 = vpack.c.b16 %v1769, %v1761
    %v2034 = vpack.c.b16 %v1770, %v1762
    %v2035 = vpack.c.b16 %v1771, %v1763
    %v2036 = vpack.c.b16 %v1780, %v1772
    %v2037 = vpack.c.b16 %v1781, %v1773
    %v2038 = vpack.c.b16 %v1782, %v1774
    %v2039 = vpack.c.b16 %v1783, %v1775
    %v2040 = vpack.c.b16 %v1784, %v1776
    %v2041 = vpack.c.b16 %v1785, %v1777
    %v2042 = vpack.c.b16 %v1786, %v1778
    %v2043 = vpack.c.b16 %v1787, %v1779
    %2300 = vmatpush.bf16.msra.mxu0 %v1844
    %2301 = vmatpush.bf16.msra.mxu0 %v1836
    %2302 = vmatpush.bf16.msra.mxu0 %v1828
    %2303 = vmatpush.bf16.msra.mxu0 %v1820
    %2304 = vmatpush.bf16.msra.mxu0 %v1812
    %2305 = vmatpush.bf16.msra.mxu0 %v1804
    %2306 = vmatpush.bf16.msra.mxu0 %v1796
    %2307 = vmatpush.bf16.msra.mxu0 %v1788
    %2308 = vmatmul.bf16.gmra.mxu0 %v742
    %v2309 = vpop.f32.mrf.mxu0
    %v2310 = vadd.f32 %v1004, %v2309
    %v2311 = vpop.f32.mrf.mxu0
    %2312 = vdwg.mxu0
    %2313 = vmatpush.bf16.msra.mxu0 %v1908
    %2314 = vmatpush.bf16.msra.mxu0 %v1900
    %2315 = vmatpush.bf16.msra.mxu0 %v1892
    %2316 = vmatpush.bf16.msra.mxu0 %v1884
    %2317 = vmatpush.bf16.msra.mxu0 %v1876
    %2318 = vmatpush.bf16.msra.mxu0 %v1868
    %2319 = vmatpush.bf16.msra.mxu0 %v1860
    %2320 = vmatpush.bf16.msra.mxu0 %v1852
    %2321 = vmatmul.bf16.gmra.mxu0 %v743
    %v2322 = vpop.f32.mrf.mxu0
    %v2323 = vadd.f32 %v2310, %v2322
    %v2324 = vpop.f32.mrf.mxu0
    %2325 = vdwg.mxu0
    %2326 = vmatpush.bf16.msra.mxu0 %v1972
    %2327 = vmatpush.bf16.msra.mxu0 %v1964
    %2328 = vmatpush.bf16.msra.mxu0 %v1956
    %2329 = vmatpush.bf16.msra.mxu0 %v1948
    %2330 = vmatpush.bf16.msra.mxu0 %v1940
    %2331 = vmatpush.bf16.msra.mxu0 %v1932
    %2332 = vmatpush.bf16.msra.mxu0 %v1924
    %2333 = vmatpush.bf16.msra.mxu0 %v1916
    %2334 = vmatmul.bf16.gmra.mxu0 %v744
    %v2335 = vpop.f32.mrf.mxu0
    %v2336 = vadd.f32 %v2323, %v2335
    %v2337 = vpop.f32.mrf.mxu0
    %2338 = vdwg.mxu0
    %2339 = vmatpush.bf16.msra.mxu0 %v2036
    %2340 = vmatpush.bf16.msra.mxu0 %v2028
    %2341 = vmatpush.bf16.msra.mxu0 %v2020
    %2342 = vmatpush.bf16.msra.mxu0 %v2012
    %2343 = vmatpush.bf16.msra.mxu0 %v2004
    %2344 = vmatpush.bf16.msra.mxu0 %v1996
    %2345 = vmatpush.bf16.msra.mxu0 %v1988
    %2346 = vmatpush.bf16.msra.mxu0 %v1980
    %2347 = vmatmul.bf16.gmra.mxu0 %v745
    %v2348 = vpop.f32.mrf.mxu0
    %v2349 = vadd.f32 %v2336, %v2348
    %v2350 = vpop.f32.mrf.mxu0
    %2351 = vdwg.mxu0
    %2352 = vmatpush.bf16.msra.mxu0 %v1845
    %2353 = vmatpush.bf16.msra.mxu0 %v1837
    %2354 = vmatpush.bf16.msra.mxu0 %v1829
    %2355 = vmatpush.bf16.msra.mxu0 %v1821
    %2356 = vmatpush.bf16.msra.mxu0 %v1813
    %2357 = vmatpush.bf16.msra.mxu0 %v1805
    %2358 = vmatpush.bf16.msra.mxu0 %v1797
    %2359 = vmatpush.bf16.msra.mxu0 %v1789
    %2360 = vmatmul.bf16.gmra.mxu0 %v742
    %v2361 = vpop.f32.mrf.mxu0
    %v2362 = vadd.f32 %v1005, %v2361
    %v2363 = vpop.f32.mrf.mxu0
    %2364 = vdwg.mxu0
    %2365 = vmatpush.bf16.msra.mxu0 %v1909
    %2366 = vmatpush.bf16.msra.mxu0 %v1901
    %2367 = vmatpush.bf16.msra.mxu0 %v1893
    %2368 = vmatpush.bf16.msra.mxu0 %v1885
    %2369 = vmatpush.bf16.msra.mxu0 %v1877
    %2370 = vmatpush.bf16.msra.mxu0 %v1869
    %2371 = vmatpush.bf16.msra.mxu0 %v1861
    %2372 = vmatpush.bf16.msra.mxu0 %v1853
    %2373 = vmatmul.bf16.gmra.mxu0 %v743
    %v2374 = vpop.f32.mrf.mxu0
    %v2375 = vadd.f32 %v2362, %v2374
    %v2376 = vpop.f32.mrf.mxu0
    %2377 = vdwg.mxu0
    %2378 = vmatpush.bf16.msra.mxu0 %v1973
    %2379 = vmatpush.bf16.msra.mxu0 %v1965
    %2380 = vmatpush.bf16.msra.mxu0 %v1957
    %2381 = vmatpush.bf16.msra.mxu0 %v1949
    %2382 = vmatpush.bf16.msra.mxu0 %v1941
    %2383 = vmatpush.bf16.msra.mxu0 %v1933
    %2384 = vmatpush.bf16.msra.mxu0 %v1925
    %2385 = vmatpush.bf16.msra.mxu0 %v1917
    %2386 = vmatmul.bf16.gmra.mxu0 %v744
    %v2387 = vpop.f32.mrf.mxu0
    %v2388 = vadd.f32 %v2375, %v2387
    %v2389 = vpop.f32.mrf.mxu0
    %2390 = vdwg.mxu0
    %2391 = vmatpush.bf16.msra.mxu0 %v2037
    %2392 = vmatpush.bf16.msra.mxu0 %v2029
    %2393 = vmatpush.bf16.msra.mxu0 %v2021
    %2394 = vmatpush.bf16.msra.mxu0 %v2013
    %2395 = vmatpush.bf16.msra.mxu0 %v2005
    %2396 = vmatpush.bf16.msra.mxu0 %v1997
    %2397 = vmatpush.bf16.msra.mxu0 %v1989
    %2398 = vmatpush.bf16.msra.mxu0 %v1981
    %2399 = vmatmul.bf16.gmra.mxu0 %v745
    %v2400 = vpop.f32.mrf.mxu0
    %v2401 = vadd.f32 %v2388, %v2400
    %v2402 = vpop.f32.mrf.mxu0
    %2403 = vdwg.mxu0
    %2404 = vmatpush.bf16.msra.mxu0 %v1846
    %2405 = vmatpush.bf16.msra.mxu0 %v1838
    %2406 = vmatpush.bf16.msra.mxu0 %v1830
    %2407 = vmatpush.bf16.msra.mxu0 %v1822
    %2408 = vmatpush.bf16.msra.mxu0 %v1814
    %2409 = vmatpush.bf16.msra.mxu0 %v1806
    %2410 = vmatpush.bf16.msra.mxu0 %v1798
    %2411 = vmatpush.bf16.msra.mxu0 %v1790
    %2412 = vmatmul.bf16.gmra.mxu0 %v742
    %v2413 = vpop.f32.mrf.mxu0
    %v2414 = vadd.f32 %v1006, %v2413
    %v2415 = vpop.f32.mrf.mxu0
    %2416 = vdwg.mxu0
    %2417 = vmatpush.bf16.msra.mxu0 %v1910
    %2418 = vmatpush.bf16.msra.mxu0 %v1902
    %2419 = vmatpush.bf16.msra.mxu0 %v1894
    %2420 = vmatpush.bf16.msra.mxu0 %v1886
    %2421 = vmatpush.bf16.msra.mxu0 %v1878
    %2422 = vmatpush.bf16.msra.mxu0 %v1870
    %2423 = vmatpush.bf16.msra.mxu0 %v1862
    %2424 = vmatpush.bf16.msra.mxu0 %v1854
    %2425 = vmatmul.bf16.gmra.mxu0 %v743
    %v2426 = vpop.f32.mrf.mxu0
    %v2427 = vadd.f32 %v2414, %v2426
    %v2428 = vpop.f32.mrf.mxu0
    %2429 = vdwg.mxu0
    %2430 = vmatpush.bf16.msra.mxu0 %v1974
    %2431 = vmatpush.bf16.msra.mxu0 %v1966
    %2432 = vmatpush.bf16.msra.mxu0 %v1958
    %2433 = vmatpush.bf16.msra.mxu0 %v1950
    %2434 = vmatpush.bf16.msra.mxu0 %v1942
    %2435 = vmatpush.bf16.msra.mxu0 %v1934
    %2436 = vmatpush.bf16.msra.mxu0 %v1926
    %2437 = vmatpush.bf16.msra.mxu0 %v1918
    %2438 = vmatmul.bf16.gmra.mxu0 %v744
    %v2439 = vpop.f32.mrf.mxu0
    %v2440 = vadd.f32 %v2427, %v2439
    %v2441 = vpop.f32.mrf.mxu0
    %2442 = vdwg.mxu0
    %2443 = vmatpush.bf16.msra.mxu0 %v2038
    %2444 = vmatpush.bf16.msra.mxu0 %v2030
    %2445 = vmatpush.bf16.msra.mxu0 %v2022
    %2446 = vmatpush.bf16.msra.mxu0 %v2014
    %2447 = vmatpush.bf16.msra.mxu0 %v2006
    %2448 = vmatpush.bf16.msra.mxu0 %v1998
    %2449 = vmatpush.bf16.msra.mxu0 %v1990
    %2450 = vmatpush.bf16.msra.mxu0 %v1982
    %2451 = vmatmul.bf16.gmra.mxu0 %v745
    %v2452 = vpop.f32.mrf.mxu0
    %v2453 = vadd.f32 %v2440, %v2452
    %v2454 = vpop.f32.mrf.mxu0
    %2455 = vdwg.mxu0
    %2456 = vmatpush.bf16.msra.mxu0 %v1847
    %2457 = vmatpush.bf16.msra.mxu0 %v1839
    %2458 = vmatpush.bf16.msra.mxu0 %v1831
    %2459 = vmatpush.bf16.msra.mxu0 %v1823
    %2460 = vmatpush.bf16.msra.mxu0 %v1815
    %2461 = vmatpush.bf16.msra.mxu0 %v1807
    %2462 = vmatpush.bf16.msra.mxu0 %v1799
    %2463 = vmatpush.bf16.msra.mxu0 %v1791
    %2464 = vmatmul.bf16.gmra.mxu0 %v742
    %v2465 = vpop.f32.mrf.mxu0
    %v2466 = vadd.f32 %v1007, %v2465
    %v2467 = vpop.f32.mrf.mxu0
    %2468 = vdwg.mxu0
    %2469 = vmatpush.bf16.msra.mxu0 %v1911
    %2470 = vmatpush.bf16.msra.mxu0 %v1903
    %2471 = vmatpush.bf16.msra.mxu0 %v1895
    %2472 = vmatpush.bf16.msra.mxu0 %v1887
    %2473 = vmatpush.bf16.msra.mxu0 %v1879
    %2474 = vmatpush.bf16.msra.mxu0 %v1871
    %2475 = vmatpush.bf16.msra.mxu0 %v1863
    %2476 = vmatpush.bf16.msra.mxu0 %v1855
    %2477 = vmatmul.bf16.gmra.mxu0 %v743
    %v2478 = vpop.f32.mrf.mxu0
    %v2479 = vadd.f32 %v2466, %v2478
    %v2480 = vpop.f32.mrf.mxu0
    %2481 = vdwg.mxu0
    %2482 = vmatpush.bf16.msra.mxu0 %v1975
    %2483 = vmatpush.bf16.msra.mxu0 %v1967
    %2484 = vmatpush.bf16.msra.mxu0 %v1959
    %2485 = vmatpush.bf16.msra.mxu0 %v1951
    %2486 = vmatpush.bf16.msra.mxu0 %v1943
    %2487 = vmatpush.bf16.msra.mxu0 %v1935
    %2488 = vmatpush.bf16.msra.mxu0 %v1927
    %2489 = vmatpush.bf16.msra.mxu0 %v1919
    %2490 = vmatmul.bf16.gmra.mxu0 %v744
    %v2491 = vpop.f32.mrf.mxu0
    %v2492 = vadd.f32 %v2479, %v2491
    %v2493 = vpop.f32.mrf.mxu0
    %2494 = vdwg.mxu0
    %2495 = vmatpush.bf16.msra.mxu0 %v2039
    %2496 = vmatpush.bf16.msra.mxu0 %v2031
    %2497 = vmatpush.bf16.msra.mxu0 %v2023
    %2498 = vmatpush.bf16.msra.mxu0 %v2015
    %2499 = vmatpush.bf16.msra.mxu0 %v2007
    %2500 = vmatpush.bf16.msra.mxu0 %v1999
    %2501 = vmatpush.bf16.msra.mxu0 %v1991
    %2502 = vmatpush.bf16.msra.mxu0 %v1983
    %2503 = vmatmul.bf16.gmra.mxu0 %v745
    %v2504 = vpop.f32.mrf.mxu0
    %v2505 = vadd.f32 %v2492, %v2504
    %v2506 = vpop.f32.mrf.mxu0
    %2507 = vdwg.mxu0
    %2508 = vmatpush.bf16.msra.mxu0 %v1848
    %2509 = vmatpush.bf16.msra.mxu0 %v1840
    %2510 = vmatpush.bf16.msra.mxu0 %v1832
    %2511 = vmatpush.bf16.msra.mxu0 %v1824
    %2512 = vmatpush.bf16.msra.mxu0 %v1816
    %2513 = vmatpush.bf16.msra.mxu0 %v1808
    %2514 = vmatpush.bf16.msra.mxu0 %v1800
    %2515 = vmatpush.bf16.msra.mxu0 %v1792
    %2516 = vmatmul.bf16.gmra.mxu0 %v742
    %v2517 = vpop.f32.mrf.mxu0
    %v2518 = vadd.f32 %v1008, %v2517
    %v2519 = vpop.f32.mrf.mxu0
    %2520 = vdwg.mxu0
    %2521 = vmatpush.bf16.msra.mxu0 %v1912
    %2522 = vmatpush.bf16.msra.mxu0 %v1904
    %2523 = vmatpush.bf16.msra.mxu0 %v1896
    %2524 = vmatpush.bf16.msra.mxu0 %v1888
    %2525 = vmatpush.bf16.msra.mxu0 %v1880
    %2526 = vmatpush.bf16.msra.mxu0 %v1872
    %2527 = vmatpush.bf16.msra.mxu0 %v1864
    %2528 = vmatpush.bf16.msra.mxu0 %v1856
    %2529 = vmatmul.bf16.gmra.mxu0 %v743
    %v2530 = vpop.f32.mrf.mxu0
    %v2531 = vadd.f32 %v2518, %v2530
    %v2532 = vpop.f32.mrf.mxu0
    %2533 = vdwg.mxu0
    %2534 = vmatpush.bf16.msra.mxu0 %v1976
    %2535 = vmatpush.bf16.msra.mxu0 %v1968
    %2536 = vmatpush.bf16.msra.mxu0 %v1960
    %2537 = vmatpush.bf16.msra.mxu0 %v1952
    %2538 = vmatpush.bf16.msra.mxu0 %v1944
    %2539 = vmatpush.bf16.msra.mxu0 %v1936
    %2540 = vmatpush.bf16.msra.mxu0 %v1928
    %2541 = vmatpush.bf16.msra.mxu0 %v1920
    %2542 = vmatmul.bf16.gmra.mxu0 %v744
    %v2543 = vpop.f32.mrf.mxu0
    %v2544 = vadd.f32 %v2531, %v2543
    %v2545 = vpop.f32.mrf.mxu0
    %2546 = vdwg.mxu0
    %2547 = vmatpush.bf16.msra.mxu0 %v2040
    %2548 = vmatpush.bf16.msra.mxu0 %v2032
    %2549 = vmatpush.bf16.msra.mxu0 %v2024
    %2550 = vmatpush.bf16.msra.mxu0 %v2016
    %2551 = vmatpush.bf16.msra.mxu0 %v2008
    %2552 = vmatpush.bf16.msra.mxu0 %v2000
    %2553 = vmatpush.bf16.msra.mxu0 %v1992
    %2554 = vmatpush.bf16.msra.mxu0 %v1984
    %2555 = vmatmul.bf16.gmra.mxu0 %v745
    %v2556 = vpop.f32.mrf.mxu0
    %v2557 = vadd.f32 %v2544, %v2556
    %v2558 = vpop.f32.mrf.mxu0
    %2559 = vdwg.mxu0
    %2560 = vmatpush.bf16.msra.mxu0 %v1849
    %2561 = vmatpush.bf16.msra.mxu0 %v1841
    %2562 = vmatpush.bf16.msra.mxu0 %v1833
    %2563 = vmatpush.bf16.msra.mxu0 %v1825
    %2564 = vmatpush.bf16.msra.mxu0 %v1817
    %2565 = vmatpush.bf16.msra.mxu0 %v1809
    %2566 = vmatpush.bf16.msra.mxu0 %v1801
    %2567 = vmatpush.bf16.msra.mxu0 %v1793
    %2568 = vmatmul.bf16.gmra.mxu0 %v742
    %v2569 = vpop.f32.mrf.mxu0
    %v2570 = vadd.f32 %v1009, %v2569
    %v2571 = vpop.f32.mrf.mxu0
    %2572 = vdwg.mxu0
    %2573 = vmatpush.bf16.msra.mxu0 %v1913
    %2574 = vmatpush.bf16.msra.mxu0 %v1905
    %2575 = vmatpush.bf16.msra.mxu0 %v1897
    %2576 = vmatpush.bf16.msra.mxu0 %v1889
    %2577 = vmatpush.bf16.msra.mxu0 %v1881
    %2578 = vmatpush.bf16.msra.mxu0 %v1873
    %2579 = vmatpush.bf16.msra.mxu0 %v1865
    %2580 = vmatpush.bf16.msra.mxu0 %v1857
    %2581 = vmatmul.bf16.gmra.mxu0 %v743
    %v2582 = vpop.f32.mrf.mxu0
    %v2583 = vadd.f32 %v2570, %v2582
    %v2584 = vpop.f32.mrf.mxu0
    %2585 = vdwg.mxu0
    %2586 = vmatpush.bf16.msra.mxu0 %v1977
    %2587 = vmatpush.bf16.msra.mxu0 %v1969
    %2588 = vmatpush.bf16.msra.mxu0 %v1961
    %2589 = vmatpush.bf16.msra.mxu0 %v1953
    %2590 = vmatpush.bf16.msra.mxu0 %v1945
    %2591 = vmatpush.bf16.msra.mxu0 %v1937
    %2592 = vmatpush.bf16.msra.mxu0 %v1929
    %2593 = vmatpush.bf16.msra.mxu0 %v1921
    %2594 = vmatmul.bf16.gmra.mxu0 %v744
    %v2595 = vpop.f32.mrf.mxu0
    %v2596 = vadd.f32 %v2583, %v2595
    %v2597 = vpop.f32.mrf.mxu0
    %2598 = vdwg.mxu0
    %2599 = vmatpush.bf16.msra.mxu0 %v2041
    %2600 = vmatpush.bf16.msra.mxu0 %v2033
    %2601 = vmatpush.bf16.msra.mxu0 %v2025
    %2602 = vmatpush.bf16.msra.mxu0 %v2017
    %2603 = vmatpush.bf16.msra.mxu0 %v2009
    %2604 = vmatpush.bf16.msra.mxu0 %v2001
    %2605 = vmatpush.bf16.msra.mxu0 %v1993
    %2606 = vmatpush.bf16.msra.mxu0 %v1985
    %2607 = vmatmul.bf16.gmra.mxu0 %v745
    %v2608 = vpop.f32.mrf.mxu0
    %v2609 = vadd.f32 %v2596, %v2608
    %v2610 = vpop.f32.mrf.mxu0
    %2611 = vdwg.mxu0
    %2612 = vmatpush.bf16.msra.mxu0 %v1850
    %2613 = vmatpush.bf16.msra.mxu0 %v1842
    %2614 = vmatpush.bf16.msra.mxu0 %v1834
    %2615 = vmatpush.bf16.msra.mxu0 %v1826
    %2616 = vmatpush.bf16.msra.mxu0 %v1818
    %2617 = vmatpush.bf16.msra.mxu0 %v1810
    %2618 = vmatpush.bf16.msra.mxu0 %v1802
    %2619 = vmatpush.bf16.msra.mxu0 %v1794
    %2620 = vmatmul.bf16.gmra.mxu0 %v742
    %v2621 = vpop.f32.mrf.mxu0
    %v2622 = vadd.f32 %v1010, %v2621
    %v2623 = vpop.f32.mrf.mxu0
    %2624 = vdwg.mxu0
    %2625 = vmatpush.bf16.msra.mxu0 %v1914
    %2626 = vmatpush.bf16.msra.mxu0 %v1906
    %2627 = vmatpush.bf16.msra.mxu0 %v1898
    %2628 = vmatpush.bf16.msra.mxu0 %v1890
    %2629 = vmatpush.bf16.msra.mxu0 %v1882
    %2630 = vmatpush.bf16.msra.mxu0 %v1874
    %2631 = vmatpush.bf16.msra.mxu0 %v1866
    %2632 = vmatpush.bf16.msra.mxu0 %v1858
    %2633 = vmatmul.bf16.gmra.mxu0 %v743
    %v2634 = vpop.f32.mrf.mxu0
    %v2635 = vadd.f32 %v2622, %v2634
    %v2636 = vpop.f32.mrf.mxu0
    %2637 = vdwg.mxu0
    %2638 = vmatpush.bf16.msra.mxu0 %v1978
    %2639 = vmatpush.bf16.msra.mxu0 %v1970
    %2640 = vmatpush.bf16.msra.mxu0 %v1962
    %2641 = vmatpush.bf16.msra.mxu0 %v1954
    %2642 = vmatpush.bf16.msra.mxu0 %v1946
    %2643 = vmatpush.bf16.msra.mxu0 %v1938
    %2644 = vmatpush.bf16.msra.mxu0 %v1930
    %2645 = vmatpush.bf16.msra.mxu0 %v1922
    %2646 = vmatmul.bf16.gmra.mxu0 %v744
    %v2647 = vpop.f32.mrf.mxu0
    %v2648 = vadd.f32 %v2635, %v2647
    %v2649 = vpop.f32.mrf.mxu0
    %2650 = vdwg.mxu0
    %2651 = vmatpush.bf16.msra.mxu0 %v2042
    %2652 = vmatpush.bf16.msra.mxu0 %v2034
    %2653 = vmatpush.bf16.msra.mxu0 %v2026
    %2654 = vmatpush.bf16.msra.mxu0 %v2018
    %2655 = vmatpush.bf16.msra.mxu0 %v2010
    %2656 = vmatpush.bf16.msra.mxu0 %v2002
    %2657 = vmatpush.bf16.msra.mxu0 %v1994
    %2658 = vmatpush.bf16.msra.mxu0 %v1986
    %2659 = vmatmul.bf16.gmra.mxu0 %v745
    %v2660 = vpop.f32.mrf.mxu0
    %v2661 = vadd.f32 %v2648, %v2660
    %v2662 = vpop.f32.mrf.mxu0
    %2663 = vdwg.mxu0
    %2664 = vmatpush.bf16.msra.mxu0 %v1851
    %2665 = vmatpush.bf16.msra.mxu0 %v1843
    %2666 = vmatpush.bf16.msra.mxu0 %v1835
    %2667 = vmatpush.bf16.msra.mxu0 %v1827
    %2668 = vmatpush.bf16.msra.mxu0 %v1819
    %2669 = vmatpush.bf16.msra.mxu0 %v1811
    %2670 = vmatpush.bf16.msra.mxu0 %v1803
    %2671 = vmatpush.bf16.msra.mxu0 %v1795
    %2672 = vmatmul.bf16.gmra.mxu0 %v742
    %v2673 = vpop.f32.mrf.mxu0
    %v2674 = vadd.f32 %v1011, %v2673
    %v2675 = vpop.f32.mrf.mxu0
    %2676 = vdwg.mxu0
    %2677 = vmatpush.bf16.msra.mxu0 %v1915
    %2678 = vmatpush.bf16.msra.mxu0 %v1907
    %2679 = vmatpush.bf16.msra.mxu0 %v1899
    %2680 = vmatpush.bf16.msra.mxu0 %v1891
    %2681 = vmatpush.bf16.msra.mxu0 %v1883
    %2682 = vmatpush.bf16.msra.mxu0 %v1875
    %2683 = vmatpush.bf16.msra.mxu0 %v1867
    %2684 = vmatpush.bf16.msra.mxu0 %v1859
    %2685 = vmatmul.bf16.gmra.mxu0 %v743
    %v2686 = vpop.f32.mrf.mxu0
    %v2687 = vadd.f32 %v2674, %v2686
    %v2688 = vpop.f32.mrf.mxu0
    %2689 = vdwg.mxu0
    %2690 = vmatpush.bf16.msra.mxu0 %v1979
    %2691 = vmatpush.bf16.msra.mxu0 %v1971
    %2692 = vmatpush.bf16.msra.mxu0 %v1963
    %2693 = vmatpush.bf16.msra.mxu0 %v1955
    %2694 = vmatpush.bf16.msra.mxu0 %v1947
    %2695 = vmatpush.bf16.msra.mxu0 %v1939
    %2696 = vmatpush.bf16.msra.mxu0 %v1931
    %2697 = vmatpush.bf16.msra.mxu0 %v1923
    %2698 = vmatmul.bf16.gmra.mxu0 %v744
    %v2699 = vpop.f32.mrf.mxu0
    %v2700 = vadd.f32 %v2687, %v2699
    %v2701 = vpop.f32.mrf.mxu0
    %2702 = vdwg.mxu0
    %2703 = vmatpush.bf16.msra.mxu0 %v2043
    %2704 = vmatpush.bf16.msra.mxu0 %v2035
    %2705 = vmatpush.bf16.msra.mxu0 %v2027
    %2706 = vmatpush.bf16.msra.mxu0 %v2019
    %2707 = vmatpush.bf16.msra.mxu0 %v2011
    %2708 = vmatpush.bf16.msra.mxu0 %v2003
    %2709 = vmatpush.bf16.msra.mxu0 %v1995
    %2710 = vmatpush.bf16.msra.mxu0 %v1987
    %2711 = vmatmul.bf16.gmra.mxu0 %v745
    %v2712 = vpop.f32.mrf.mxu0
    %v2713 = vadd.f32 %v2700, %v2712
    %v2714 = vpop.f32.mrf.mxu0
    %2715 = vdwg.mxu0
    %v2716 = vmax.f32 %v2349, 0.0
    %v2717 = vmax.f32 %v2401, 0.0
    %v2718 = vmax.f32 %v2453, 0.0
    %v2719 = vmax.f32 %v2505, 0.0
    %v2720 = vmax.f32 %v2557, 0.0
    %v2721 = vmax.f32 %v2609, 0.0
    %v2722 = vmax.f32 %v2661, 0.0
    %v2723 = vmax.f32 %v2713, 0.0
    %v2724 = vpack.c.bf16 %v2716, %v2716
    %v2725 = vpack.c.bf16 %v2717, %v2717
    %v2726 = vpack.c.bf16 %v2718, %v2718
    %v2727 = vpack.c.bf16 %v2719, %v2719
    %v2728 = vpack.c.bf16 %v2720, %v2720
    %v2729 = vpack.c.bf16 %v2721, %v2721
    %v2730 = vpack.c.bf16 %v2722, %v2722
    %v2731 = vpack.c.bf16 %v2723, %v2723
    %v2732 = vld [vmem:[#allocation13] sm:$0xff]
    %v2733 = vld [vmem:[#allocation13 + $0x8] sm:$0xff]
    %v2734 = vld [vmem:[#allocation13 + $0x10] sm:$0xff]
    %v2735 = vld [vmem:[#allocation13 + $0x18] sm:$0xff]
    %v2736 = vld [vmem:[#allocation13 + $0x20] sm:$0xff]
    %v2737 = vld [vmem:[#allocation13 + $0x28] sm:$0xff]
    %v2738 = vld [vmem:[#allocation13 + $0x30] sm:$0xff]
    %v2739 = vld [vmem:[#allocation13 + $0x38] sm:$0xff]
    %v2740 = vld [vmem:[#allocation13 + $0x40] sm:$0xff]
    %v2741 = vld [vmem:[#allocation13 + $0x48] sm:$0xff]
    %v2742 = vld [vmem:[#allocation13 + $0x50] sm:$0xff]
    %v2743 = vld [vmem:[#allocation13 + $0x58] sm:$0xff]
    %v2744 = vld [vmem:[#allocation13 + $0x60] sm:$0xff]
    %v2745 = vld [vmem:[#allocation13 + $0x68] sm:$0xff]
    %v2746 = vld [vmem:[#allocation13 + $0x70] sm:$0xff]
    %v2747 = vld [vmem:[#allocation13 + $0x78] sm:$0xff]
    %v2748 = vld [vmem:[#allocation13 + $0x80] sm:$0xff]
    %v2749 = vld [vmem:[#allocation13 + $0x88] sm:$0xff]
    %v2750 = vld [vmem:[#allocation13 + $0x90] sm:$0xff]
    %v2751 = vld [vmem:[#allocation13 + $0x98] sm:$0xff]
    %v2752 = vld [vmem:[#allocation13 + $0xa0] sm:$0xff]
    %v2753 = vld [vmem:[#allocation13 + $0xa8] sm:$0xff]
    %v2754 = vld [vmem:[#allocation13 + $0xb0] sm:$0xff]
    %v2755 = vld [vmem:[#allocation13 + $0xb8] sm:$0xff]
    %v2756 = vld [vmem:[#allocation13 + $0xc0] sm:$0xff]
    %v2757 = vld [vmem:[#allocation13 + $0xc8] sm:$0xff]
    %v2758 = vld [vmem:[#allocation13 + $0xd0] sm:$0xff]
    %v2759 = vld [vmem:[#allocation13 + $0xd8] sm:$0xff]
    %v2760 = vld [vmem:[#allocation13 + $0xe0] sm:$0xff]
    %v2761 = vld [vmem:[#allocation13 + $0xe8] sm:$0xff]
    %v2762 = vld [vmem:[#allocation13 + $0xf0] sm:$0xff]
    %v2763 = vld [vmem:[#allocation13 + $0xf8] sm:$0xff]
    %v2764 = vld [vmem:[#allocation13 + $0x100] sm:$0xff]
    %v2765 = vld [vmem:[#allocation13 + $0x108] sm:$0xff]
    %v2766 = vld [vmem:[#allocation13 + $0x110] sm:$0xff]
    %v2767 = vld [vmem:[#allocation13 + $0x118] sm:$0xff]
    %v2768 = vld [vmem:[#allocation13 + $0x120] sm:$0xff]
    %v2769 = vld [vmem:[#allocation13 + $0x128] sm:$0xff]
    %v2770 = vld [vmem:[#allocation13 + $0x130] sm:$0xff]
    %v2771 = vld [vmem:[#allocation13 + $0x138] sm:$0xff]
    %v2772 = vld [vmem:[#allocation13 + $0x140] sm:$0xff]
    %v2773 = vld [vmem:[#allocation13 + $0x148] sm:$0xff]
    %v2774 = vld [vmem:[#allocation13 + $0x150] sm:$0xff]
    %v2775 = vld [vmem:[#allocation13 + $0x158] sm:$0xff]
    %v2776 = vld [vmem:[#allocation13 + $0x160] sm:$0xff]
    %v2777 = vld [vmem:[#allocation13 + $0x168] sm:$0xff]
    %v2778 = vld [vmem:[#allocation13 + $0x170] sm:$0xff]
    %v2779 = vld [vmem:[#allocation13 + $0x178] sm:$0xff]
    %v2780 = vld [vmem:[#allocation13 + $0x180] sm:$0xff]
    %v2781 = vld [vmem:[#allocation13 + $0x188] sm:$0xff]
    %v2782 = vld [vmem:[#allocation13 + $0x190] sm:$0xff]
    %v2783 = vld [vmem:[#allocation13 + $0x198] sm:$0xff]
    %v2784 = vld [vmem:[#allocation13 + $0x1a0] sm:$0xff]
    %v2785 = vld [vmem:[#allocation13 + $0x1a8] sm:$0xff]
    %v2786 = vld [vmem:[#allocation13 + $0x1b0] sm:$0xff]
    %v2787 = vld [vmem:[#allocation13 + $0x1b8] sm:$0xff]
    %v2788 = vld [vmem:[#allocation13 + $0x1c0] sm:$0xff]
    %v2789 = vld [vmem:[#allocation13 + $0x1c8] sm:$0xff]
    %v2790 = vld [vmem:[#allocation13 + $0x1d0] sm:$0xff]
    %v2791 = vld [vmem:[#allocation13 + $0x1d8] sm:$0xff]
    %v2792 = vld [vmem:[#allocation13 + $0x1e0] sm:$0xff]
    %v2793 = vld [vmem:[#allocation13 + $0x1e8] sm:$0xff]
    %v2794 = vld [vmem:[#allocation13 + $0x1f0] sm:$0xff]
    %v2795 = vld [vmem:[#allocation13 + $0x1f8] sm:$0xff]
    %v2796 = vld [vmem:[#allocation13 + $0x200] sm:$0xff]
    %v2797 = vld [vmem:[#allocation13 + $0x208] sm:$0xff]
    %v2798 = vld [vmem:[#allocation13 + $0x210] sm:$0xff]
    %v2799 = vld [vmem:[#allocation13 + $0x218] sm:$0xff]
    %v2800 = vld [vmem:[#allocation13 + $0x220] sm:$0xff]
    %v2801 = vld [vmem:[#allocation13 + $0x228] sm:$0xff]
    %v2802 = vld [vmem:[#allocation13 + $0x230] sm:$0xff]
    %v2803 = vld [vmem:[#allocation13 + $0x238] sm:$0xff]
    %v2804 = vld [vmem:[#allocation13 + $0x240] sm:$0xff]
    %v2805 = vld [vmem:[#allocation13 + $0x248] sm:$0xff]
    %v2806 = vld [vmem:[#allocation13 + $0x250] sm:$0xff]
    %v2807 = vld [vmem:[#allocation13 + $0x258] sm:$0xff]
    %v2808 = vld [vmem:[#allocation13 + $0x260] sm:$0xff]
    %v2809 = vld [vmem:[#allocation13 + $0x268] sm:$0xff]
    %v2810 = vld [vmem:[#allocation13 + $0x270] sm:$0xff]
    %v2811 = vld [vmem:[#allocation13 + $0x278] sm:$0xff]
    %v2812 = vld [vmem:[#allocation13 + $0x280] sm:$0xff]
    %v2813 = vld [vmem:[#allocation13 + $0x288] sm:$0xff]
    %v2814 = vld [vmem:[#allocation13 + $0x290] sm:$0xff]
    %v2815 = vld [vmem:[#allocation13 + $0x298] sm:$0xff]
    %v2816 = vld [vmem:[#allocation13 + $0x2a0] sm:$0xff]
    %v2817 = vld [vmem:[#allocation13 + $0x2a8] sm:$0xff]
    %v2818 = vld [vmem:[#allocation13 + $0x2b0] sm:$0xff]
    %v2819 = vld [vmem:[#allocation13 + $0x2b8] sm:$0xff]
    %v2820 = vld [vmem:[#allocation13 + $0x2c0] sm:$0xff]
    %v2821 = vld [vmem:[#allocation13 + $0x2c8] sm:$0xff]
    %v2822 = vld [vmem:[#allocation13 + $0x2d0] sm:$0xff]
    %v2823 = vld [vmem:[#allocation13 + $0x2d8] sm:$0xff]
    %v2824 = vld [vmem:[#allocation13 + $0x2e0] sm:$0xff]
    %v2825 = vld [vmem:[#allocation13 + $0x2e8] sm:$0xff]
    %v2826 = vld [vmem:[#allocation13 + $0x2f0] sm:$0xff]
    %v2827 = vld [vmem:[#allocation13 + $0x2f8] sm:$0xff]
    %v2828 = vld [vmem:[#allocation13 + $0x300] sm:$0xff]
    %v2829 = vld [vmem:[#allocation13 + $0x308] sm:$0xff]
    %v2830 = vld [vmem:[#allocation13 + $0x310] sm:$0xff]
    %v2831 = vld [vmem:[#allocation13 + $0x318] sm:$0xff]
    %v2832 = vld [vmem:[#allocation13 + $0x320] sm:$0xff]
    %v2833 = vld [vmem:[#allocation13 + $0x328] sm:$0xff]
    %v2834 = vld [vmem:[#allocation13 + $0x330] sm:$0xff]
    %v2835 = vld [vmem:[#allocation13 + $0x338] sm:$0xff]
    %v2836 = vld [vmem:[#allocation13 + $0x340] sm:$0xff]
    %v2837 = vld [vmem:[#allocation13 + $0x348] sm:$0xff]
    %v2838 = vld [vmem:[#allocation13 + $0x350] sm:$0xff]
    %v2839 = vld [vmem:[#allocation13 + $0x358] sm:$0xff]
    %v2840 = vld [vmem:[#allocation13 + $0x360] sm:$0xff]
    %v2841 = vld [vmem:[#allocation13 + $0x368] sm:$0xff]
    %v2842 = vld [vmem:[#allocation13 + $0x370] sm:$0xff]
    %v2843 = vld [vmem:[#allocation13 + $0x378] sm:$0xff]
    %v2844 = vld [vmem:[#allocation13 + $0x380] sm:$0xff]
    %v2845 = vld [vmem:[#allocation13 + $0x388] sm:$0xff]
    %v2846 = vld [vmem:[#allocation13 + $0x390] sm:$0xff]
    %v2847 = vld [vmem:[#allocation13 + $0x398] sm:$0xff]
    %v2848 = vld [vmem:[#allocation13 + $0x3a0] sm:$0xff]
    %v2849 = vld [vmem:[#allocation13 + $0x3a8] sm:$0xff]
    %v2850 = vld [vmem:[#allocation13 + $0x3b0] sm:$0xff]
    %v2851 = vld [vmem:[#allocation13 + $0x3b8] sm:$0xff]
    %v2852 = vld [vmem:[#allocation13 + $0x3c0] sm:$0xff]
    %v2853 = vld [vmem:[#allocation13 + $0x3c8] sm:$0xff]
    %v2854 = vld [vmem:[#allocation13 + $0x3d0] sm:$0xff]
    %v2855 = vld [vmem:[#allocation13 + $0x3d8] sm:$0xff]
    %v2856 = vld [vmem:[#allocation13 + $0x3e0] sm:$0xff]
    %v2857 = vld [vmem:[#allocation13 + $0x3e8] sm:$0xff]
    %v2858 = vld [vmem:[#allocation13 + $0x3f0] sm:$0xff]
    %v2859 = vld [vmem:[#allocation13 + $0x3f8] sm:$0xff]
    %v2860 = vld [vmem:[%s8] sm:$0x3]
    %v2862 = vperm.slane %v2860, 0
    %v2863 = vperm.slane %v2860, 1
    %v2994 = vunpack.c.l.b16 %v2732
    %v2995 = vunpack.c.h.b16 %v2732
    %v2996 = vunpack.c.l.b16 %v2733
    %v2997 = vunpack.c.h.b16 %v2733
    %v2998 = vunpack.c.l.b16 %v2734
    %v2999 = vunpack.c.h.b16 %v2734
    %v3000 = vunpack.c.l.b16 %v2735
    %v3001 = vunpack.c.h.b16 %v2735
    %v3002 = vunpack.c.l.b16 %v2736
    %v3003 = vunpack.c.h.b16 %v2736
    %v3004 = vunpack.c.l.b16 %v2737
    %v3005 = vunpack.c.h.b16 %v2737
    %v3006 = vunpack.c.l.b16 %v2738
    %v3007 = vunpack.c.h.b16 %v2738
    %v3008 = vunpack.c.l.b16 %v2739
    %v3009 = vunpack.c.h.b16 %v2739
    %v3010 = vunpack.c.l.b16 %v2740
    %v3011 = vunpack.c.h.b16 %v2740
    %v3012 = vunpack.c.l.b16 %v2741
    %v3013 = vunpack.c.h.b16 %v2741
    %v3014 = vunpack.c.l.b16 %v2742
    %v3015 = vunpack.c.h.b16 %v2742
    %v3016 = vunpack.c.l.b16 %v2743
    %v3017 = vunpack.c.h.b16 %v2743
    %v3018 = vunpack.c.l.b16 %v2744
    %v3019 = vunpack.c.h.b16 %v2744
    %v3020 = vunpack.c.l.b16 %v2745
    %v3021 = vunpack.c.h.b16 %v2745
    %v3022 = vunpack.c.l.b16 %v2746
    %v3023 = vunpack.c.h.b16 %v2746
    %v3024 = vunpack.c.l.b16 %v2747
    %v3025 = vunpack.c.h.b16 %v2747
    %v3026 = vunpack.c.l.b16 %v2748
    %v3027 = vunpack.c.h.b16 %v2748
    %v3028 = vunpack.c.l.b16 %v2749
    %v3029 = vunpack.c.h.b16 %v2749
    %v3030 = vunpack.c.l.b16 %v2750
    %v3031 = vunpack.c.h.b16 %v2750
    %v3032 = vunpack.c.l.b16 %v2751
    %v3033 = vunpack.c.h.b16 %v2751
    %v3034 = vunpack.c.l.b16 %v2752
    %v3035 = vunpack.c.h.b16 %v2752
    %v3036 = vunpack.c.l.b16 %v2753
    %v3037 = vunpack.c.h.b16 %v2753
    %v3038 = vunpack.c.l.b16 %v2754
    %v3039 = vunpack.c.h.b16 %v2754
    %v3040 = vunpack.c.l.b16 %v2755
    %v3041 = vunpack.c.h.b16 %v2755
    %v3042 = vunpack.c.l.b16 %v2756
    %v3043 = vunpack.c.h.b16 %v2756
    %v3044 = vunpack.c.l.b16 %v2757
    %v3045 = vunpack.c.h.b16 %v2757
    %v3046 = vunpack.c.l.b16 %v2758
    %v3047 = vunpack.c.h.b16 %v2758
    %v3048 = vunpack.c.l.b16 %v2759
    %v3049 = vunpack.c.h.b16 %v2759
    %v3050 = vunpack.c.l.b16 %v2760
    %v3051 = vunpack.c.h.b16 %v2760
    %v3052 = vunpack.c.l.b16 %v2761
    %v3053 = vunpack.c.h.b16 %v2761
    %v3054 = vunpack.c.l.b16 %v2762
    %v3055 = vunpack.c.h.b16 %v2762
    %v3056 = vunpack.c.l.b16 %v2763
    %v3057 = vunpack.c.h.b16 %v2763
    %v3058 = vunpack.c.l.b16 %v2764
    %v3059 = vunpack.c.h.b16 %v2764
    %v3060 = vunpack.c.l.b16 %v2765
    %v3061 = vunpack.c.h.b16 %v2765
    %v3062 = vunpack.c.l.b16 %v2766
    %v3063 = vunpack.c.h.b16 %v2766
    %v3064 = vunpack.c.l.b16 %v2767
    %v3065 = vunpack.c.h.b16 %v2767
    %v3066 = vunpack.c.l.b16 %v2768
    %v3067 = vunpack.c.h.b16 %v2768
    %v3068 = vunpack.c.l.b16 %v2769
    %v3069 = vunpack.c.h.b16 %v2769
    %v3070 = vunpack.c.l.b16 %v2770
    %v3071 = vunpack.c.h.b16 %v2770
    %v3072 = vunpack.c.l.b16 %v2771
    %v3073 = vunpack.c.h.b16 %v2771
    %v3074 = vunpack.c.l.b16 %v2772
    %v3075 = vunpack.c.h.b16 %v2772
    %v3076 = vunpack.c.l.b16 %v2773
    %v3077 = vunpack.c.h.b16 %v2773
    %v3078 = vunpack.c.l.b16 %v2774
    %v3079 = vunpack.c.h.b16 %v2774
    %v3080 = vunpack.c.l.b16 %v2775
    %v3081 = vunpack.c.h.b16 %v2775
    %v3082 = vunpack.c.l.b16 %v2776
    %v3083 = vunpack.c.h.b16 %v2776
    %v3084 = vunpack.c.l.b16 %v2777
    %v3085 = vunpack.c.h.b16 %v2777
    %v3086 = vunpack.c.l.b16 %v2778
    %v3087 = vunpack.c.h.b16 %v2778
    %v3088 = vunpack.c.l.b16 %v2779
    %v3089 = vunpack.c.h.b16 %v2779
    %v3090 = vunpack.c.l.b16 %v2780
    %v3091 = vunpack.c.h.b16 %v2780
    %v3092 = vunpack.c.l.b16 %v2781
    %v3093 = vunpack.c.h.b16 %v2781
    %v3094 = vunpack.c.l.b16 %v2782
    %v3095 = vunpack.c.h.b16 %v2782
    %v3096 = vunpack.c.l.b16 %v2783
    %v3097 = vunpack.c.h.b16 %v2783
    %v3098 = vunpack.c.l.b16 %v2784
    %v3099 = vunpack.c.h.b16 %v2784
    %v3100 = vunpack.c.l.b16 %v2785
    %v3101 = vunpack.c.h.b16 %v2785
    %v3102 = vunpack.c.l.b16 %v2786
    %v3103 = vunpack.c.h.b16 %v2786
    %v3104 = vunpack.c.l.b16 %v2787
    %v3105 = vunpack.c.h.b16 %v2787
    %v3106 = vunpack.c.l.b16 %v2788
    %v3107 = vunpack.c.h.b16 %v2788
    %v3108 = vunpack.c.l.b16 %v2789
    %v3109 = vunpack.c.h.b16 %v2789
    %v3110 = vunpack.c.l.b16 %v2790
    %v3111 = vunpack.c.h.b16 %v2790
    %v3112 = vunpack.c.l.b16 %v2791
    %v3113 = vunpack.c.h.b16 %v2791
    %v3114 = vunpack.c.l.b16 %v2792
    %v3115 = vunpack.c.h.b16 %v2792
    %v3116 = vunpack.c.l.b16 %v2793
    %v3117 = vunpack.c.h.b16 %v2793
    %v3118 = vunpack.c.l.b16 %v2794
    %v3119 = vunpack.c.h.b16 %v2794
    %v3120 = vunpack.c.l.b16 %v2795
    %v3121 = vunpack.c.h.b16 %v2795
    %v3122 = vunpack.c.l.b16 %v2796
    %v3123 = vunpack.c.h.b16 %v2796
    %v3124 = vunpack.c.l.b16 %v2797
    %v3125 = vunpack.c.h.b16 %v2797
    %v3126 = vunpack.c.l.b16 %v2798
    %v3127 = vunpack.c.h.b16 %v2798
    %v3128 = vunpack.c.l.b16 %v2799
    %v3129 = vunpack.c.h.b16 %v2799
    %v3130 = vunpack.c.l.b16 %v2800
    %v3131 = vunpack.c.h.b16 %v2800
    %v3132 = vunpack.c.l.b16 %v2801
    %v3133 = vunpack.c.h.b16 %v2801
    %v3134 = vunpack.c.l.b16 %v2802
    %v3135 = vunpack.c.h.b16 %v2802
    %v3136 = vunpack.c.l.b16 %v2803
    %v3137 = vunpack.c.h.b16 %v2803
    %v3138 = vunpack.c.l.b16 %v2804
    %v3139 = vunpack.c.h.b16 %v2804
    %v3140 = vunpack.c.l.b16 %v2805
    %v3141 = vunpack.c.h.b16 %v2805
    %v3142 = vunpack.c.l.b16 %v2806
    %v3143 = vunpack.c.h.b16 %v2806
    %v3144 = vunpack.c.l.b16 %v2807
    %v3145 = vunpack.c.h.b16 %v2807
    %v3146 = vunpack.c.l.b16 %v2808
    %v3147 = vunpack.c.h.b16 %v2808
    %v3148 = vunpack.c.l.b16 %v2809
    %v3149 = vunpack.c.h.b16 %v2809
    %v3150 = vunpack.c.l.b16 %v2810
    %v3151 = vunpack.c.h.b16 %v2810
    %v3152 = vunpack.c.l.b16 %v2811
    %v3153 = vunpack.c.h.b16 %v2811
    %v3154 = vunpack.c.l.b16 %v2812
    %v3155 = vunpack.c.h.b16 %v2812
    %v3156 = vunpack.c.l.b16 %v2813
    %v3157 = vunpack.c.h.b16 %v2813
    %v3158 = vunpack.c.l.b16 %v2814
    %v3159 = vunpack.c.h.b16 %v2814
    %v3160 = vunpack.c.l.b16 %v2815
    %v3161 = vunpack.c.h.b16 %v2815
    %v3162 = vunpack.c.l.b16 %v2816
    %v3163 = vunpack.c.h.b16 %v2816
    %v3164 = vunpack.c.l.b16 %v2817
    %v3165 = vunpack.c.h.b16 %v2817
    %v3166 = vunpack.c.l.b16 %v2818
    %v3167 = vunpack.c.h.b16 %v2818
    %v3168 = vunpack.c.l.b16 %v2819
    %v3169 = vunpack.c.h.b16 %v2819
    %v3170 = vunpack.c.l.b16 %v2820
    %v3171 = vunpack.c.h.b16 %v2820
    %v3172 = vunpack.c.l.b16 %v2821
    %v3173 = vunpack.c.h.b16 %v2821
    %v3174 = vunpack.c.l.b16 %v2822
    %v3175 = vunpack.c.h.b16 %v2822
    %v3176 = vunpack.c.l.b16 %v2823
    %v3177 = vunpack.c.h.b16 %v2823
    %v3178 = vunpack.c.l.b16 %v2824
    %v3179 = vunpack.c.h.b16 %v2824
    %v3180 = vunpack.c.l.b16 %v2825
    %v3181 = vunpack.c.h.b16 %v2825
    %v3182 = vunpack.c.l.b16 %v2826
    %v3183 = vunpack.c.h.b16 %v2826
    %v3184 = vunpack.c.l.b16 %v2827
    %v3185 = vunpack.c.h.b16 %v2827
    %v3186 = vunpack.c.l.b16 %v2828
    %v3187 = vunpack.c.h.b16 %v2828
    %v3188 = vunpack.c.l.b16 %v2829
    %v3189 = vunpack.c.h.b16 %v2829
    %v3190 = vunpack.c.l.b16 %v2830
    %v3191 = vunpack.c.h.b16 %v2830
    %v3192 = vunpack.c.l.b16 %v2831
    %v3193 = vunpack.c.h.b16 %v2831
    %v3194 = vunpack.c.l.b16 %v2832
    %v3195 = vunpack.c.h.b16 %v2832
    %v3196 = vunpack.c.l.b16 %v2833
    %v3197 = vunpack.c.h.b16 %v2833
    %v3198 = vunpack.c.l.b16 %v2834
    %v3199 = vunpack.c.h.b16 %v2834
    %v3200 = vunpack.c.l.b16 %v2835
    %v3201 = vunpack.c.h.b16 %v2835
    %v3202 = vunpack.c.l.b16 %v2836
    %v3203 = vunpack.c.h.b16 %v2836
    %v3204 = vunpack.c.l.b16 %v2837
    %v3205 = vunpack.c.h.b16 %v2837
    %v3206 = vunpack.c.l.b16 %v2838
    %v3207 = vunpack.c.h.b16 %v2838
    %v3208 = vunpack.c.l.b16 %v2839
    %v3209 = vunpack.c.h.b16 %v2839
    %v3210 = vunpack.c.l.b16 %v2840
    %v3211 = vunpack.c.h.b16 %v2840
    %v3212 = vunpack.c.l.b16 %v2841
    %v3213 = vunpack.c.h.b16 %v2841
    %v3214 = vunpack.c.l.b16 %v2842
    %v3215 = vunpack.c.h.b16 %v2842
    %v3216 = vunpack.c.l.b16 %v2843
    %v3217 = vunpack.c.h.b16 %v2843
    %v3218 = vunpack.c.l.b16 %v2844
    %v3219 = vunpack.c.h.b16 %v2844
    %v3220 = vunpack.c.l.b16 %v2845
    %v3221 = vunpack.c.h.b16 %v2845
    %v3222 = vunpack.c.l.b16 %v2846
    %v3223 = vunpack.c.h.b16 %v2846
    %v3224 = vunpack.c.l.b16 %v2847
    %v3225 = vunpack.c.h.b16 %v2847
    %v3226 = vunpack.c.l.b16 %v2848
    %v3227 = vunpack.c.h.b16 %v2848
    %v3228 = vunpack.c.l.b16 %v2849
    %v3229 = vunpack.c.h.b16 %v2849
    %v3230 = vunpack.c.l.b16 %v2850
    %v3231 = vunpack.c.h.b16 %v2850
    %v3232 = vunpack.c.l.b16 %v2851
    %v3233 = vunpack.c.h.b16 %v2851
    %v3234 = vunpack.c.l.b16 %v2852
    %v3235 = vunpack.c.h.b16 %v2852
    %v3236 = vunpack.c.l.b16 %v2853
    %v3237 = vunpack.c.h.b16 %v2853
    %v3238 = vunpack.c.l.b16 %v2854
    %v3239 = vunpack.c.h.b16 %v2854
    %v3240 = vunpack.c.l.b16 %v2855
    %v3241 = vunpack.c.h.b16 %v2855
    %v3242 = vunpack.c.l.b16 %v2856
    %v3243 = vunpack.c.h.b16 %v2856
    %v3244 = vunpack.c.l.b16 %v2857
    %v3245 = vunpack.c.h.b16 %v2857
    %v3246 = vunpack.c.l.b16 %v2858
    %v3247 = vunpack.c.h.b16 %v2858
    %v3248 = vunpack.c.l.b16 %v2859
    %v3249 = vunpack.c.h.b16 %v2859
    %v3250 = vpack.c.b16 %v2996, %v2994
    %v3251 = vpack.c.b16 %v2997, %v2995
    %v3252 = vpack.c.b16 %v3000, %v2998
    %v3253 = vpack.c.b16 %v3001, %v2999
    %v3254 = vpack.c.b16 %v3004, %v3002
    %v3255 = vpack.c.b16 %v3005, %v3003
    %v3256 = vpack.c.b16 %v3008, %v3006
    %v3257 = vpack.c.b16 %v3009, %v3007
    %v3258 = vpack.c.b16 %v3012, %v3010
    %v3259 = vpack.c.b16 %v3013, %v3011
    %v3260 = vpack.c.b16 %v3016, %v3014
    %v3261 = vpack.c.b16 %v3017, %v3015
    %v3262 = vpack.c.b16 %v3020, %v3018
    %v3263 = vpack.c.b16 %v3021, %v3019
    %v3264 = vpack.c.b16 %v3024, %v3022
    %v3265 = vpack.c.b16 %v3025, %v3023
    %v3266 = vpack.c.b16 %v3028, %v3026
    %v3267 = vpack.c.b16 %v3029, %v3027
    %v3268 = vpack.c.b16 %v3032, %v3030
    %v3269 = vpack.c.b16 %v3033, %v3031
    %v3270 = vpack.c.b16 %v3036, %v3034
    %v3271 = vpack.c.b16 %v3037, %v3035
    %v3272 = vpack.c.b16 %v3040, %v3038
    %v3273 = vpack.c.b16 %v3041, %v3039
    %v3274 = vpack.c.b16 %v3044, %v3042
    %v3275 = vpack.c.b16 %v3045, %v3043
    %v3276 = vpack.c.b16 %v3048, %v3046
    %v3277 = vpack.c.b16 %v3049, %v3047
    %v3278 = vpack.c.b16 %v3052, %v3050
    %v3279 = vpack.c.b16 %v3053, %v3051
    %v3280 = vpack.c.b16 %v3056, %v3054
    %v3281 = vpack.c.b16 %v3057, %v3055
    %v3282 = vpack.c.b16 %v3060, %v3058
    %v3283 = vpack.c.b16 %v3061, %v3059
    %v3284 = vpack.c.b16 %v3064, %v3062
    %v3285 = vpack.c.b16 %v3065, %v3063
    %v3286 = vpack.c.b16 %v3068, %v3066
    %v3287 = vpack.c.b16 %v3069, %v3067
    %v3288 = vpack.c.b16 %v3072, %v3070
    %v3289 = vpack.c.b16 %v3073, %v3071
    %v3290 = vpack.c.b16 %v3076, %v3074
    %v3291 = vpack.c.b16 %v3077, %v3075
    %v3292 = vpack.c.b16 %v3080, %v3078
    %v3293 = vpack.c.b16 %v3081, %v3079
    %v3294 = vpack.c.b16 %v3084, %v3082
    %v3295 = vpack.c.b16 %v3085, %v3083
    %v3296 = vpack.c.b16 %v3088, %v3086
    %v3297 = vpack.c.b16 %v3089, %v3087
    %v3298 = vpack.c.b16 %v3092, %v3090
    %v3299 = vpack.c.b16 %v3093, %v3091
    %v3300 = vpack.c.b16 %v3096, %v3094
    %v3301 = vpack.c.b16 %v3097, %v3095
    %v3302 = vpack.c.b16 %v3100, %v3098
    %v3303 = vpack.c.b16 %v3101, %v3099
    %v3304 = vpack.c.b16 %v3104, %v3102
    %v3305 = vpack.c.b16 %v3105, %v3103
    %v3306 = vpack.c.b16 %v3108, %v3106
    %v3307 = vpack.c.b16 %v3109, %v3107
    %v3308 = vpack.c.b16 %v3112, %v3110
    %v3309 = vpack.c.b16 %v3113, %v3111
    %v3310 = vpack.c.b16 %v3116, %v3114
    %v3311 = vpack.c.b16 %v3117, %v3115
    %v3312 = vpack.c.b16 %v3120, %v3118
    %v3313 = vpack.c.b16 %v3121, %v3119
    %v3314 = vpack.c.b16 %v3124, %v3122
    %v3315 = vpack.c.b16 %v3125, %v3123
    %v3316 = vpack.c.b16 %v3128, %v3126
    %v3317 = vpack.c.b16 %v3129, %v3127
    %v3318 = vpack.c.b16 %v3132, %v3130
    %v3319 = vpack.c.b16 %v3133, %v3131
    %v3320 = vpack.c.b16 %v3136, %v3134
    %v3321 = vpack.c.b16 %v3137, %v3135
    %v3322 = vpack.c.b16 %v3140, %v3138
    %v3323 = vpack.c.b16 %v3141, %v3139
    %v3324 = vpack.c.b16 %v3144, %v3142
    %v3325 = vpack.c.b16 %v3145, %v3143
    %v3326 = vpack.c.b16 %v3148, %v3146
    %v3327 = vpack.c.b16 %v3149, %v3147
    %v3328 = vpack.c.b16 %v3152, %v3150
    %v3329 = vpack.c.b16 %v3153, %v3151
    %v3330 = vpack.c.b16 %v3156, %v3154
    %v3331 = vpack.c.b16 %v3157, %v3155
    %v3332 = vpack.c.b16 %v3160, %v3158
    %v3333 = vpack.c.b16 %v3161, %v3159
    %v3334 = vpack.c.b16 %v3164, %v3162
    %v3335 = vpack.c.b16 %v3165, %v3163
    %v3336 = vpack.c.b16 %v3168, %v3166
    %v3337 = vpack.c.b16 %v3169, %v3167
    %v3338 = vpack.c.b16 %v3172, %v3170
    %v3339 = vpack.c.b16 %v3173, %v3171
    %v3340 = vpack.c.b16 %v3176, %v3174
    %v3341 = vpack.c.b16 %v3177, %v3175
    %v3342 = vpack.c.b16 %v3180, %v3178
    %v3343 = vpack.c.b16 %v3181, %v3179
    %v3344 = vpack.c.b16 %v3184, %v3182
    %v3345 = vpack.c.b16 %v3185, %v3183
    %v3346 = vpack.c.b16 %v3188, %v3186
    %v3347 = vpack.c.b16 %v3189, %v3187
    %v3348 = vpack.c.b16 %v3192, %v3190
    %v3349 = vpack.c.b16 %v3193, %v3191
    %v3350 = vpack.c.b16 %v3196, %v3194
    %v3351 = vpack.c.b16 %v3197, %v3195
    %v3352 = vpack.c.b16 %v3200, %v3198
    %v3353 = vpack.c.b16 %v3201, %v3199
    %v3354 = vpack.c.b16 %v3204, %v3202
    %v3355 = vpack.c.b16 %v3205, %v3203
    %v3356 = vpack.c.b16 %v3208, %v3206
    %v3357 = vpack.c.b16 %v3209, %v3207
    %v3358 = vpack.c.b16 %v3212, %v3210
    %v3359 = vpack.c.b16 %v3213, %v3211
    %v3360 = vpack.c.b16 %v3216, %v3214
    %v3361 = vpack.c.b16 %v3217, %v3215
    %v3362 = vpack.c.b16 %v3220, %v3218
    %v3363 = vpack.c.b16 %v3221, %v3219
    %v3364 = vpack.c.b16 %v3224, %v3222
    %v3365 = vpack.c.b16 %v3225, %v3223
    %v3366 = vpack.c.b16 %v3228, %v3226
    %v3367 = vpack.c.b16 %v3229, %v3227
    %v3368 = vpack.c.b16 %v3232, %v3230
    %v3369 = vpack.c.b16 %v3233, %v3231
    %v3370 = vpack.c.b16 %v3236, %v3234
    %v3371 = vpack.c.b16 %v3237, %v3235
    %v3372 = vpack.c.b16 %v3240, %v3238
    %v3373 = vpack.c.b16 %v3241, %v3239
    %v3374 = vpack.c.b16 %v3244, %v3242
    %v3375 = vpack.c.b16 %v3245, %v3243
    %v3376 = vpack.c.b16 %v3248, %v3246
    %v3377 = vpack.c.b16 %v3249, %v3247
    %3506 = vmatpush.bf16.msra.mxu0 %v3264
    %3507 = vmatpush.bf16.msra.mxu0 %v3262
    %3508 = vmatpush.bf16.msra.mxu0 %v3260
    %3509 = vmatpush.bf16.msra.mxu0 %v3258
    %3510 = vmatpush.bf16.msra.mxu0 %v3256
    %3511 = vmatpush.bf16.msra.mxu0 %v3254
    %3512 = vmatpush.bf16.msra.mxu0 %v3252
    %3513 = vmatpush.bf16.msra.mxu0 %v3250
    %3514 = vmatmul.bf16.gmra.mxu0 %v2724
    %v3515 = vpop.f32.mrf.mxu0
    %v3516 = vadd.f32 %v2862, %v3515
    %v3517 = vpop.f32.mrf.mxu0
    %3518 = vdwg.mxu0
    %3519 = vmatpush.bf16.msra.mxu0 %v3280
    %3520 = vmatpush.bf16.msra.mxu0 %v3278
    %3521 = vmatpush.bf16.msra.mxu0 %v3276
    %3522 = vmatpush.bf16.msra.mxu0 %v3274
    %3523 = vmatpush.bf16.msra.mxu0 %v3272
    %3524 = vmatpush.bf16.msra.mxu0 %v3270
    %3525 = vmatpush.bf16.msra.mxu0 %v3268
    %3526 = vmatpush.bf16.msra.mxu0 %v3266
    %3527 = vmatmul.bf16.gmra.mxu0 %v2725
    %v3528 = vpop.f32.mrf.mxu0
    %v3529 = vadd.f32 %v3516, %v3528
    %v3530 = vpop.f32.mrf.mxu0
    %3531 = vdwg.mxu0
    %3532 = vmatpush.bf16.msra.mxu0 %v3296
    %3533 = vmatpush.bf16.msra.mxu0 %v3294
    %3534 = vmatpush.bf16.msra.mxu0 %v3292
    %3535 = vmatpush.bf16.msra.mxu0 %v3290
    %3536 = vmatpush.bf16.msra.mxu0 %v3288
    %3537 = vmatpush.bf16.msra.mxu0 %v3286
    %3538 = vmatpush.bf16.msra.mxu0 %v3284
    %3539 = vmatpush.bf16.msra.mxu0 %v3282
    %3540 = vmatmul.bf16.gmra.mxu0 %v2726
    %v3541 = vpop.f32.mrf.mxu0
    %v3542 = vadd.f32 %v3529, %v3541
    %v3543 = vpop.f32.mrf.mxu0
    %3544 = vdwg.mxu0
    %3545 = vmatpush.bf16.msra.mxu0 %v3312
    %3546 = vmatpush.bf16.msra.mxu0 %v3310
    %3547 = vmatpush.bf16.msra.mxu0 %v3308
    %3548 = vmatpush.bf16.msra.mxu0 %v3306
    %3549 = vmatpush.bf16.msra.mxu0 %v3304
    %3550 = vmatpush.bf16.msra.mxu0 %v3302
    %3551 = vmatpush.bf16.msra.mxu0 %v3300
    %3552 = vmatpush.bf16.msra.mxu0 %v3298
    %3553 = vmatmul.bf16.gmra.mxu0 %v2727
    %v3554 = vpop.f32.mrf.mxu0
    %v3555 = vadd.f32 %v3542, %v3554
    %v3556 = vpop.f32.mrf.mxu0
    %3557 = vdwg.mxu0
    %3558 = vmatpush.bf16.msra.mxu0 %v3328
    %3559 = vmatpush.bf16.msra.mxu0 %v3326
    %3560 = vmatpush.bf16.msra.mxu0 %v3324
    %3561 = vmatpush.bf16.msra.mxu0 %v3322
    %3562 = vmatpush.bf16.msra.mxu0 %v3320
    %3563 = vmatpush.bf16.msra.mxu0 %v3318
    %3564 = vmatpush.bf16.msra.mxu0 %v3316
    %3565 = vmatpush.bf16.msra.mxu0 %v3314
    %3566 = vmatmul.bf16.gmra.mxu0 %v2728
    %v3567 = vpop.f32.mrf.mxu0
    %v3568 = vadd.f32 %v3555, %v3567
    %v3569 = vpop.f32.mrf.mxu0
    %3570 = vdwg.mxu0
    %3571 = vmatpush.bf16.msra.mxu0 %v3344
    %3572 = vmatpush.bf16.msra.mxu0 %v3342
    %3573 = vmatpush.bf16.msra.mxu0 %v3340
    %3574 = vmatpush.bf16.msra.mxu0 %v3338
    %3575 = vmatpush.bf16.msra.mxu0 %v3336
    %3576 = vmatpush.bf16.msra.mxu0 %v3334
    %3577 = vmatpush.bf16.msra.mxu0 %v3332
    %3578 = vmatpush.bf16.msra.mxu0 %v3330
    %3579 = vmatmul.bf16.gmra.mxu0 %v2729
    %v3580 = vpop.f32.mrf.mxu0
    %v3581 = vadd.f32 %v3568, %v3580
    %v3582 = vpop.f32.mrf.mxu0
    %3583 = vdwg.mxu0
    %3584 = vmatpush.bf16.msra.mxu0 %v3360
    %3585 = vmatpush.bf16.msra.mxu0 %v3358
    %3586 = vmatpush.bf16.msra.mxu0 %v3356
    %3587 = vmatpush.bf16.msra.mxu0 %v3354
    %3588 = vmatpush.bf16.msra.mxu0 %v3352
    %3589 = vmatpush.bf16.msra.mxu0 %v3350
    %3590 = vmatpush.bf16.msra.mxu0 %v3348
    %3591 = vmatpush.bf16.msra.mxu0 %v3346
    %3592 = vmatmul.bf16.gmra.mxu0 %v2730
    %v3593 = vpop.f32.mrf.mxu0
    %v3594 = vadd.f32 %v3581, %v3593
    %v3595 = vpop.f32.mrf.mxu0
    %3596 = vdwg.mxu0
    %3597 = vmatpush.bf16.msra.mxu0 %v3376
    %3598 = vmatpush.bf16.msra.mxu0 %v3374
    %3599 = vmatpush.bf16.msra.mxu0 %v3372
    %3600 = vmatpush.bf16.msra.mxu0 %v3370
    %3601 = vmatpush.bf16.msra.mxu0 %v3368
    %3602 = vmatpush.bf16.msra.mxu0 %v3366
    %3603 = vmatpush.bf16.msra.mxu0 %v3364
    %3604 = vmatpush.bf16.msra.mxu0 %v3362
    %3605 = vmatmul.bf16.gmra.mxu0 %v2731
    %v3606 = vpop.f32.mrf.mxu0
    %v3607 = vadd.f32 %v3594, %v3606
    %v3608 = vpop.f32.mrf.mxu0
    %3609 = vdwg.mxu0
    %3610 = vmatpush.bf16.msra.mxu0 %v3265
    %3611 = vmatpush.bf16.msra.mxu0 %v3263
    %3612 = vmatpush.bf16.msra.mxu0 %v3261
    %3613 = vmatpush.bf16.msra.mxu0 %v3259
    %3614 = vmatpush.bf16.msra.mxu0 %v3257
    %3615 = vmatpush.bf16.msra.mxu0 %v3255
    %3616 = vmatpush.bf16.msra.mxu0 %v3253
    %3617 = vmatpush.bf16.msra.mxu0 %v3251
    %3618 = vmatmul.bf16.gmra.mxu0 %v2724
    %v3619 = vpop.f32.mrf.mxu0
    %v3620 = vadd.f32 %v2863, %v3619
    %v3621 = vpop.f32.mrf.mxu0
    %3622 = vdwg.mxu0
    %3623 = vmatpush.bf16.msra.mxu0 %v3281
    %3624 = vmatpush.bf16.msra.mxu0 %v3279
    %3625 = vmatpush.bf16.msra.mxu0 %v3277
    %3626 = vmatpush.bf16.msra.mxu0 %v3275
    %3627 = vmatpush.bf16.msra.mxu0 %v3273
    %3628 = vmatpush.bf16.msra.mxu0 %v3271
    %3629 = vmatpush.bf16.msra.mxu0 %v3269
    %3630 = vmatpush.bf16.msra.mxu0 %v3267
    %3631 = vmatmul.bf16.gmra.mxu0 %v2725
    %v3632 = vpop.f32.mrf.mxu0
    %v3633 = vadd.f32 %v3620, %v3632
    %v3634 = vpop.f32.mrf.mxu0
    %3635 = vdwg.mxu0
    %3636 = vmatpush.bf16.msra.mxu0 %v3297
    %3637 = vmatpush.bf16.msra.mxu0 %v3295
    %3638 = vmatpush.bf16.msra.mxu0 %v3293
    %3639 = vmatpush.bf16.msra.mxu0 %v3291
    %3640 = vmatpush.bf16.msra.mxu0 %v3289
    %3641 = vmatpush.bf16.msra.mxu0 %v3287
    %3642 = vmatpush.bf16.msra.mxu0 %v3285
    %3643 = vmatpush.bf16.msra.mxu0 %v3283
    %3644 = vmatmul.bf16.gmra.mxu0 %v2726
    %v3645 = vpop.f32.mrf.mxu0
    %v3646 = vadd.f32 %v3633, %v3645
    %v3647 = vpop.f32.mrf.mxu0
    %3648 = vdwg.mxu0
    %3649 = vmatpush.bf16.msra.mxu0 %v3313
    %3650 = vmatpush.bf16.msra.mxu0 %v3311
    %3651 = vmatpush.bf16.msra.mxu0 %v3309
    %3652 = vmatpush.bf16.msra.mxu0 %v3307
    %3653 = vmatpush.bf16.msra.mxu0 %v3305
    %3654 = vmatpush.bf16.msra.mxu0 %v3303
    %3655 = vmatpush.bf16.msra.mxu0 %v3301
    %3656 = vmatpush.bf16.msra.mxu0 %v3299
    %3657 = vmatmul.bf16.gmra.mxu0 %v2727
    %v3658 = vpop.f32.mrf.mxu0
    %v3659 = vadd.f32 %v3646, %v3658
    %v3660 = vpop.f32.mrf.mxu0
    %3661 = vdwg.mxu0
    %3662 = vmatpush.bf16.msra.mxu0 %v3329
    %3663 = vmatpush.bf16.msra.mxu0 %v3327
    %3664 = vmatpush.bf16.msra.mxu0 %v3325
    %3665 = vmatpush.bf16.msra.mxu0 %v3323
    %3666 = vmatpush.bf16.msra.mxu0 %v3321
    %3667 = vmatpush.bf16.msra.mxu0 %v3319
    %3668 = vmatpush.bf16.msra.mxu0 %v3317
    %3669 = vmatpush.bf16.msra.mxu0 %v3315
    %3670 = vmatmul.bf16.gmra.mxu0 %v2728
    %v3671 = vpop.f32.mrf.mxu0
    %v3672 = vadd.f32 %v3659, %v3671
    %v3673 = vpop.f32.mrf.mxu0
    %3674 = vdwg.mxu0
    %3675 = vmatpush.bf16.msra.mxu0 %v3345
    %3676 = vmatpush.bf16.msra.mxu0 %v3343
    %3677 = vmatpush.bf16.msra.mxu0 %v3341
    %3678 = vmatpush.bf16.msra.mxu0 %v3339
    %3679 = vmatpush.bf16.msra.mxu0 %v3337
    %3680 = vmatpush.bf16.msra.mxu0 %v3335
    %3681 = vmatpush.bf16.msra.mxu0 %v3333
    %3682 = vmatpush.bf16.msra.mxu0 %v3331
    %3683 = vmatmul.bf16.gmra.mxu0 %v2729
    %v3684 = vpop.f32.mrf.mxu0
    %v3685 = vadd.f32 %v3672, %v3684
    %v3686 = vpop.f32.mrf.mxu0
    %3687 = vdwg.mxu0
    %3688 = vmatpush.bf16.msra.mxu0 %v3361
    %3689 = vmatpush.bf16.msra.mxu0 %v3359
    %3690 = vmatpush.bf16.msra.mxu0 %v3357
    %3691 = vmatpush.bf16.msra.mxu0 %v3355
    %3692 = vmatpush.bf16.msra.mxu0 %v3353
    %3693 = vmatpush.bf16.msra.mxu0 %v3351
    %3694 = vmatpush.bf16.msra.mxu0 %v3349
    %3695 = vmatpush.bf16.msra.mxu0 %v3347
    %3696 = vmatmul.bf16.gmra.mxu0 %v2730
    %v3697 = vpop.f32.mrf.mxu0
    %v3698 = vadd.f32 %v3685, %v3697
    %v3699 = vpop.f32.mrf.mxu0
    %3700 = vdwg.mxu0
    %3701 = vmatpush.bf16.msra.mxu0 %v3377
    %3702 = vmatpush.bf16.msra.mxu0 %v3375
    %3703 = vmatpush.bf16.msra.mxu0 %v3373
    %3704 = vmatpush.bf16.msra.mxu0 %v3371
    %3705 = vmatpush.bf16.msra.mxu0 %v3369
    %3706 = vmatpush.bf16.msra.mxu0 %v3367
    %3707 = vmatpush.bf16.msra.mxu0 %v3365
    %3708 = vmatpush.bf16.msra.mxu0 %v3363
    %3709 = vmatmul.bf16.gmra.mxu0 %v2731
    %v3710 = vpop.f32.mrf.mxu0
    %v3711 = vadd.f32 %v3698, %v3710
    %v3712 = vpop.f32.mrf.mxu0
    %3713 = vdwg.mxu0
    %v3714 = vtanh.pop %v3607
    %v3715 = vtanh.pop %v3711
    %3716 = vst [vmem:[%s9] sm:$0xff] %v3714
    %3717 = vst [vmem:[%s9 + $0x8] sm:$0xff] %v3715
    // Predicated region
    $region70: #{vanilla_g_forward.1} parent=1 // pred_check
      _
    $region71: #{vanilla_g_forward.1} parent=1 // pred_check_branch
      %3719 = sbr.rel (0) target = $region73
    $region72: #{vanilla_g_forward.1} parent=1 // pred_region
      _
    $region73: #{vanilla_g_forward.1} parent=1 // pred_fallthru
      _
    // Predicated region
    $region74: #{vanilla_g_forward.1} parent=1 // pred_check
      _
    $region75: #{vanilla_g_forward.1} parent=1 // pred_check_branch
      %3721 = sbr.rel (0) target = $region77
    $region76: #{vanilla_g_forward.1} parent=1 // pred_region
      _
    $region77: #{vanilla_g_forward.1} parent=1 // pred_fallthru
      _
    %3722 = vsyncpa [#allocation3], 1
    %3723 = vsyncpa [#allocation5], 1
    %3724 = vsyncpa [#allocation8], 1
    %3725 = vsyncpa [#allocation11], 1
    %3726 = vsyncpa [#allocation14], 1

</llo_original>
